<compile_context>
chip_gen: v7x
topology: tpu7x:2x2x1
jax: 0.10.0
libtpu: 0.0.40
codegen_flags: <defaults>
</compile_context>

<pallas_src>
import jax
import jax.numpy as jnp
from jax import lax
from jax.experimental import pallas as pl
from jax.experimental.pallas import tpu as pltpu

_OUT_PAD = 128   # lane-dense classifier output width (sliced to 6 in the wrapper)


# ----------------------------------------------------------------------------
# Pallas kernel: interleaved BiLSTM -> interleaved BiGRU -> mean/max pool -> FC
# ----------------------------------------------------------------------------
def jigsaw_kernel(emb_ref,          # (T, TB, E)
                  lwih_ref,         # (2, E, 4H)   LSTM input weights (gates fused along N)
                  lwhh_ref,         # (2, H, 4H)   LSTM recurrent weights (fused)
                  lb_ref,           # (2, 1, 4H)   LSTM bias (b_ih + b_hh)
                  gwih_ref,         # (2, 2, H, 4H) GRU input weights [dir, lstm-half], N padded 3H->4H
                  gwhh_ref,         # (2, H, 3H)   GRU recurrent weights (fused)
                  gb_ref,           # (2, 1, 4H)   GRU input bias (r,z: b_ih+b_hh ; n: b_in ; pad 0)
                  gbhhn_ref,        # (2, 1, H)    GRU b_hn (stays inside r*(...))
                  fcw_ref,          # (4H, 128)    FC weight, rows [avg_f|avg_b|max_f|max_b]
                  fcb_ref,          # (1, 128)
                  out_ref,          # (TB, 128)
                  proj_scr,         # (2, T, TB, 4H)  lane-dense LSTM/GRU input-proj scratch
                  hf_scr,           # (T, TB, H)   LSTM forward outputs
                  hb_scr):          # (T, TB, H)   LSTM backward outputs
    T, TB, E = emb_ref.shape
    H = hf_scr.shape[-1]
    H4 = 4 * H
    f32 = jnp.float32
    unroll = True if T <= 16 else 8

    # ---------------- LSTM input projections: one fused dot per direction -----
    emb_flat = emb_ref[...].reshape(T * TB, E)
    for d in range(2):
        proj = jnp.dot(emb_flat, lwih_ref[d], preferred_element_type=f32) + lb_ref[d]
        proj_scr[d] = proj.reshape(T, TB, H4)

    # hoist only the LSTM recurrent weights here (GRU hoists happen after the
    # LSTM loop to keep live ranges short inside the unrolled recurrence).
    lwhh_f = lwhh_ref[0]
    lwhh_b = lwhh_ref[1]
    zero = jnp.zeros((TB, H), f32)

    # ---------------- interleaved bidirectional LSTM (gate order i, f, g, o) --
    def lstm_step(i, carry):
        hf, cf, hb, cb = carry
        tb = T - 1 - i

        gf_all = proj_scr[0, i] + jnp.dot(hf, lwhh_f, preferred_element_type=f32)
        gb_all = proj_scr[1, tb] + jnp.dot(hb, lwhh_b, preferred_element_type=f32)

        sf_ = jax.nn.sigmoid(gf_all)          # one full-width EUP pass (i,f,o used)
        sb_ = jax.nn.sigmoid(gb_all)
        cf2 = sf_[:, H:2 * H] * cf + sf_[:, 0:H] * jnp.tanh(gf_all[:, 2 * H:3 * H])
        cb2 = sb_[:, H:2 * H] * cb + sb_[:, 0:H] * jnp.tanh(gb_all[:, 2 * H:3 * H])
        hf2 = sf_[:, 3 * H:4 * H] * jnp.tanh(cf2)
        hb2 = sb_[:, 3 * H:4 * H] * jnp.tanh(cb2)

        hf_scr[i] = hf2
        hb_scr[tb] = hb2
        return hf2, cf2, hb2, cb2

    lax.fori_loop(0, T, lstm_step, (zero, zero, zero, zero), unroll=unroll)

    # ---------------- GRU input projections (per direction, per LSTM half) ----
    hf_flat = hf_scr[...].reshape(T * TB, H)
    hb_flat = hb_scr[...].reshape(T * TB, H)
    for d in range(2):
        proj = (jnp.dot(hf_flat, gwih_ref[d, 0], preferred_element_type=f32)
                + jnp.dot(hb_flat, gwih_ref[d, 1], preferred_element_type=f32)
                + gb_ref[d])
        proj_scr[d] = proj.reshape(T, TB, H4)      # reuse lane-dense proj scratch

    # GRU recurrent weights / biases hoisted only now (outside LSTM live range).
    gwhh_f = gwhh_ref[0]
    gwhh_b = gwhh_ref[1]
    bhn_f = gbhhn_ref[0]                           # (1, H), broadcasts over TB
    bhn_b = gbhhn_ref[1]
    neg_inf = jnp.full((TB, H), -jnp.inf, f32)

    # ---------------- interleaved bidirectional GRU (gate order r, z, n) ------
    # Pooling is order-independent: each direction keeps its running sum / max.
    def gru_step(i, carry):
        hf, hb, sf, sb, mf, mb = carry
        tb = T - 1 - i

        ghf = jnp.dot(hf, gwhh_f, preferred_element_type=f32)     # (TB, 3H)
        ghb = jnp.dot(hb, gwhh_b, preferred_element_type=f32)

        pf = proj_scr[0, i]
        pb = proj_scr[1, tb]
        rzf = jax.nn.sigmoid(pf[:, 0:2 * H] + ghf[:, 0:2 * H])    # packed r|z
        rzb = jax.nn.sigmoid(pb[:, 0:2 * H] + ghb[:, 0:2 * H])
        nf = jnp.tanh(pf[:, 2 * H:3 * H] + rzf[:, 0:H] * (ghf[:, 2 * H:3 * H] + bhn_f))
        nb = jnp.tanh(pb[:, 2 * H:3 * H] + rzb[:, 0:H] * (ghb[:, 2 * H:3 * H] + bhn_b))
        zf = rzf[:, H:2 * H]
        zb = rzb[:, H:2 * H]
        hf2 = (1.0 - zf) * nf + zf * hf
        hb2 = (1.0 - zb) * nb + zb * hb

        return (hf2, hb2, sf + hf2, sb + hb2,
                jnp.maximum(mf, hf2), jnp.maximum(mb, hb2))

    init = (zero, zero, zero, zero, neg_inf, neg_inf)
    _, _, sf, sb, mf, mb = lax.fori_loop(0, T, gru_step, init, unroll=unroll)

    # ---------------- classifier: single lane-dense matmul --------------------
    inv_t = 1.0 / T
    feat = jnp.concatenate([sf * inv_t, sb * inv_t, mf, mb], axis=-1)   # (TB, 4H)
    out_ref[...] = (jnp.dot(feat, fcw_ref[...], preferred_element_type=f32)
                    + fcb_ref[...])


# ----------------------------------------------------------------------------
# Wrapper: weight re-layout, padded-VMEM accounting, batch tiling, pallas_call
# ----------------------------------------------------------------------------
def _r(x, m):
    return ((x + m - 1) // m) * m


def _padded_bytes(shape, itemsize=4):
    """f32 VMEM footprint with (8, 128) tile padding on the last two dims."""
    if len(shape) == 1:
        return _r(shape[0], 128) * 8 * itemsize
    lead = 1
    for s in shape[:-2]:
        lead *= s
    return lead * _r(shape[-2], 8) * _r(shape[-1], 128) * itemsize


def _vmem_capacity():
    try:
        cap = int(pltpu.get_tpu_info().vmem_capacity_bytes)
        return max(cap, 32 * 2 ** 20)
    except Exception:
        return 64 * 2 ** 20          # conservative (v7x-sized) fallback


def _pick_batch_tile(T, E, H, B, weight_shapes, budget_bytes):
    B8 = _r(max(B, 1), 8)
    w_bytes = 2 * sum(_padded_bytes(s) for s in weight_shapes)   # (assume 2 buffers)

    def step_bytes(tb):
        tb8 = _r(tb, 8)
        emb = 2 * _padded_bytes((T, tb8, E))          # double-buffered input block
        out = 2 * _padded_bytes((tb8, _OUT_PAD))      # double-buffered output block
        proj = _padded_bytes((2, T, tb8, 4 * H))      # lane-dense proj scratch
        hscr = 2 * _padded_bytes((T, tb8, H))         # LSTM fwd / bwd outputs
        return emb + out + proj + hscr + w_bytes

    tb = _r(min(256, B8), 8)
    while tb > 8 and step_bytes(tb) > budget_bytes:
        tb -= 8
    # >= 2 grid iterations when the batch allows it (shards across v7x's 2 TCs)
    if B8 >= 16:
        tb = min(tb, _r(-(-B8 // 2), 8))
    tb = max(tb, 8)
    return tb, step_bytes(tb)


def prepare_kernel_params(p, H):
    """PyTorch-layout parameters -> fused / pre-transposed kernel layout."""
    def pad_cols(w, n):
        return jnp.pad(w, ((0, 0), (0, n - w.shape[1])))

    # LSTM: gates stay fused along the lane axis (order i, f, g, o).
    lwih = jnp.stack([p['lwih_f'].T, p['lwih_b'].T], 0)            # (2, E, 4H)
    lwhh = jnp.stack([p['lwhh_f'].T, p['lwhh_b'].T], 0)            # (2, H, 4H)
    lb = jnp.stack([p['lb_f'], p['lb_b']], 0)                      # (2, 1, 4H)

    # GRU input weights: (3H, 2H) -> per LSTM-half (H, 3H), padded to 4H lanes.
    def gru_ih(w):
        wt = w.T                                                   # (2H, 3H)
        return jnp.stack([pad_cols(wt[:H], 4 * H),
                          pad_cols(wt[H:], 4 * H)], 0)             # (2, H, 4H)
    gwih = jnp.stack([gru_ih(p['gwih_f']), gru_ih(p['gwih_b'])], 0)  # (2, 2, H, 4H)
    gwhh = jnp.stack([p['gwhh_f'].T, p['gwhh_b'].T], 0)            # (2, H, 3H)

    def gru_bias(bih, bhh):
        bi, bh = bih.reshape(3, H), bhh.reshape(3, H)
        gb = jnp.concatenate([bi[0] + bh[0], bi[1] + bh[1], bi[2],
                              jnp.zeros((H,), bi.dtype)])[None, :]  # (1, 4H)
        return gb, bh[2][None, :]                                   # b_hn (1, H)
    gbf, bhnf = gru_bias(p['gbih_f'], p['gbhh_f'])
    gbb, bhnb = gru_bias(p['gbih_b'], p['gbhh_b'])
    gb = jnp.stack([gbf, gbb], 0)                                   # (2, 1, 4H)
    gbhhn = jnp.stack([bhnf, bhnb], 0)                              # (2, 1, H)

    # Classifier: rows ordered [avg_f | avg_b | max_f | max_b]; lane-padded cols.
    out_dim = p['fc_w'].shape[0]
    fcw = jnp.pad(p['fc_w'].T, ((0, 0), (0, _OUT_PAD - out_dim)))   # (4H, 128)
    fcb = jnp.pad(p['fc_b'], ((0, 0), (0, _OUT_PAD - out_dim)))     # (1, 128)

    return dict(lwih=lwih, lwhh=lwhh, lb=lb, gwih=gwih, gwhh=gwhh,
                gb=gb, gbhhn=gbhhn, fcw=fcw, fcb=fcb)


def _resident(arr):
    n = arr.ndim
    return pl.BlockSpec(arr.shape, lambda b, _n=n: (0,) * _n)


def jigsaw_forward(emb_bte, params, hidden_dim):
    """emb_bte: (B, T, E) embedded sequence (batch-first, like the PyTorch module)."""
    B, T, E = emb_bte.shape
    H = hidden_dim
    kp = prepare_kernel_params(params, H)

    weights = [kp['lwih'], kp['lwhh'], kp['lb'], kp['gwih'], kp['gwhh'],
               kp['gb'], kp['gbhhn'], kp['fcw'], kp['fcb']]
    weight_shapes = [tuple(w.shape) for w in weights]

    cap = _vmem_capacity()                      # 64 MiB on v7x, 128 MiB on v5e/v6e
    budget = min(int(cap * 0.6), 80 * 2 ** 20)  # headroom for compiler scratch
    TB, est = _pick_batch_tile(T, E, H, B, weight_shapes, budget)

    B_pad = _r(B, TB)
    emb_tbe = jnp.swapaxes(emb_bte, 0, 1)       # (T, B, E) time-major
    if B_pad != B:
        emb_tbe = jnp.pad(emb_tbe, ((0, 0), (0, B_pad - B), (0, 0)))

    vmem_limit = int(min(cap - 2 * 2 ** 20, max(24 * 2 ** 20, int(1.5 * est))))

    grid = (B_pad // TB,)
    out = pl.pallas_call(
        jigsaw_kernel,
        out_shape=jax.ShapeDtypeStruct((B_pad, _OUT_PAD), jnp.float32),
        grid=grid,
        in_specs=[pl.BlockSpec((T, TB, E), lambda b: (0, b, 0))]
                 + [_resident(w) for w in weights],
        out_specs=pl.BlockSpec((TB, _OUT_PAD), lambda b: (b, 0)),
        scratch_shapes=[pltpu.VMEM((2, T, TB, 4 * H), jnp.float32),
                        pltpu.VMEM((T, TB, H), jnp.float32),
                        pltpu.VMEM((T, TB, H), jnp.float32)],
        compiler_params=pltpu.CompilerParams(
            dimension_semantics=("parallel",),
            vmem_limit_bytes=vmem_limit),
    )(emb_tbe, *weights)
    return out[:B, :6]


# ----------------------------------------------------------------------------
# Deterministic parameter initialization (shapes per the PyTorch module)
# ----------------------------------------------------------------------------
def init_params(key, E, H):
    keys = iter(jax.random.split(key, 16))

    def w(shape, scale=0.1):
        return jax.random.normal(next(keys), shape, jnp.float32) * scale

    p = {}
    for d in ('f', 'b'):
        p[f'lwih_{d}'] = w((4 * H, E))      # LSTM weight_ih
        p[f'lwhh_{d}'] = w((4 * H, H))      # LSTM weight_hh
        p[f'lb_{d}'] = w((1, 4 * H))        # LSTM b_ih + b_hh (combined)
        p[f'gwih_{d}'] = w((3 * H, 2 * H))  # GRU weight_ih
        p[f'gwhh_{d}'] = w((3 * H, H))      # GRU weight_hh
        p[f'gbih_{d}'] = w((1, 3 * H))      # GRU b_ih
        p[f'gbhh_{d}'] = w((1, 3 * H))      # GRU b_hh
    p['fc_w'] = w((6, 4 * H))
    p['fc_b'] = w((1, 6))
    return p


# ----------------------------------------------------------------------------
# Pure-JAX reference (mirrors torch semantics) for a correctness check
# ----------------------------------------------------------------------------
def _lstm_dir_ref(x, wih, whh, b, H, reverse):
    B = x.shape[0]
    xs = jnp.swapaxes(x, 0, 1)
    if reverse:
        xs = xs[::-1]

    def step(carry, xt):
        h, c = carry
        g = xt @ wih.T + b[0] + h @ whh.T
        i = jax.nn.sigmoid(g[:, 0:H])
        f = jax.nn.sigmoid(g[:, H:2 * H])
        gg = jnp.tanh(g[:, 2 * H:3 * H])
        o = jax.nn.sigmoid(g[:, 3 * H:4 * H])
        c2 = f * c + i * gg
        h2 = o * jnp.tanh(c2)
        return (h2, c2), h2

    _, hs = lax.scan(step, (jnp.zeros((B, H)), jnp.zeros((B, H))), xs)
    if reverse:
        hs = hs[::-1]
    return jnp.swapaxes(hs, 0, 1)


def _gru_dir_ref(x, wih, whh, bih, bhh, H, reverse):
    B = x.shape[0]
    xs = jnp.swapaxes(x, 0, 1)
    if reverse:
        xs = xs[::-1]

    def step(h, xt):
        gi = xt @ wih.T + bih[0]
        gh = h @ whh.T + bhh[0]
        r = jax.nn.sigmoid(gi[:, 0:H] + gh[:, 0:H])
        z = jax.nn.sigmoid(gi[:, H:2 * H] + gh[:, H:2 * H])
        n = jnp.tanh(gi[:, 2 * H:3 * H] + r * gh[:, 2 * H:3 * H])
        h2 = (1.0 - z) * n + z * h
        return h2, h2

    _, hs = lax.scan(step, jnp.zeros((B, H)), xs)
    if reverse:
        hs = hs[::-1]
    return jnp.swapaxes(hs, 0, 1)


def reference_forward(emb, p, H):
    of = _lstm_dir_ref(emb, p['lwih_f'], p['lwhh_f'], p['lb_f'], H, False)
    ob = _lstm_dir_ref(emb, p['lwih_b'], p['lwhh_b'], p['lb_b'], H, True)
    o_lstm = jnp.concatenate([of, ob], axis=-1)
    gf = _gru_dir_ref(o_lstm, p['gwih_f'], p['gwhh_f'], p['gbih_f'], p['gbhh_f'], H, False)
    gb = _gru_dir_ref(o_lstm, p['gwih_b'], p['gwhh_b'], p['gbih_b'], p['gbhh_b'], H, True)
    o_gru = jnp.concatenate([gf, gb], axis=-1)                 # (B, T, 2H)
    avg = jnp.mean(o_gru, axis=1)
    mx = jnp.max(o_gru, axis=1)
    h = jnp.concatenate([avg, mx], axis=-1)
    return h @ p['fc_w'].T + p['fc_b'][0]


# ----------------------------------------------------------------------------
if __name__ == "__main__":
    vocab_size, embed_dim, hidden_dim = 50, 16, 32
    B, T = 2, 8

    key = jax.random.PRNGKey(0)
    k_emb, k_tok, k_par = jax.random.split(key, 3)

    embed_matrix = jax.random.normal(k_emb, (vocab_size, embed_dim), jnp.float32)
    seq = jax.random.randint(k_tok, (B, T), 0, vocab_size)     # token ids (B, T)
    params = init_params(k_par, embed_dim, hidden_dim)

    # Embedding lookup (glue); dropout layers are identity at inference.
    emb = embed_matrix[seq]                                    # (B, T, E)

    out = jigsaw_forward(emb, params, hidden_dim)
    out = jax.block_until_ready(out)

    ref = reference_forward(emb, params, hidden_dim)
    assert out.shape == (B, 6)
    assert jnp.allclose(out, ref, atol=1e-2, rtol=1e-2), (out, ref)

    print("KERNEL_OK")
</pallas_src>

<mosaic_0001>
module attributes {stable_mosaic.version = 11 : i64} {
  func.func @jigsaw_kernel(%arg0: i32, %arg1: memref<8x8x16xf32, #tpu.memory_space<vmem>>, %arg2: memref<2x16x128xf32, #tpu.memory_space<vmem>>, %arg3: memref<2x32x128xf32, #tpu.memory_space<vmem>>, %arg4: memref<2x1x128xf32, #tpu.memory_space<vmem>>, %arg5: memref<2x2x32x128xf32, #tpu.memory_space<vmem>>, %arg6: memref<2x32x96xf32, #tpu.memory_space<vmem>>, %arg7: memref<2x1x128xf32, #tpu.memory_space<vmem>>, %arg8: memref<2x1x32xf32, #tpu.memory_space<vmem>>, %arg9: memref<128x128xf32, #tpu.memory_space<vmem>>, %arg10: memref<1x128xf32, #tpu.memory_space<vmem>>, %arg11: memref<8x128xf32, #tpu.memory_space<vmem>>, %arg12: memref<2x8x8x128xf32, #tpu.memory_space<vmem>>, %arg13: memref<8x8x32xf32, #tpu.memory_space<vmem>>, %arg14: memref<8x8x32xf32, #tpu.memory_space<vmem>>) attributes {dimension_semantics = [#tpu.dimension_semantics<parallel>], iteration_bounds = array<i64: 1>, scalar_prefetch = 0 : i64, scratch_operands = 3 : i64, tpu.core_type = #tpu.core_type<tc>, window_params = [{transform_indices = @transform_0, window_bounds = array<i64: 8, 8, 16>}, {pipeline_mode = #tpu.pipeline_mode<synchronous>, transform_indices = @transform_1, window_bounds = array<i64: 2, 16, 128>}, {pipeline_mode = #tpu.pipeline_mode<synchronous>, transform_indices = @transform_2, window_bounds = array<i64: 2, 32, 128>}, {pipeline_mode = #tpu.pipeline_mode<synchronous>, transform_indices = @transform_3, window_bounds = array<i64: 2, 1, 128>}, {pipeline_mode = #tpu.pipeline_mode<synchronous>, transform_indices = @transform_4, window_bounds = array<i64: 2, 2, 32, 128>}, {pipeline_mode = #tpu.pipeline_mode<synchronous>, transform_indices = @transform_5, window_bounds = array<i64: 2, 32, 96>}, {pipeline_mode = #tpu.pipeline_mode<synchronous>, transform_indices = @transform_6, window_bounds = array<i64: 2, 1, 128>}, {pipeline_mode = #tpu.pipeline_mode<synchronous>, transform_indices = @transform_7, window_bounds = array<i64: 2, 1, 32>}, {pipeline_mode = #tpu.pipeline_mode<synchronous>, transform_indices = @transform_8, window_bounds = array<i64: 128, 128>}, {pipeline_mode = #tpu.pipeline_mode<synchronous>, transform_indices = @transform_9, window_bounds = array<i64: 1, 128>}, {transform_indices = @transform_10, window_bounds = array<i64: 8, 128>}]} {
    %c0 = arith.constant 0 : index
    %c0_0 = arith.constant 0 : index
    %c0_1 = arith.constant 0 : index
    %0 = vector.load %arg1[%c0, %c0_0, %c0_1] : memref<8x8x16xf32, #tpu.memory_space<vmem>>, vector<8x8x16xf32>
    %1 = vector.shape_cast %0 : vector<8x8x16xf32> to vector<64x16xf32>
    %c0_2 = arith.constant 0 : index
    %c0_3 = arith.constant 0 : index
    %c0_4 = arith.constant 0 : index
    %2 = vector.load %arg2[%c0_2, %c0_3, %c0_4] : memref<2x16x128xf32, #tpu.memory_space<vmem>>, vector<1x16x128xf32>
    %3 = vector.shape_cast %2 : vector<1x16x128xf32> to vector<16x128xf32>
    %cst = arith.constant dense<0.000000e+00> : vector<64x128xf32>
    %4 = tpu.matmul %1, %3, %cst {dimension_numbers = #tpu.dot_dimension_numbers<[1], [0], [0], [1], [0, 0, 1, 1], [], []>} : vector<64x16xf32>, vector<16x128xf32>, vector<64x128xf32> -> vector<64x128xf32>
    %c0_5 = arith.constant 0 : index
    %c0_6 = arith.constant 0 : index
    %c0_7 = arith.constant 0 : index
    %5 = vector.load %arg4[%c0_5, %c0_6, %c0_7] : memref<2x1x128xf32, #tpu.memory_space<vmem>>, vector<1x1x128xf32>
    %6 = vector.shape_cast %5 : vector<1x1x128xf32> to vector<1x128xf32>
    %7 = vector.broadcast %6 : vector<1x128xf32> to vector<64x128xf32>
    %8 = arith.addf %4, %7 : vector<64x128xf32>
    %9 = vector.shape_cast %8 : vector<64x128xf32> to vector<8x8x128xf32>
    %c0_8 = arith.constant 0 : index
    %c0_9 = arith.constant 0 : index
    %c0_10 = arith.constant 0 : index
    %c0_11 = arith.constant 0 : index
    %10 = vector.load %arg12[%c0_8, %c0_9, %c0_10, %c0_11] : memref<2x8x8x128xf32, #tpu.memory_space<vmem>>, vector<1x8x8x128xf32>
    %11 = vector.shape_cast %10 : vector<1x8x8x128xf32> to vector<8x8x128xf32>
    %12 = vector.shape_cast %9 : vector<8x8x128xf32> to vector<1x8x8x128xf32>
    tpu.vector_store %arg12[%c0_8, %c0_9, %c0_10, %c0_11], %12 {strides = array<i32>} : memref<2x8x8x128xf32, #tpu.memory_space<vmem>>, vector<1x8x8x128xf32>,
    %c1 = arith.constant 1 : index
    %c0_12 = arith.constant 0 : index
    %c0_13 = arith.constant 0 : index
    %13 = vector.load %arg2[%c1, %c0_12, %c0_13] : memref<2x16x128xf32, #tpu.memory_space<vmem>>, vector<1x16x128xf32>
    %14 = vector.shape_cast %13 : vector<1x16x128xf32> to vector<16x128xf32>
    %cst_14 = arith.constant dense<0.000000e+00> : vector<64x128xf32>
    %15 = tpu.matmul %1, %14, %cst_14 {dimension_numbers = #tpu.dot_dimension_numbers<[1], [0], [0], [1], [0, 0, 1, 1], [], []>} : vector<64x16xf32>, vector<16x128xf32>, vector<64x128xf32> -> vector<64x128xf32>
    %c1_15 = arith.constant 1 : index
    %c0_16 = arith.constant 0 : index
    %c0_17 = arith.constant 0 : index
    %16 = vector.load %arg4[%c1_15, %c0_16, %c0_17] : memref<2x1x128xf32, #tpu.memory_space<vmem>>, vector<1x1x128xf32>
    %17 = vector.shape_cast %16 : vector<1x1x128xf32> to vector<1x128xf32>
    %18 = vector.broadcast %17 : vector<1x128xf32> to vector<64x128xf32>
    %19 = arith.addf %15, %18 : vector<64x128xf32>
    %20 = vector.shape_cast %19 : vector<64x128xf32> to vector<8x8x128xf32>
    %c1_18 = arith.constant 1 : index
    %c0_19 = arith.constant 0 : index
    %c0_20 = arith.constant 0 : index
    %c0_21 = arith.constant 0 : index
    %21 = vector.load %arg12[%c1_18, %c0_19, %c0_20, %c0_21] : memref<2x8x8x128xf32, #tpu.memory_space<vmem>>, vector<1x8x8x128xf32>
    %22 = vector.shape_cast %21 : vector<1x8x8x128xf32> to vector<8x8x128xf32>
    %23 = vector.shape_cast %20 : vector<8x8x128xf32> to vector<1x8x8x128xf32>
    tpu.vector_store %arg12[%c1_18, %c0_19, %c0_20, %c0_21], %23 {strides = array<i32>} : memref<2x8x8x128xf32, #tpu.memory_space<vmem>>, vector<1x8x8x128xf32>,
    %c0_22 = arith.constant 0 : index
    %c0_23 = arith.constant 0 : index
    %c0_24 = arith.constant 0 : index
    %24 = vector.load %arg3[%c0_22, %c0_23, %c0_24] : memref<2x32x128xf32, #tpu.memory_space<vmem>>, vector<1x32x128xf32>
    %25 = vector.shape_cast %24 : vector<1x32x128xf32> to vector<32x128xf32>
    %c1_25 = arith.constant 1 : index
    %c0_26 = arith.constant 0 : index
    %c0_27 = arith.constant 0 : index
    %26 = vector.load %arg3[%c1_25, %c0_26, %c0_27] : memref<2x32x128xf32, #tpu.memory_space<vmem>>, vector<1x32x128xf32>
    %27 = vector.shape_cast %26 : vector<1x32x128xf32> to vector<32x128xf32>
    %cst_28 = arith.constant 0.000000e+00 : f32
    %28 = vector.broadcast %cst_28 : f32 to vector<8x32xf32>
    %c0_i32 = arith.constant 0 : i32
    %c7_i32 = arith.constant 7 : i32
    %29 = arith.subi %c7_i32, %c0_i32 : i32
    %c0_29 = arith.constant 0 : index
    %30 = arith.index_cast %c0_i32 : i32 to index
    %c0_30 = arith.constant 0 : index
    %c0_31 = arith.constant 0 : index
    %31 = vector.load %arg12[%c0_29, %30, %c0_30, %c0_31] : memref<2x8x8x128xf32, #tpu.memory_space<vmem>>, vector<1x1x8x128xf32>
    %32 = vector.shape_cast %31 : vector<1x1x8x128xf32> to vector<8x128xf32>
    %cst_32 = arith.constant dense<0.000000e+00> : vector<8x128xf32>
    %33 = tpu.matmul %28, %25, %cst_32 {dimension_numbers = #tpu.dot_dimension_numbers<[1], [0], [0], [1], [0, 0, 1, 1], [], []>} : vector<8x32xf32>, vector<32x128xf32>, vector<8x128xf32> -> vector<8x128xf32>
    %34 = arith.addf %32, %33 : vector<8x128xf32>
    %c1_33 = arith.constant 1 : index
    %35 = arith.index_cast %29 : i32 to index
    %c0_34 = arith.constant 0 : index
    %c0_35 = arith.constant 0 : index
    %36 = vector.load %arg12[%c1_33, %35, %c0_34, %c0_35] : memref<2x8x8x128xf32, #tpu.memory_space<vmem>>, vector<1x1x8x128xf32>
    %37 = vector.shape_cast %36 : vector<1x1x8x128xf32> to vector<8x128xf32>
    %cst_36 = arith.constant dense<0.000000e+00> : vector<8x128xf32>
    %38 = tpu.matmul %28, %27, %cst_36 {dimension_numbers = #tpu.dot_dimension_numbers<[1], [0], [0], [1], [0, 0, 1, 1], [], []>} : vector<8x32xf32>, vector<32x128xf32>, vector<8x128xf32> -> vector<8x128xf32>
    %39 = arith.addf %37, %38 : vector<8x128xf32>
    %40 = arith.negf %34 : vector<8x128xf32>
    %41 = math.exp %40 : vector<8x128xf32>
    %cst_37 = arith.constant 1.000000e+00 : f32
    %42 = vector.broadcast %cst_37 : f32 to vector<8x128xf32>
    %43 = arith.addf %42, %41 : vector<8x128xf32>
    %44 = arith.divf %42, %43 : vector<8x128xf32>
    %45 = arith.negf %39 : vector<8x128xf32>
    %46 = math.exp %45 : vector<8x128xf32>
    %cst_38 = arith.constant 1.000000e+00 : f32
    %47 = vector.broadcast %cst_38 : f32 to vector<8x128xf32>
    %48 = arith.addf %47, %46 : vector<8x128xf32>
    %49 = arith.divf %47, %48 : vector<8x128xf32>
    %50 = vector.extract_strided_slice %44 {offsets = [0, 32], sizes = [8, 32], strides = [1, 1]} : vector<8x128xf32> to vector<8x32xf32>
    %51 = arith.mulf %50, %28 : vector<8x32xf32>
    %52 = vector.extract_strided_slice %44 {offsets = [0, 0], sizes = [8, 32], strides = [1, 1]} : vector<8x128xf32> to vector<8x32xf32>
    %53 = vector.extract_strided_slice %34 {offsets = [0, 64], sizes = [8, 32], strides = [1, 1]} : vector<8x128xf32> to vector<8x32xf32>
    %54 = math.tanh %53 : vector<8x32xf32>
    %55 = arith.mulf %52, %54 : vector<8x32xf32>
    %56 = arith.addf %51, %55 : vector<8x32xf32>
    %57 = vector.extract_strided_slice %49 {offsets = [0, 32], sizes = [8, 32], strides = [1, 1]} : vector<8x128xf32> to vector<8x32xf32>
    %58 = arith.mulf %57, %28 : vector<8x32xf32>
    %59 = vector.extract_strided_slice %49 {offsets = [0, 0], sizes = [8, 32], strides = [1, 1]} : vector<8x128xf32> to vector<8x32xf32>
    %60 = vector.extract_strided_slice %39 {offsets = [0, 64], sizes = [8, 32], strides = [1, 1]} : vector<8x128xf32> to vector<8x32xf32>
    %61 = math.tanh %60 : vector<8x32xf32>
    %62 = arith.mulf %59, %61 : vector<8x32xf32>
    %63 = arith.addf %58, %62 : vector<8x32xf32>
    %64 = vector.extract_strided_slice %44 {offsets = [0, 96], sizes = [8, 32], strides = [1, 1]} : vector<8x128xf32> to vector<8x32xf32>
    %65 = math.tanh %56 : vector<8x32xf32>
    %66 = arith.mulf %64, %65 : vector<8x32xf32>
    %67 = vector.extract_strided_slice %49 {offsets = [0, 96], sizes = [8, 32], strides = [1, 1]} : vector<8x128xf32> to vector<8x32xf32>
    %68 = math.tanh %63 : vector<8x32xf32>
    %69 = arith.mulf %67, %68 : vector<8x32xf32>
    %70 = arith.index_cast %c0_i32 : i32 to index
    %c0_39 = arith.constant 0 : index
    %c0_40 = arith.constant 0 : index
    %71 = vector.load %arg13[%70, %c0_39, %c0_40] : memref<8x8x32xf32, #tpu.memory_space<vmem>>, vector<1x8x32xf32>
    %72 = vector.shape_cast %71 : vector<1x8x32xf32> to vector<8x32xf32>
    %73 = vector.shape_cast %66 : vector<8x32xf32> to vector<1x8x32xf32>
    tpu.vector_store %arg13[%70, %c0_39, %c0_40], %73 {strides = array<i32>} : memref<8x8x32xf32, #tpu.memory_space<vmem>>, vector<1x8x32xf32>,
    %74 = arith.index_cast %29 : i32 to index
    %c0_41 = arith.constant 0 : index
    %c0_42 = arith.constant 0 : index
    %75 = vector.load %arg14[%74, %c0_41, %c0_42] : memref<8x8x32xf32, #tpu.memory_space<vmem>>, vector<1x8x32xf32>
    %76 = vector.shape_cast %75 : vector<1x8x32xf32> to vector<8x32xf32>
    %77 = vector.shape_cast %69 : vector<8x32xf32> to vector<1x8x32xf32>
    tpu.vector_store %arg14[%74, %c0_41, %c0_42], %77 {strides = array<i32>} : memref<8x8x32xf32, #tpu.memory_space<vmem>>, vector<1x8x32xf32>,
    %c1_i32 = arith.constant 1 : i32
    %c7_i32_43 = arith.constant 7 : i32
    %78 = arith.subi %c7_i32_43, %c1_i32 : i32
    %c0_44 = arith.constant 0 : index
    %79 = arith.index_cast %c1_i32 : i32 to index
    %c0_45 = arith.constant 0 : index
    %c0_46 = arith.constant 0 : index
    %80 = vector.load %arg12[%c0_44, %79, %c0_45, %c0_46] : memref<2x8x8x128xf32, #tpu.memory_space<vmem>>, vector<1x1x8x128xf32>
    %81 = vector.shape_cast %80 : vector<1x1x8x128xf32> to vector<8x128xf32>
    %cst_47 = arith.constant dense<0.000000e+00> : vector<8x128xf32>
    %82 = tpu.matmul %66, %25, %cst_47 {dimension_numbers = #tpu.dot_dimension_numbers<[1], [0], [0], [1], [0, 0, 1, 1], [], []>} : vector<8x32xf32>, vector<32x128xf32>, vector<8x128xf32> -> vector<8x128xf32>
    %83 = arith.addf %81, %82 : vector<8x128xf32>
    %c1_48 = arith.constant 1 : index
    %84 = arith.index_cast %78 : i32 to index
    %c0_49 = arith.constant 0 : index
    %c0_50 = arith.constant 0 : index
    %85 = vector.load %arg12[%c1_48, %84, %c0_49, %c0_50] : memref<2x8x8x128xf32, #tpu.memory_space<vmem>>, vector<1x1x8x128xf32>
    %86 = vector.shape_cast %85 : vector<1x1x8x128xf32> to vector<8x128xf32>
    %cst_51 = arith.constant dense<0.000000e+00> : vector<8x128xf32>
    %87 = tpu.matmul %69, %27, %cst_51 {dimension_numbers = #tpu.dot_dimension_numbers<[1], [0], [0], [1], [0, 0, 1, 1], [], []>} : vector<8x32xf32>, vector<32x128xf32>, vector<8x128xf32> -> vector<8x128xf32>
    %88 = arith.addf %86, %87 : vector<8x128xf32>
    %89 = arith.negf %83 : vector<8x128xf32>
    %90 = math.exp %89 : vector<8x128xf32>
    %cst_52 = arith.constant 1.000000e+00 : f32
    %91 = vector.broadcast %cst_52 : f32 to vector<8x128xf32>
    %92 = arith.addf %91, %90 : vector<8x128xf32>
    %93 = arith.divf %91, %92 : vector<8x128xf32>
    %94 = arith.negf %88 : vector<8x128xf32>
    %95 = math.exp %94 : vector<8x128xf32>
    %cst_53 = arith.constant 1.000000e+00 : f32
    %96 = vector.broadcast %cst_53 : f32 to vector<8x128xf32>
    %97 = arith.addf %96, %95 : vector<8x128xf32>
    %98 = arith.divf %96, %97 : vector<8x128xf32>
    %99 = vector.extract_strided_slice %93 {offsets = [0, 32], sizes = [8, 32], strides = [1, 1]} : vector<8x128xf32> to vector<8x32xf32>
    %100 = arith.mulf %99, %56 : vector<8x32xf32>
    %101 = vector.extract_strided_slice %93 {offsets = [0, 0], sizes = [8, 32], strides = [1, 1]} : vector<8x128xf32> to vector<8x32xf32>
    %102 = vector.extract_strided_slice %83 {offsets = [0, 64], sizes = [8, 32], strides = [1, 1]} : vector<8x128xf32> to vector<8x32xf32>
    %103 = math.tanh %102 : vector<8x32xf32>
    %104 = arith.mulf %101, %103 : vector<8x32xf32>
    %105 = arith.addf %100, %104 : vector<8x32xf32>
    %106 = vector.extract_strided_slice %98 {offsets = [0, 32], sizes = [8, 32], strides = [1, 1]} : vector<8x128xf32> to vector<8x32xf32>
    %107 = arith.mulf %106, %63 : vector<8x32xf32>
    %108 = vector.extract_strided_slice %98 {offsets = [0, 0], sizes = [8, 32], strides = [1, 1]} : vector<8x128xf32> to vector<8x32xf32>
    %109 = vector.extract_strided_slice %88 {offsets = [0, 64], sizes = [8, 32], strides = [1, 1]} : vector<8x128xf32> to vector<8x32xf32>
    %110 = math.tanh %109 : vector<8x32xf32>
    %111 = arith.mulf %108, %110 : vector<8x32xf32>
    %112 = arith.addf %107, %111 : vector<8x32xf32>
    %113 = vector.extract_strided_slice %93 {offsets = [0, 96], sizes = [8, 32], strides = [1, 1]} : vector<8x128xf32> to vector<8x32xf32>
    %114 = math.tanh %105 : vector<8x32xf32>
    %115 = arith.mulf %113, %114 : vector<8x32xf32>
    %116 = vector.extract_strided_slice %98 {offsets = [0, 96], sizes = [8, 32], strides = [1, 1]} : vector<8x128xf32> to vector<8x32xf32>
    %117 = math.tanh %112 : vector<8x32xf32>
    %118 = arith.mulf %116, %117 : vector<8x32xf32>
    %119 = arith.index_cast %c1_i32 : i32 to index
    %c0_54 = arith.constant 0 : index
    %c0_55 = arith.constant 0 : index
    %120 = vector.load %arg13[%119, %c0_54, %c0_55] : memref<8x8x32xf32, #tpu.memory_space<vmem>>, vector<1x8x32xf32>
    %121 = vector.shape_cast %120 : vector<1x8x32xf32> to vector<8x32xf32>
    %122 = vector.shape_cast %115 : vector<8x32xf32> to vector<1x8x32xf32>
    tpu.vector_store %arg13[%119, %c0_54, %c0_55], %122 {strides = array<i32>} : memref<8x8x32xf32, #tpu.memory_space<vmem>>, vector<1x8x32xf32>,
    %123 = arith.index_cast %78 : i32 to index
    %c0_56 = arith.constant 0 : index
    %c0_57 = arith.constant 0 : index
    %124 = vector.load %arg14[%123, %c0_56, %c0_57] : memref<8x8x32xf32, #tpu.memory_space<vmem>>, vector<1x8x32xf32>
    %125 = vector.shape_cast %124 : vector<1x8x32xf32> to vector<8x32xf32>
    %126 = vector.shape_cast %118 : vector<8x32xf32> to vector<1x8x32xf32>
    tpu.vector_store %arg14[%123, %c0_56, %c0_57], %126 {strides = array<i32>} : memref<8x8x32xf32, #tpu.memory_space<vmem>>, vector<1x8x32xf32>,
    %c2_i32 = arith.constant 2 : i32
    %c7_i32_58 = arith.constant 7 : i32
    %127 = arith.subi %c7_i32_58, %c2_i32 : i32
    %c0_59 = arith.constant 0 : index
    %128 = arith.index_cast %c2_i32 : i32 to index
    %c0_60 = arith.constant 0 : index
    %c0_61 = arith.constant 0 : index
    %129 = vector.load %arg12[%c0_59, %128, %c0_60, %c0_61] : memref<2x8x8x128xf32, #tpu.memory_space<vmem>>, vector<1x1x8x128xf32>
    %130 = vector.shape_cast %129 : vector<1x1x8x128xf32> to vector<8x128xf32>
    %cst_62 = arith.constant dense<0.000000e+00> : vector<8x128xf32>
    %131 = tpu.matmul %115, %25, %cst_62 {dimension_numbers = #tpu.dot_dimension_numbers<[1], [0], [0], [1], [0, 0, 1, 1], [], []>} : vector<8x32xf32>, vector<32x128xf32>, vector<8x128xf32> -> vector<8x128xf32>
    %132 = arith.addf %130, %131 : vector<8x128xf32>
    %c1_63 = arith.constant 1 : index
    %133 = arith.index_cast %127 : i32 to index
    %c0_64 = arith.constant 0 : index
    %c0_65 = arith.constant 0 : index
    %134 = vector.load %arg12[%c1_63, %133, %c0_64, %c0_65] : memref<2x8x8x128xf32, #tpu.memory_space<vmem>>, vector<1x1x8x128xf32>
    %135 = vector.shape_cast %134 : vector<1x1x8x128xf32> to vector<8x128xf32>
    %cst_66 = arith.constant dense<0.000000e+00> : vector<8x128xf32>
    %136 = tpu.matmul %118, %27, %cst_66 {dimension_numbers = #tpu.dot_dimension_numbers<[1], [0], [0], [1], [0, 0, 1, 1], [], []>} : vector<8x32xf32>, vector<32x128xf32>, vector<8x128xf32> -> vector<8x128xf32>
    %137 = arith.addf %135, %136 : vector<8x128xf32>
    %138 = arith.negf %132 : vector<8x128xf32>
    %139 = math.exp %138 : vector<8x128xf32>
    %cst_67 = arith.constant 1.000000e+00 : f32
    %140 = vector.broadcast %cst_67 : f32 to vector<8x128xf32>
    %141 = arith.addf %140, %139 : vector<8x128xf32>
    %142 = arith.divf %140, %141 : vector<8x128xf32>
    %143 = arith.negf %137 : vector<8x128xf32>
    %144 = math.exp %143 : vector<8x128xf32>
    %cst_68 = arith.constant 1.000000e+00 : f32
    %145 = vector.broadcast %cst_68 : f32 to vector<8x128xf32>
    %146 = arith.addf %145, %144 : vector<8x128xf32>
    %147 = arith.divf %145, %146 : vector<8x128xf32>
    %148 = vector.extract_strided_slice %142 {offsets = [0, 32], sizes = [8, 32], strides = [1, 1]} : vector<8x128xf32> to vector<8x32xf32>
    %149 = arith.mulf %148, %105 : vector<8x32xf32>
    %150 = vector.extract_strided_slice %142 {offsets = [0, 0], sizes = [8, 32], strides = [1, 1]} : vector<8x128xf32> to vector<8x32xf32>
    %151 = vector.extract_strided_slice %132 {offsets = [0, 64], sizes = [8, 32], strides = [1, 1]} : vector<8x128xf32> to vector<8x32xf32>
    %152 = math.tanh %151 : vector<8x32xf32>
    %153 = arith.mulf %150, %152 : vector<8x32xf32>
    %154 = arith.addf %149, %153 : vector<8x32xf32>
    %155 = vector.extract_strided_slice %147 {offsets = [0, 32], sizes = [8, 32], strides = [1, 1]} : vector<8x128xf32> to vector<8x32xf32>
    %156 = arith.mulf %155, %112 : vector<8x32xf32>
    %157 = vector.extract_strided_slice %147 {offsets = [0, 0], sizes = [8, 32], strides = [1, 1]} : vector<8x128xf32> to vector<8x32xf32>
    %158 = vector.extract_strided_slice %137 {offsets = [0, 64], sizes = [8, 32], strides = [1, 1]} : vector<8x128xf32> to vector<8x32xf32>
    %159 = math.tanh %158 : vector<8x32xf32>
    %160 = arith.mulf %157, %159 : vector<8x32xf32>
    %161 = arith.addf %156, %160 : vector<8x32xf32>
    %162 = vector.extract_strided_slice %142 {offsets = [0, 96], sizes = [8, 32], strides = [1, 1]} : vector<8x128xf32> to vector<8x32xf32>
    %163 = math.tanh %154 : vector<8x32xf32>
    %164 = arith.mulf %162, %163 : vector<8x32xf32>
    %165 = vector.extract_strided_slice %147 {offsets = [0, 96], sizes = [8, 32], strides = [1, 1]} : vector<8x128xf32> to vector<8x32xf32>
    %166 = math.tanh %161 : vector<8x32xf32>
    %167 = arith.mulf %165, %166 : vector<8x32xf32>
    %168 = arith.index_cast %c2_i32 : i32 to index
    %c0_69 = arith.constant 0 : index
    %c0_70 = arith.constant 0 : index
    %169 = vector.load %arg13[%168, %c0_69, %c0_70] : memref<8x8x32xf32, #tpu.memory_space<vmem>>, vector<1x8x32xf32>
    %170 = vector.shape_cast %169 : vector<1x8x32xf32> to vector<8x32xf32>
    %171 = vector.shape_cast %164 : vector<8x32xf32> to vector<1x8x32xf32>
    tpu.vector_store %arg13[%168, %c0_69, %c0_70], %171 {strides = array<i32>} : memref<8x8x32xf32, #tpu.memory_space<vmem>>, vector<1x8x32xf32>,
    %172 = arith.index_cast %127 : i32 to index
    %c0_71 = arith.constant 0 : index
    %c0_72 = arith.constant 0 : index
    %173 = vector.load %arg14[%172, %c0_71, %c0_72] : memref<8x8x32xf32, #tpu.memory_space<vmem>>, vector<1x8x32xf32>
    %174 = vector.shape_cast %173 : vector<1x8x32xf32> to vector<8x32xf32>
    %175 = vector.shape_cast %167 : vector<8x32xf32> to vector<1x8x32xf32>
    tpu.vector_store %arg14[%172, %c0_71, %c0_72], %175 {strides = array<i32>} : memref<8x8x32xf32, #tpu.memory_space<vmem>>, vector<1x8x32xf32>,
    %c3_i32 = arith.constant 3 : i32
    %c7_i32_73 = arith.constant 7 : i32
    %176 = arith.subi %c7_i32_73, %c3_i32 : i32
    %c0_74 = arith.constant 0 : index
    %177 = arith.index_cast %c3_i32 : i32 to index
    %c0_75 = arith.constant 0 : index
    %c0_76 = arith.constant 0 : index
    %178 = vector.load %arg12[%c0_74, %177, %c0_75, %c0_76] : memref<2x8x8x128xf32, #tpu.memory_space<vmem>>, vector<1x1x8x128xf32>
    %179 = vector.shape_cast %178 : vector<1x1x8x128xf32> to vector<8x128xf32>
    %cst_77 = arith.constant dense<0.000000e+00> : vector<8x128xf32>
    %180 = tpu.matmul %164, %25, %cst_77 {dimension_numbers = #tpu.dot_dimension_numbers<[1], [0], [0], [1], [0, 0, 1, 1], [], []>} : vector<8x32xf32>, vector<32x128xf32>, vector<8x128xf32> -> vector<8x128xf32>
    %181 = arith.addf %179, %180 : vector<8x128xf32>
    %c1_78 = arith.constant 1 : index
    %182 = arith.index_cast %176 : i32 to index
    %c0_79 = arith.constant 0 : index
    %c0_80 = arith.constant 0 : index
    %183 = vector.load %arg12[%c1_78, %182, %c0_79, %c0_80] : memref<2x8x8x128xf32, #tpu.memory_space<vmem>>, vector<1x1x8x128xf32>
    %184 = vector.shape_cast %183 : vector<1x1x8x128xf32> to vector<8x128xf32>
    %cst_81 = arith.constant dense<0.000000e+00> : vector<8x128xf32>
    %185 = tpu.matmul %167, %27, %cst_81 {dimension_numbers = #tpu.dot_dimension_numbers<[1], [0], [0], [1], [0, 0, 1, 1], [], []>} : vector<8x32xf32>, vector<32x128xf32>, vector<8x128xf32> -> vector<8x128xf32>
    %186 = arith.addf %184, %185 : vector<8x128xf32>
    %187 = arith.negf %181 : vector<8x128xf32>
    %188 = math.exp %187 : vector<8x128xf32>
    %cst_82 = arith.constant 1.000000e+00 : f32
    %189 = vector.broadcast %cst_82 : f32 to vector<8x128xf32>
    %190 = arith.addf %189, %188 : vector<8x128xf32>
    %191 = arith.divf %189, %190 : vector<8x128xf32>
    %192 = arith.negf %186 : vector<8x128xf32>
    %193 = math.exp %192 : vector<8x128xf32>
    %cst_83 = arith.constant 1.000000e+00 : f32
    %194 = vector.broadcast %cst_83 : f32 to vector<8x128xf32>
    %195 = arith.addf %194, %193 : vector<8x128xf32>
    %196 = arith.divf %194, %195 : vector<8x128xf32>
    %197 = vector.extract_strided_slice %191 {offsets = [0, 32], sizes = [8, 32], strides = [1, 1]} : vector<8x128xf32> to vector<8x32xf32>
    %198 = arith.mulf %197, %154 : vector<8x32xf32>
    %199 = vector.extract_strided_slice %191 {offsets = [0, 0], sizes = [8, 32], strides = [1, 1]} : vector<8x128xf32> to vector<8x32xf32>
    %200 = vector.extract_strided_slice %181 {offsets = [0, 64], sizes = [8, 32], strides = [1, 1]} : vector<8x128xf32> to vector<8x32xf32>
    %201 = math.tanh %200 : vector<8x32xf32>
    %202 = arith.mulf %199, %201 : vector<8x32xf32>
    %203 = arith.addf %198, %202 : vector<8x32xf32>
    %204 = vector.extract_strided_slice %196 {offsets = [0, 32], sizes = [8, 32], strides = [1, 1]} : vector<8x128xf32> to vector<8x32xf32>
    %205 = arith.mulf %204, %161 : vector<8x32xf32>
    %206 = vector.extract_strided_slice %196 {offsets = [0, 0], sizes = [8, 32], strides = [1, 1]} : vector<8x128xf32> to vector<8x32xf32>
    %207 = vector.extract_strided_slice %186 {offsets = [0, 64], sizes = [8, 32], strides = [1, 1]} : vector<8x128xf32> to vector<8x32xf32>
    %208 = math.tanh %207 : vector<8x32xf32>
    %209 = arith.mulf %206, %208 : vector<8x32xf32>
    %210 = arith.addf %205, %209 : vector<8x32xf32>
    %211 = vector.extract_strided_slice %191 {offsets = [0, 96], sizes = [8, 32], strides = [1, 1]} : vector<8x128xf32> to vector<8x32xf32>
    %212 = math.tanh %203 : vector<8x32xf32>
    %213 = arith.mulf %211, %212 : vector<8x32xf32>
    %214 = vector.extract_strided_slice %196 {offsets = [0, 96], sizes = [8, 32], strides = [1, 1]} : vector<8x128xf32> to vector<8x32xf32>
    %215 = math.tanh %210 : vector<8x32xf32>
    %216 = arith.mulf %214, %215 : vector<8x32xf32>
    %217 = arith.index_cast %c3_i32 : i32 to index
    %c0_84 = arith.constant 0 : index
    %c0_85 = arith.constant 0 : index
    %218 = vector.load %arg13[%217, %c0_84, %c0_85] : memref<8x8x32xf32, #tpu.memory_space<vmem>>, vector<1x8x32xf32>
    %219 = vector.shape_cast %218 : vector<1x8x32xf32> to vector<8x32xf32>
    %220 = vector.shape_cast %213 : vector<8x32xf32> to vector<1x8x32xf32>
    tpu.vector_store %arg13[%217, %c0_84, %c0_85], %220 {strides = array<i32>} : memref<8x8x32xf32, #tpu.memory_space<vmem>>, vector<1x8x32xf32>,
    %221 = arith.index_cast %176 : i32 to index
    %c0_86 = arith.constant 0 : index
    %c0_87 = arith.constant 0 : index
    %222 = vector.load %arg14[%221, %c0_86, %c0_87] : memref<8x8x32xf32, #tpu.memory_space<vmem>>, vector<1x8x32xf32>
    %223 = vector.shape_cast %222 : vector<1x8x32xf32> to vector<8x32xf32>
    %224 = vector.shape_cast %216 : vector<8x32xf32> to vector<1x8x32xf32>
    tpu.vector_store %arg14[%221, %c0_86, %c0_87], %224 {strides = array<i32>} : memref<8x8x32xf32, #tpu.memory_space<vmem>>, vector<1x8x32xf32>,
    %c4_i32 = arith.constant 4 : i32
    %c7_i32_88 = arith.constant 7 : i32
    %225 = arith.subi %c7_i32_88, %c4_i32 : i32
    %c0_89 = arith.constant 0 : index
    %226 = arith.index_cast %c4_i32 : i32 to index
    %c0_90 = arith.constant 0 : index
    %c0_91 = arith.constant 0 : index
    %227 = vector.load %arg12[%c0_89, %226, %c0_90, %c0_91] : memref<2x8x8x128xf32, #tpu.memory_space<vmem>>, vector<1x1x8x128xf32>
    %228 = vector.shape_cast %227 : vector<1x1x8x128xf32> to vector<8x128xf32>
    %cst_92 = arith.constant dense<0.000000e+00> : vector<8x128xf32>
    %229 = tpu.matmul %213, %25, %cst_92 {dimension_numbers = #tpu.dot_dimension_numbers<[1], [0], [0], [1], [0, 0, 1, 1], [], []>} : vector<8x32xf32>, vector<32x128xf32>, vector<8x128xf32> -> vector<8x128xf32>
    %230 = arith.addf %228, %229 : vector<8x128xf32>
    %c1_93 = arith.constant 1 : index
    %231 = arith.index_cast %225 : i32 to index
    %c0_94 = arith.constant 0 : index
    %c0_95 = arith.constant 0 : index
    %232 = vector.load %arg12[%c1_93, %231, %c0_94, %c0_95] : memref<2x8x8x128xf32, #tpu.memory_space<vmem>>, vector<1x1x8x128xf32>
    %233 = vector.shape_cast %232 : vector<1x1x8x128xf32> to vector<8x128xf32>
    %cst_96 = arith.constant dense<0.000000e+00> : vector<8x128xf32>
    %234 = tpu.matmul %216, %27, %cst_96 {dimension_numbers = #tpu.dot_dimension_numbers<[1], [0], [0], [1], [0, 0, 1, 1], [], []>} : vector<8x32xf32>, vector<32x128xf32>, vector<8x128xf32> -> vector<8x128xf32>
    %235 = arith.addf %233, %234 : vector<8x128xf32>
    %236 = arith.negf %230 : vector<8x128xf32>
    %237 = math.exp %236 : vector<8x128xf32>
    %cst_97 = arith.constant 1.000000e+00 : f32
    %238 = vector.broadcast %cst_97 : f32 to vector<8x128xf32>
    %239 = arith.addf %238, %237 : vector<8x128xf32>
    %240 = arith.divf %238, %239 : vector<8x128xf32>
    %241 = arith.negf %235 : vector<8x128xf32>
    %242 = math.exp %241 : vector<8x128xf32>
    %cst_98 = arith.constant 1.000000e+00 : f32
    %243 = vector.broadcast %cst_98 : f32 to vector<8x128xf32>
    %244 = arith.addf %243, %242 : vector<8x128xf32>
    %245 = arith.divf %243, %244 : vector<8x128xf32>
    %246 = vector.extract_strided_slice %240 {offsets = [0, 32], sizes = [8, 32], strides = [1, 1]} : vector<8x128xf32> to vector<8x32xf32>
    %247 = arith.mulf %246, %203 : vector<8x32xf32>
    %248 = vector.extract_strided_slice %240 {offsets = [0, 0], sizes = [8, 32], strides = [1, 1]} : vector<8x128xf32> to vector<8x32xf32>
    %249 = vector.extract_strided_slice %230 {offsets = [0, 64], sizes = [8, 32], strides = [1, 1]} : vector<8x128xf32> to vector<8x32xf32>
    %250 = math.tanh %249 : vector<8x32xf32>
    %251 = arith.mulf %248, %250 : vector<8x32xf32>
    %252 = arith.addf %247, %251 : vector<8x32xf32>
    %253 = vector.extract_strided_slice %245 {offsets = [0, 32], sizes = [8, 32], strides = [1, 1]} : vector<8x128xf32> to vector<8x32xf32>
    %254 = arith.mulf %253, %210 : vector<8x32xf32>
    %255 = vector.extract_strided_slice %245 {offsets = [0, 0], sizes = [8, 32], strides = [1, 1]} : vector<8x128xf32> to vector<8x32xf32>
    %256 = vector.extract_strided_slice %235 {offsets = [0, 64], sizes = [8, 32], strides = [1, 1]} : vector<8x128xf32> to vector<8x32xf32>
    %257 = math.tanh %256 : vector<8x32xf32>
    %258 = arith.mulf %255, %257 : vector<8x32xf32>
    %259 = arith.addf %254, %258 : vector<8x32xf32>
    %260 = vector.extract_strided_slice %240 {offsets = [0, 96], sizes = [8, 32], strides = [1, 1]} : vector<8x128xf32> to vector<8x32xf32>
    %261 = math.tanh %252 : vector<8x32xf32>
    %262 = arith.mulf %260, %261 : vector<8x32xf32>
    %263 = vector.extract_strided_slice %245 {offsets = [0, 96], sizes = [8, 32], strides = [1, 1]} : vector<8x128xf32> to vector<8x32xf32>
    %264 = math.tanh %259 : vector<8x32xf32>
    %265 = arith.mulf %263, %264 : vector<8x32xf32>
    %266 = arith.index_cast %c4_i32 : i32 to index
    %c0_99 = arith.constant 0 : index
    %c0_100 = arith.constant 0 : index
    %267 = vector.load %arg13[%266, %c0_99, %c0_100] : memref<8x8x32xf32, #tpu.memory_space<vmem>>, vector<1x8x32xf32>
    %268 = vector.shape_cast %267 : vector<1x8x32xf32> to vector<8x32xf32>
    %269 = vector.shape_cast %262 : vector<8x32xf32> to vector<1x8x32xf32>
    tpu.vector_store %arg13[%266, %c0_99, %c0_100], %269 {strides = array<i32>} : memref<8x8x32xf32, #tpu.memory_space<vmem>>, vector<1x8x32xf32>,
    %270 = arith.index_cast %225 : i32 to index
    %c0_101 = arith.constant 0 : index
    %c0_102 = arith.constant 0 : index
    %271 = vector.load %arg14[%270, %c0_101, %c0_102] : memref<8x8x32xf32, #tpu.memory_space<vmem>>, vector<1x8x32xf32>
    %272 = vector.shape_cast %271 : vector<1x8x32xf32> to vector<8x32xf32>
    %273 = vector.shape_cast %265 : vector<8x32xf32> to vector<1x8x32xf32>
    tpu.vector_store %arg14[%270, %c0_101, %c0_102], %273 {strides = array<i32>} : memref<8x8x32xf32, #tpu.memory_space<vmem>>, vector<1x8x32xf32>,
    %c5_i32 = arith.constant 5 : i32
    %c7_i32_103 = arith.constant 7 : i32
    %274 = arith.subi %c7_i32_103, %c5_i32 : i32
    %c0_104 = arith.constant 0 : index
    %275 = arith.index_cast %c5_i32 : i32 to index
    %c0_105 = arith.constant 0 : index
    %c0_106 = arith.constant 0 : index
    %276 = vector.load %arg12[%c0_104, %275, %c0_105, %c0_106] : memref<2x8x8x128xf32, #tpu.memory_space<vmem>>, vector<1x1x8x128xf32>
    %277 = vector.shape_cast %276 : vector<1x1x8x128xf32> to vector<8x128xf32>
    %cst_107 = arith.constant dense<0.000000e+00> : vector<8x128xf32>
    %278 = tpu.matmul %262, %25, %cst_107 {dimension_numbers = #tpu.dot_dimension_numbers<[1], [0], [0], [1], [0, 0, 1, 1], [], []>} : vector<8x32xf32>, vector<32x128xf32>, vector<8x128xf32> -> vector<8x128xf32>
    %279 = arith.addf %277, %278 : vector<8x128xf32>
    %c1_108 = arith.constant 1 : index
    %280 = arith.index_cast %274 : i32 to index
    %c0_109 = arith.constant 0 : index
    %c0_110 = arith.constant 0 : index
    %281 = vector.load %arg12[%c1_108, %280, %c0_109, %c0_110] : memref<2x8x8x128xf32, #tpu.memory_space<vmem>>, vector<1x1x8x128xf32>
    %282 = vector.shape_cast %281 : vector<1x1x8x128xf32> to vector<8x128xf32>
    %cst_111 = arith.constant dense<0.000000e+00> : vector<8x128xf32>
    %283 = tpu.matmul %265, %27, %cst_111 {dimension_numbers = #tpu.dot_dimension_numbers<[1], [0], [0], [1], [0, 0, 1, 1], [], []>} : vector<8x32xf32>, vector<32x128xf32>, vector<8x128xf32> -> vector<8x128xf32>
    %284 = arith.addf %282, %283 : vector<8x128xf32>
    %285 = arith.negf %279 : vector<8x128xf32>
    %286 = math.exp %285 : vector<8x128xf32>
    %cst_112 = arith.constant 1.000000e+00 : f32
    %287 = vector.broadcast %cst_112 : f32 to vector<8x128xf32>
    %288 = arith.addf %287, %286 : vector<8x128xf32>
    %289 = arith.divf %287, %288 : vector<8x128xf32>
    %290 = arith.negf %284 : vector<8x128xf32>
    %291 = math.exp %290 : vector<8x128xf32>
    %cst_113 = arith.constant 1.000000e+00 : f32
    %292 = vector.broadcast %cst_113 : f32 to vector<8x128xf32>
    %293 = arith.addf %292, %291 : vector<8x128xf32>
    %294 = arith.divf %292, %293 : vector<8x128xf32>
    %295 = vector.extract_strided_slice %289 {offsets = [0, 32], sizes = [8, 32], strides = [1, 1]} : vector<8x128xf32> to vector<8x32xf32>
    %296 = arith.mulf %295, %252 : vector<8x32xf32>
    %297 = vector.extract_strided_slice %289 {offsets = [0, 0], sizes = [8, 32], strides = [1, 1]} : vector<8x128xf32> to vector<8x32xf32>
    %298 = vector.extract_strided_slice %279 {offsets = [0, 64], sizes = [8, 32], strides = [1, 1]} : vector<8x128xf32> to vector<8x32xf32>
    %299 = math.tanh %298 : vector<8x32xf32>
    %300 = arith.mulf %297, %299 : vector<8x32xf32>
    %301 = arith.addf %296, %300 : vector<8x32xf32>
    %302 = vector.extract_strided_slice %294 {offsets = [0, 32], sizes = [8, 32], strides = [1, 1]} : vector<8x128xf32> to vector<8x32xf32>
    %303 = arith.mulf %302, %259 : vector<8x32xf32>
    %304 = vector.extract_strided_slice %294 {offsets = [0, 0], sizes = [8, 32], strides = [1, 1]} : vector<8x128xf32> to vector<8x32xf32>
    %305 = vector.extract_strided_slice %284 {offsets = [0, 64], sizes = [8, 32], strides = [1, 1]} : vector<8x128xf32> to vector<8x32xf32>
    %306 = math.tanh %305 : vector<8x32xf32>
    %307 = arith.mulf %304, %306 : vector<8x32xf32>
    %308 = arith.addf %303, %307 : vector<8x32xf32>
    %309 = vector.extract_strided_slice %289 {offsets = [0, 96], sizes = [8, 32], strides = [1, 1]} : vector<8x128xf32> to vector<8x32xf32>
    %310 = math.tanh %301 : vector<8x32xf32>
    %311 = arith.mulf %309, %310 : vector<8x32xf32>
    %312 = vector.extract_strided_slice %294 {offsets = [0, 96], sizes = [8, 32], strides = [1, 1]} : vector<8x128xf32> to vector<8x32xf32>
    %313 = math.tanh %308 : vector<8x32xf32>
    %314 = arith.mulf %312, %313 : vector<8x32xf32>
    %315 = arith.index_cast %c5_i32 : i32 to index
    %c0_114 = arith.constant 0 : index
    %c0_115 = arith.constant 0 : index
    %316 = vector.load %arg13[%315, %c0_114, %c0_115] : memref<8x8x32xf32, #tpu.memory_space<vmem>>, vector<1x8x32xf32>
    %317 = vector.shape_cast %316 : vector<1x8x32xf32> to vector<8x32xf32>
    %318 = vector.shape_cast %311 : vector<8x32xf32> to vector<1x8x32xf32>
    tpu.vector_store %arg13[%315, %c0_114, %c0_115], %318 {strides = array<i32>} : memref<8x8x32xf32, #tpu.memory_space<vmem>>, vector<1x8x32xf32>,
    %319 = arith.index_cast %274 : i32 to index
    %c0_116 = arith.constant 0 : index
    %c0_117 = arith.constant 0 : index
    %320 = vector.load %arg14[%319, %c0_116, %c0_117] : memref<8x8x32xf32, #tpu.memory_space<vmem>>, vector<1x8x32xf32>
    %321 = vector.shape_cast %320 : vector<1x8x32xf32> to vector<8x32xf32>
    %322 = vector.shape_cast %314 : vector<8x32xf32> to vector<1x8x32xf32>
    tpu.vector_store %arg14[%319, %c0_116, %c0_117], %322 {strides = array<i32>} : memref<8x8x32xf32, #tpu.memory_space<vmem>>, vector<1x8x32xf32>,
    %c6_i32 = arith.constant 6 : i32
    %c7_i32_118 = arith.constant 7 : i32
    %323 = arith.subi %c7_i32_118, %c6_i32 : i32
    %c0_119 = arith.constant 0 : index
    %324 = arith.index_cast %c6_i32 : i32 to index
    %c0_120 = arith.constant 0 : index
    %c0_121 = arith.constant 0 : index
    %325 = vector.load %arg12[%c0_119, %324, %c0_120, %c0_121] : memref<2x8x8x128xf32, #tpu.memory_space<vmem>>, vector<1x1x8x128xf32>
    %326 = vector.shape_cast %325 : vector<1x1x8x128xf32> to vector<8x128xf32>
    %cst_122 = arith.constant dense<0.000000e+00> : vector<8x128xf32>
    %327 = tpu.matmul %311, %25, %cst_122 {dimension_numbers = #tpu.dot_dimension_numbers<[1], [0], [0], [1], [0, 0, 1, 1], [], []>} : vector<8x32xf32>, vector<32x128xf32>, vector<8x128xf32> -> vector<8x128xf32>
    %328 = arith.addf %326, %327 : vector<8x128xf32>
    %c1_123 = arith.constant 1 : index
    %329 = arith.index_cast %323 : i32 to index
    %c0_124 = arith.constant 0 : index
    %c0_125 = arith.constant 0 : index
    %330 = vector.load %arg12[%c1_123, %329, %c0_124, %c0_125] : memref<2x8x8x128xf32, #tpu.memory_space<vmem>>, vector<1x1x8x128xf32>
    %331 = vector.shape_cast %330 : vector<1x1x8x128xf32> to vector<8x128xf32>
    %cst_126 = arith.constant dense<0.000000e+00> : vector<8x128xf32>
    %332 = tpu.matmul %314, %27, %cst_126 {dimension_numbers = #tpu.dot_dimension_numbers<[1], [0], [0], [1], [0, 0, 1, 1], [], []>} : vector<8x32xf32>, vector<32x128xf32>, vector<8x128xf32> -> vector<8x128xf32>
    %333 = arith.addf %331, %332 : vector<8x128xf32>
    %334 = arith.negf %328 : vector<8x128xf32>
    %335 = math.exp %334 : vector<8x128xf32>
    %cst_127 = arith.constant 1.000000e+00 : f32
    %336 = vector.broadcast %cst_127 : f32 to vector<8x128xf32>
    %337 = arith.addf %336, %335 : vector<8x128xf32>
    %338 = arith.divf %336, %337 : vector<8x128xf32>
    %339 = arith.negf %333 : vector<8x128xf32>
    %340 = math.exp %339 : vector<8x128xf32>
    %cst_128 = arith.constant 1.000000e+00 : f32
    %341 = vector.broadcast %cst_128 : f32 to vector<8x128xf32>
    %342 = arith.addf %341, %340 : vector<8x128xf32>
    %343 = arith.divf %341, %342 : vector<8x128xf32>
    %344 = vector.extract_strided_slice %338 {offsets = [0, 32], sizes = [8, 32], strides = [1, 1]} : vector<8x128xf32> to vector<8x32xf32>
    %345 = arith.mulf %344, %301 : vector<8x32xf32>
    %346 = vector.extract_strided_slice %338 {offsets = [0, 0], sizes = [8, 32], strides = [1, 1]} : vector<8x128xf32> to vector<8x32xf32>
    %347 = vector.extract_strided_slice %328 {offsets = [0, 64], sizes = [8, 32], strides = [1, 1]} : vector<8x128xf32> to vector<8x32xf32>
    %348 = math.tanh %347 : vector<8x32xf32>
    %349 = arith.mulf %346, %348 : vector<8x32xf32>
    %350 = arith.addf %345, %349 : vector<8x32xf32>
    %351 = vector.extract_strided_slice %343 {offsets = [0, 32], sizes = [8, 32], strides = [1, 1]} : vector<8x128xf32> to vector<8x32xf32>
    %352 = arith.mulf %351, %308 : vector<8x32xf32>
    %353 = vector.extract_strided_slice %343 {offsets = [0, 0], sizes = [8, 32], strides = [1, 1]} : vector<8x128xf32> to vector<8x32xf32>
    %354 = vector.extract_strided_slice %333 {offsets = [0, 64], sizes = [8, 32], strides = [1, 1]} : vector<8x128xf32> to vector<8x32xf32>
    %355 = math.tanh %354 : vector<8x32xf32>
    %356 = arith.mulf %353, %355 : vector<8x32xf32>
    %357 = arith.addf %352, %356 : vector<8x32xf32>
    %358 = vector.extract_strided_slice %338 {offsets = [0, 96], sizes = [8, 32], strides = [1, 1]} : vector<8x128xf32> to vector<8x32xf32>
    %359 = math.tanh %350 : vector<8x32xf32>
    %360 = arith.mulf %358, %359 : vector<8x32xf32>
    %361 = vector.extract_strided_slice %343 {offsets = [0, 96], sizes = [8, 32], strides = [1, 1]} : vector<8x128xf32> to vector<8x32xf32>
    %362 = math.tanh %357 : vector<8x32xf32>
    %363 = arith.mulf %361, %362 : vector<8x32xf32>
    %364 = arith.index_cast %c6_i32 : i32 to index
    %c0_129 = arith.constant 0 : index
    %c0_130 = arith.constant 0 : index
    %365 = vector.load %arg13[%364, %c0_129, %c0_130] : memref<8x8x32xf32, #tpu.memory_space<vmem>>, vector<1x8x32xf32>
    %366 = vector.shape_cast %365 : vector<1x8x32xf32> to vector<8x32xf32>
    %367 = vector.shape_cast %360 : vector<8x32xf32> to vector<1x8x32xf32>
    tpu.vector_store %arg13[%364, %c0_129, %c0_130], %367 {strides = array<i32>} : memref<8x8x32xf32, #tpu.memory_space<vmem>>, vector<1x8x32xf32>,
    %368 = arith.index_cast %323 : i32 to index
    %c0_131 = arith.constant 0 : index
    %c0_132 = arith.constant 0 : index
    %369 = vector.load %arg14[%368, %c0_131, %c0_132] : memref<8x8x32xf32, #tpu.memory_space<vmem>>, vector<1x8x32xf32>
    %370 = vector.shape_cast %369 : vector<1x8x32xf32> to vector<8x32xf32>
    %371 = vector.shape_cast %363 : vector<8x32xf32> to vector<1x8x32xf32>
    tpu.vector_store %arg14[%368, %c0_131, %c0_132], %371 {strides = array<i32>} : memref<8x8x32xf32, #tpu.memory_space<vmem>>, vector<1x8x32xf32>,
    %c7_i32_133 = arith.constant 7 : i32
    %c7_i32_134 = arith.constant 7 : i32
    %372 = arith.subi %c7_i32_134, %c7_i32_133 : i32
    %c0_135 = arith.constant 0 : index
    %373 = arith.index_cast %c7_i32_133 : i32 to index
    %c0_136 = arith.constant 0 : index
    %c0_137 = arith.constant 0 : index
    %374 = vector.load %arg12[%c0_135, %373, %c0_136, %c0_137] : memref<2x8x8x128xf32, #tpu.memory_space<vmem>>, vector<1x1x8x128xf32>
    %375 = vector.shape_cast %374 : vector<1x1x8x128xf32> to vector<8x128xf32>
    %cst_138 = arith.constant dense<0.000000e+00> : vector<8x128xf32>
    %376 = tpu.matmul %360, %25, %cst_138 {dimension_numbers = #tpu.dot_dimension_numbers<[1], [0], [0], [1], [0, 0, 1, 1], [], []>} : vector<8x32xf32>, vector<32x128xf32>, vector<8x128xf32> -> vector<8x128xf32>
    %377 = arith.addf %375, %376 : vector<8x128xf32>
    %c1_139 = arith.constant 1 : index
    %378 = arith.index_cast %372 : i32 to index
    %c0_140 = arith.constant 0 : index
    %c0_141 = arith.constant 0 : index
    %379 = vector.load %arg12[%c1_139, %378, %c0_140, %c0_141] : memref<2x8x8x128xf32, #tpu.memory_space<vmem>>, vector<1x1x8x128xf32>
    %380 = vector.shape_cast %379 : vector<1x1x8x128xf32> to vector<8x128xf32>
    %cst_142 = arith.constant dense<0.000000e+00> : vector<8x128xf32>
    %381 = tpu.matmul %363, %27, %cst_142 {dimension_numbers = #tpu.dot_dimension_numbers<[1], [0], [0], [1], [0, 0, 1, 1], [], []>} : vector<8x32xf32>, vector<32x128xf32>, vector<8x128xf32> -> vector<8x128xf32>
    %382 = arith.addf %380, %381 : vector<8x128xf32>
    %383 = arith.negf %377 : vector<8x128xf32>
    %384 = math.exp %383 : vector<8x128xf32>
    %cst_143 = arith.constant 1.000000e+00 : f32
    %385 = vector.broadcast %cst_143 : f32 to vector<8x128xf32>
    %386 = arith.addf %385, %384 : vector<8x128xf32>
    %387 = arith.divf %385, %386 : vector<8x128xf32>
    %388 = arith.negf %382 : vector<8x128xf32>
    %389 = math.exp %388 : vector<8x128xf32>
    %cst_144 = arith.constant 1.000000e+00 : f32
    %390 = vector.broadcast %cst_144 : f32 to vector<8x128xf32>
    %391 = arith.addf %390, %389 : vector<8x128xf32>
    %392 = arith.divf %390, %391 : vector<8x128xf32>
    %393 = vector.extract_strided_slice %387 {offsets = [0, 32], sizes = [8, 32], strides = [1, 1]} : vector<8x128xf32> to vector<8x32xf32>
    %394 = arith.mulf %393, %350 : vector<8x32xf32>
    %395 = vector.extract_strided_slice %387 {offsets = [0, 0], sizes = [8, 32], strides = [1, 1]} : vector<8x128xf32> to vector<8x32xf32>
    %396 = vector.extract_strided_slice %377 {offsets = [0, 64], sizes = [8, 32], strides = [1, 1]} : vector<8x128xf32> to vector<8x32xf32>
    %397 = math.tanh %396 : vector<8x32xf32>
    %398 = arith.mulf %395, %397 : vector<8x32xf32>
    %399 = arith.addf %394, %398 : vector<8x32xf32>
    %400 = vector.extract_strided_slice %392 {offsets = [0, 32], sizes = [8, 32], strides = [1, 1]} : vector<8x128xf32> to vector<8x32xf32>
    %401 = arith.mulf %400, %357 : vector<8x32xf32>
    %402 = vector.extract_strided_slice %392 {offsets = [0, 0], sizes = [8, 32], strides = [1, 1]} : vector<8x128xf32> to vector<8x32xf32>
    %403 = vector.extract_strided_slice %382 {offsets = [0, 64], sizes = [8, 32], strides = [1, 1]} : vector<8x128xf32> to vector<8x32xf32>
    %404 = math.tanh %403 : vector<8x32xf32>
    %405 = arith.mulf %402, %404 : vector<8x32xf32>
    %406 = arith.addf %401, %405 : vector<8x32xf32>
    %407 = vector.extract_strided_slice %387 {offsets = [0, 96], sizes = [8, 32], strides = [1, 1]} : vector<8x128xf32> to vector<8x32xf32>
    %408 = math.tanh %399 : vector<8x32xf32>
    %409 = arith.mulf %407, %408 : vector<8x32xf32>
    %410 = vector.extract_strided_slice %392 {offsets = [0, 96], sizes = [8, 32], strides = [1, 1]} : vector<8x128xf32> to vector<8x32xf32>
    %411 = math.tanh %406 : vector<8x32xf32>
    %412 = arith.mulf %410, %411 : vector<8x32xf32>
    %413 = arith.index_cast %c7_i32_133 : i32 to index
    %c0_145 = arith.constant 0 : index
    %c0_146 = arith.constant 0 : index
    %414 = vector.load %arg13[%413, %c0_145, %c0_146] : memref<8x8x32xf32, #tpu.memory_space<vmem>>, vector<1x8x32xf32>
    %415 = vector.shape_cast %414 : vector<1x8x32xf32> to vector<8x32xf32>
    %416 = vector.shape_cast %409 : vector<8x32xf32> to vector<1x8x32xf32>
    tpu.vector_store %arg13[%413, %c0_145, %c0_146], %416 {strides = array<i32>} : memref<8x8x32xf32, #tpu.memory_space<vmem>>, vector<1x8x32xf32>,
    %417 = arith.index_cast %372 : i32 to index
    %c0_147 = arith.constant 0 : index
    %c0_148 = arith.constant 0 : index
    %418 = vector.load %arg14[%417, %c0_147, %c0_148] : memref<8x8x32xf32, #tpu.memory_space<vmem>>, vector<1x8x32xf32>
    %419 = vector.shape_cast %418 : vector<1x8x32xf32> to vector<8x32xf32>
    %420 = vector.shape_cast %412 : vector<8x32xf32> to vector<1x8x32xf32>
    tpu.vector_store %arg14[%417, %c0_147, %c0_148], %420 {strides = array<i32>} : memref<8x8x32xf32, #tpu.memory_space<vmem>>, vector<1x8x32xf32>,
    %c8_i32 = arith.constant 8 : i32
    %c0_149 = arith.constant 0 : index
    %c0_150 = arith.constant 0 : index
    %c0_151 = arith.constant 0 : index
    %421 = vector.load %arg13[%c0_149, %c0_150, %c0_151] : memref<8x8x32xf32, #tpu.memory_space<vmem>>, vector<8x8x32xf32>
    %422 = vector.shape_cast %421 : vector<8x8x32xf32> to vector<64x32xf32>
    %c0_152 = arith.constant 0 : index
    %c0_153 = arith.constant 0 : index
    %c0_154 = arith.constant 0 : index
    %423 = vector.load %arg14[%c0_152, %c0_153, %c0_154] : memref<8x8x32xf32, #tpu.memory_space<vmem>>, vector<8x8x32xf32>
    %424 = vector.shape_cast %423 : vector<8x8x32xf32> to vector<64x32xf32>
    %c0_155 = arith.constant 0 : index
    %c0_156 = arith.constant 0 : index
    %c0_157 = arith.constant 0 : index
    %c0_158 = arith.constant 0 : index
    %425 = vector.load %arg5[%c0_155, %c0_156, %c0_157, %c0_158] : memref<2x2x32x128xf32, #tpu.memory_space<vmem>>, vector<1x1x32x128xf32>
    %426 = vector.shape_cast %425 : vector<1x1x32x128xf32> to vector<32x128xf32>
    %cst_159 = arith.constant dense<0.000000e+00> : vector<64x128xf32>
    %427 = tpu.matmul %422, %426, %cst_159 {dimension_numbers = #tpu.dot_dimension_numbers<[1], [0], [0], [1], [0, 0, 1, 1], [], []>} : vector<64x32xf32>, vector<32x128xf32>, vector<64x128xf32> -> vector<64x128xf32>
    %c0_160 = arith.constant 0 : index
    %c1_161 = arith.constant 1 : index
    %c0_162 = arith.constant 0 : index
    %c0_163 = arith.constant 0 : index
    %428 = vector.load %arg5[%c0_160, %c1_161, %c0_162, %c0_163] : memref<2x2x32x128xf32, #tpu.memory_space<vmem>>, vector<1x1x32x128xf32>
    %429 = vector.shape_cast %428 : vector<1x1x32x128xf32> to vector<32x128xf32>
    %cst_164 = arith.constant dense<0.000000e+00> : vector<64x128xf32>
    %430 = tpu.matmul %424, %429, %cst_164 {dimension_numbers = #tpu.dot_dimension_numbers<[1], [0], [0], [1], [0, 0, 1, 1], [], []>} : vector<64x32xf32>, vector<32x128xf32>, vector<64x128xf32> -> vector<64x128xf32>
    %431 = arith.addf %427, %430 : vector<64x128xf32>
    %c0_165 = arith.constant 0 : index
    %c0_166 = arith.constant 0 : index
    %c0_167 = arith.constant 0 : index
    %432 = vector.load %arg7[%c0_165, %c0_166, %c0_167] : memref<2x1x128xf32, #tpu.memory_space<vmem>>, vector<1x1x128xf32>
    %433 = vector.shape_cast %432 : vector<1x1x128xf32> to vector<1x128xf32>
    %434 = vector.broadcast %433 : vector<1x128xf32> to vector<64x128xf32>
    %435 = arith.addf %431, %434 : vector<64x128xf32>
    %436 = vector.shape_cast %435 : vector<64x128xf32> to vector<8x8x128xf32>
    %c0_168 = arith.constant 0 : index
    %c0_169 = arith.constant 0 : index
    %c0_170 = arith.constant 0 : index
    %c0_171 = arith.constant 0 : index
    %437 = vector.load %arg12[%c0_168, %c0_169, %c0_170, %c0_171] : memref<2x8x8x128xf32, #tpu.memory_space<vmem>>, vector<1x8x8x128xf32>
    %438 = vector.shape_cast %437 : vector<1x8x8x128xf32> to vector<8x8x128xf32>
    %439 = vector.shape_cast %436 : vector<8x8x128xf32> to vector<1x8x8x128xf32>
    tpu.vector_store %arg12[%c0_168, %c0_169, %c0_170, %c0_171], %439 {strides = array<i32>} : memref<2x8x8x128xf32, #tpu.memory_space<vmem>>, vector<1x8x8x128xf32>,
    %c1_172 = arith.constant 1 : index
    %c0_173 = arith.constant 0 : index
    %c0_174 = arith.constant 0 : index
    %c0_175 = arith.constant 0 : index
    %440 = vector.load %arg5[%c1_172, %c0_173, %c0_174, %c0_175] : memref<2x2x32x128xf32, #tpu.memory_space<vmem>>, vector<1x1x32x128xf32>
    %441 = vector.shape_cast %440 : vector<1x1x32x128xf32> to vector<32x128xf32>
    %cst_176 = arith.constant dense<0.000000e+00> : vector<64x128xf32>
    %442 = tpu.matmul %422, %441, %cst_176 {dimension_numbers = #tpu.dot_dimension_numbers<[1], [0], [0], [1], [0, 0, 1, 1], [], []>} : vector<64x32xf32>, vector<32x128xf32>, vector<64x128xf32> -> vector<64x128xf32>
    %c1_177 = arith.constant 1 : index
    %c1_178 = arith.constant 1 : index
    %c0_179 = arith.constant 0 : index
    %c0_180 = arith.constant 0 : index
    %443 = vector.load %arg5[%c1_177, %c1_178, %c0_179, %c0_180] : memref<2x2x32x128xf32, #tpu.memory_space<vmem>>, vector<1x1x32x128xf32>
    %444 = vector.shape_cast %443 : vector<1x1x32x128xf32> to vector<32x128xf32>
    %cst_181 = arith.constant dense<0.000000e+00> : vector<64x128xf32>
    %445 = tpu.matmul %424, %444, %cst_181 {dimension_numbers = #tpu.dot_dimension_numbers<[1], [0], [0], [1], [0, 0, 1, 1], [], []>} : vector<64x32xf32>, vector<32x128xf32>, vector<64x128xf32> -> vector<64x128xf32>
    %446 = arith.addf %442, %445 : vector<64x128xf32>
    %c1_182 = arith.constant 1 : index
    %c0_183 = arith.constant 0 : index
    %c0_184 = arith.constant 0 : index
    %447 = vector.load %arg7[%c1_182, %c0_183, %c0_184] : memref<2x1x128xf32, #tpu.memory_space<vmem>>, vector<1x1x128xf32>
    %448 = vector.shape_cast %447 : vector<1x1x128xf32> to vector<1x128xf32>
    %449 = vector.broadcast %448 : vector<1x128xf32> to vector<64x128xf32>
    %450 = arith.addf %446, %449 : vector<64x128xf32>
    %451 = vector.shape_cast %450 : vector<64x128xf32> to vector<8x8x128xf32>
    %c1_185 = arith.constant 1 : index
    %c0_186 = arith.constant 0 : index
    %c0_187 = arith.constant 0 : index
    %c0_188 = arith.constant 0 : index
    %452 = vector.load %arg12[%c1_185, %c0_186, %c0_187, %c0_188] : memref<2x8x8x128xf32, #tpu.memory_space<vmem>>, vector<1x8x8x128xf32>
    %453 = vector.shape_cast %452 : vector<1x8x8x128xf32> to vector<8x8x128xf32>
    %454 = vector.shape_cast %451 : vector<8x8x128xf32> to vector<1x8x8x128xf32>
    tpu.vector_store %arg12[%c1_185, %c0_186, %c0_187, %c0_188], %454 {strides = array<i32>} : memref<2x8x8x128xf32, #tpu.memory_space<vmem>>, vector<1x8x8x128xf32>,
    %c0_189 = arith.constant 0 : index
    %c0_190 = arith.constant 0 : index
    %c0_191 = arith.constant 0 : index
    %455 = vector.load %arg6[%c0_189, %c0_190, %c0_191] : memref<2x32x96xf32, #tpu.memory_space<vmem>>, vector<1x32x96xf32>
    %456 = vector.shape_cast %455 : vector<1x32x96xf32> to vector<32x96xf32>
    %c1_192 = arith.constant 1 : index
    %c0_193 = arith.constant 0 : index
    %c0_194 = arith.constant 0 : index
    %457 = vector.load %arg6[%c1_192, %c0_193, %c0_194] : memref<2x32x96xf32, #tpu.memory_space<vmem>>, vector<1x32x96xf32>
    %458 = vector.shape_cast %457 : vector<1x32x96xf32> to vector<32x96xf32>
    %c0_195 = arith.constant 0 : index
    %c0_196 = arith.constant 0 : index
    %c0_197 = arith.constant 0 : index
    %459 = vector.load %arg8[%c0_195, %c0_196, %c0_197] : memref<2x1x32xf32, #tpu.memory_space<vmem>>, vector<1x1x32xf32>
    %460 = vector.shape_cast %459 : vector<1x1x32xf32> to vector<1x32xf32>
    %c1_198 = arith.constant 1 : index
    %c0_199 = arith.constant 0 : index
    %c0_200 = arith.constant 0 : index
    %461 = vector.load %arg8[%c1_198, %c0_199, %c0_200] : memref<2x1x32xf32, #tpu.memory_space<vmem>>, vector<1x1x32xf32>
    %462 = vector.shape_cast %461 : vector<1x1x32xf32> to vector<1x32xf32>
    %cst_201 = arith.constant 0xFF800000 : f32
    %463 = vector.broadcast %cst_201 : f32 to vector<8x32xf32>
    %c0_i32_202 = arith.constant 0 : i32
    %c7_i32_203 = arith.constant 7 : i32
    %464 = arith.subi %c7_i32_203, %c0_i32_202 : i32
    %cst_204 = arith.constant dense<0.000000e+00> : vector<8x96xf32>
    %465 = tpu.matmul %28, %456, %cst_204 {dimension_numbers = #tpu.dot_dimension_numbers<[1], [0], [0], [1], [0, 0, 1, 1], [], []>} : vector<8x32xf32>, vector<32x96xf32>, vector<8x96xf32> -> vector<8x96xf32>
    %cst_205 = arith.constant dense<0.000000e+00> : vector<8x96xf32>
    %466 = tpu.matmul %28, %458, %cst_205 {dimension_numbers = #tpu.dot_dimension_numbers<[1], [0], [0], [1], [0, 0, 1, 1], [], []>} : vector<8x32xf32>, vector<32x96xf32>, vector<8x96xf32> -> vector<8x96xf32>
    %c0_206 = arith.constant 0 : index
    %467 = arith.index_cast %c0_i32_202 : i32 to index
    %c0_207 = arith.constant 0 : index
    %c0_208 = arith.constant 0 : index
    %468 = vector.load %arg12[%c0_206, %467, %c0_207, %c0_208] : memref<2x8x8x128xf32, #tpu.memory_space<vmem>>, vector<1x1x8x128xf32>
    %469 = vector.shape_cast %468 : vector<1x1x8x128xf32> to vector<8x128xf32>
    %c1_209 = arith.constant 1 : index
    %470 = arith.index_cast %464 : i32 to index
    %c0_210 = arith.constant 0 : index
    %c0_211 = arith.constant 0 : index
    %471 = vector.load %arg12[%c1_209, %470, %c0_210, %c0_211] : memref<2x8x8x128xf32, #tpu.memory_space<vmem>>, vector<1x1x8x128xf32>
    %472 = vector.shape_cast %471 : vector<1x1x8x128xf32> to vector<8x128xf32>
    %473 = vector.extract_strided_slice %469 {offsets = [0, 0], sizes = [8, 64], strides = [1, 1]} : vector<8x128xf32> to vector<8x64xf32>
    %474 = vector.extract_strided_slice %465 {offsets = [0, 0], sizes = [8, 64], strides = [1, 1]} : vector<8x96xf32> to vector<8x64xf32>
    %475 = arith.addf %473, %474 : vector<8x64xf32>
    %476 = arith.negf %475 : vector<8x64xf32>
    %477 = math.exp %476 : vector<8x64xf32>
    %cst_212 = arith.constant 1.000000e+00 : f32
    %478 = vector.broadcast %cst_212 : f32 to vector<8x64xf32>
    %479 = arith.addf %478, %477 : vector<8x64xf32>
    %480 = arith.divf %478, %479 : vector<8x64xf32>
    %481 = vector.extract_strided_slice %472 {offsets = [0, 0], sizes = [8, 64], strides = [1, 1]} : vector<8x128xf32> to vector<8x64xf32>
    %482 = vector.extract_strided_slice %466 {offsets = [0, 0], sizes = [8, 64], strides = [1, 1]} : vector<8x96xf32> to vector<8x64xf32>
    %483 = arith.addf %481, %482 : vector<8x64xf32>
    %484 = arith.negf %483 : vector<8x64xf32>
    %485 = math.exp %484 : vector<8x64xf32>
    %cst_213 = arith.constant 1.000000e+00 : f32
    %486 = vector.broadcast %cst_213 : f32 to vector<8x64xf32>
    %487 = arith.addf %486, %485 : vector<8x64xf32>
    %488 = arith.divf %486, %487 : vector<8x64xf32>
    %489 = vector.extract_strided_slice %469 {offsets = [0, 64], sizes = [8, 32], strides = [1, 1]} : vector<8x128xf32> to vector<8x32xf32>
    %490 = vector.extract_strided_slice %480 {offsets = [0, 0], sizes = [8, 32], strides = [1, 1]} : vector<8x64xf32> to vector<8x32xf32>
    %491 = vector.extract_strided_slice %465 {offsets = [0, 64], sizes = [8, 32], strides = [1, 1]} : vector<8x96xf32> to vector<8x32xf32>
    %492 = vector.broadcast %460 : vector<1x32xf32> to vector<8x32xf32>
    %493 = arith.addf %491, %492 : vector<8x32xf32>
    %494 = arith.mulf %490, %493 : vector<8x32xf32>
    %495 = arith.addf %489, %494 : vector<8x32xf32>
    %496 = math.tanh %495 : vector<8x32xf32>
    %497 = vector.extract_strided_slice %472 {offsets = [0, 64], sizes = [8, 32], strides = [1, 1]} : vector<8x128xf32> to vector<8x32xf32>
    %498 = vector.extract_strided_slice %488 {offsets = [0, 0], sizes = [8, 32], strides = [1, 1]} : vector<8x64xf32> to vector<8x32xf32>
    %499 = vector.extract_strided_slice %466 {offsets = [0, 64], sizes = [8, 32], strides = [1, 1]} : vector<8x96xf32> to vector<8x32xf32>
    %500 = vector.broadcast %462 : vector<1x32xf32> to vector<8x32xf32>
    %501 = arith.addf %499, %500 : vector<8x32xf32>
    %502 = arith.mulf %498, %501 : vector<8x32xf32>
    %503 = arith.addf %497, %502 : vector<8x32xf32>
    %504 = math.tanh %503 : vector<8x32xf32>
    %505 = vector.extract_strided_slice %480 {offsets = [0, 32], sizes = [8, 32], strides = [1, 1]} : vector<8x64xf32> to vector<8x32xf32>
    %506 = vector.extract_strided_slice %488 {offsets = [0, 32], sizes = [8, 32], strides = [1, 1]} : vector<8x64xf32> to vector<8x32xf32>
    %cst_214 = arith.constant 1.000000e+00 : f32
    %507 = vector.broadcast %cst_214 : f32 to vector<8x32xf32>
    %508 = arith.subf %507, %505 : vector<8x32xf32>
    %509 = arith.mulf %508, %496 : vector<8x32xf32>
    %510 = arith.mulf %505, %28 : vector<8x32xf32>
    %511 = arith.addf %509, %510 : vector<8x32xf32>
    %cst_215 = arith.constant 1.000000e+00 : f32
    %512 = vector.broadcast %cst_215 : f32 to vector<8x32xf32>
    %513 = arith.subf %512, %506 : vector<8x32xf32>
    %514 = arith.mulf %513, %504 : vector<8x32xf32>
    %515 = arith.mulf %506, %28 : vector<8x32xf32>
    %516 = arith.addf %514, %515 : vector<8x32xf32>
    %517 = arith.addf %28, %511 : vector<8x32xf32>
    %518 = arith.addf %28, %516 : vector<8x32xf32>
    %519 = arith.maximumf %463, %511 : vector<8x32xf32>
    %520 = arith.maximumf %463, %516 : vector<8x32xf32>
    %c1_i32_216 = arith.constant 1 : i32
    %c7_i32_217 = arith.constant 7 : i32
    %521 = arith.subi %c7_i32_217, %c1_i32_216 : i32
    %cst_218 = arith.constant dense<0.000000e+00> : vector<8x96xf32>
    %522 = tpu.matmul %511, %456, %cst_218 {dimension_numbers = #tpu.dot_dimension_numbers<[1], [0], [0], [1], [0, 0, 1, 1], [], []>} : vector<8x32xf32>, vector<32x96xf32>, vector<8x96xf32> -> vector<8x96xf32>
    %cst_219 = arith.constant dense<0.000000e+00> : vector<8x96xf32>
    %523 = tpu.matmul %516, %458, %cst_219 {dimension_numbers = #tpu.dot_dimension_numbers<[1], [0], [0], [1], [0, 0, 1, 1], [], []>} : vector<8x32xf32>, vector<32x96xf32>, vector<8x96xf32> -> vector<8x96xf32>
    %c0_220 = arith.constant 0 : index
    %524 = arith.index_cast %c1_i32_216 : i32 to index
    %c0_221 = arith.constant 0 : index
    %c0_222 = arith.constant 0 : index
    %525 = vector.load %arg12[%c0_220, %524, %c0_221, %c0_222] : memref<2x8x8x128xf32, #tpu.memory_space<vmem>>, vector<1x1x8x128xf32>
    %526 = vector.shape_cast %525 : vector<1x1x8x128xf32> to vector<8x128xf32>
    %c1_223 = arith.constant 1 : index
    %527 = arith.index_cast %521 : i32 to index
    %c0_224 = arith.constant 0 : index
    %c0_225 = arith.constant 0 : index
    %528 = vector.load %arg12[%c1_223, %527, %c0_224, %c0_225] : memref<2x8x8x128xf32, #tpu.memory_space<vmem>>, vector<1x1x8x128xf32>
    %529 = vector.shape_cast %528 : vector<1x1x8x128xf32> to vector<8x128xf32>
    %530 = vector.extract_strided_slice %526 {offsets = [0, 0], sizes = [8, 64], strides = [1, 1]} : vector<8x128xf32> to vector<8x64xf32>
    %531 = vector.extract_strided_slice %522 {offsets = [0, 0], sizes = [8, 64], strides = [1, 1]} : vector<8x96xf32> to vector<8x64xf32>
    %532 = arith.addf %530, %531 : vector<8x64xf32>
    %533 = arith.negf %532 : vector<8x64xf32>
    %534 = math.exp %533 : vector<8x64xf32>
    %cst_226 = arith.constant 1.000000e+00 : f32
    %535 = vector.broadcast %cst_226 : f32 to vector<8x64xf32>
    %536 = arith.addf %535, %534 : vector<8x64xf32>
    %537 = arith.divf %535, %536 : vector<8x64xf32>
    %538 = vector.extract_strided_slice %529 {offsets = [0, 0], sizes = [8, 64], strides = [1, 1]} : vector<8x128xf32> to vector<8x64xf32>
    %539 = vector.extract_strided_slice %523 {offsets = [0, 0], sizes = [8, 64], strides = [1, 1]} : vector<8x96xf32> to vector<8x64xf32>
    %540 = arith.addf %538, %539 : vector<8x64xf32>
    %541 = arith.negf %540 : vector<8x64xf32>
    %542 = math.exp %541 : vector<8x64xf32>
    %cst_227 = arith.constant 1.000000e+00 : f32
    %543 = vector.broadcast %cst_227 : f32 to vector<8x64xf32>
    %544 = arith.addf %543, %542 : vector<8x64xf32>
    %545 = arith.divf %543, %544 : vector<8x64xf32>
    %546 = vector.extract_strided_slice %526 {offsets = [0, 64], sizes = [8, 32], strides = [1, 1]} : vector<8x128xf32> to vector<8x32xf32>
    %547 = vector.extract_strided_slice %537 {offsets = [0, 0], sizes = [8, 32], strides = [1, 1]} : vector<8x64xf32> to vector<8x32xf32>
    %548 = vector.extract_strided_slice %522 {offsets = [0, 64], sizes = [8, 32], strides = [1, 1]} : vector<8x96xf32> to vector<8x32xf32>
    %549 = vector.broadcast %460 : vector<1x32xf32> to vector<8x32xf32>
    %550 = arith.addf %548, %549 : vector<8x32xf32>
    %551 = arith.mulf %547, %550 : vector<8x32xf32>
    %552 = arith.addf %546, %551 : vector<8x32xf32>
    %553 = math.tanh %552 : vector<8x32xf32>
    %554 = vector.extract_strided_slice %529 {offsets = [0, 64], sizes = [8, 32], strides = [1, 1]} : vector<8x128xf32> to vector<8x32xf32>
    %555 = vector.extract_strided_slice %545 {offsets = [0, 0], sizes = [8, 32], strides = [1, 1]} : vector<8x64xf32> to vector<8x32xf32>
    %556 = vector.extract_strided_slice %523 {offsets = [0, 64], sizes = [8, 32], strides = [1, 1]} : vector<8x96xf32> to vector<8x32xf32>
    %557 = vector.broadcast %462 : vector<1x32xf32> to vector<8x32xf32>
    %558 = arith.addf %556, %557 : vector<8x32xf32>
    %559 = arith.mulf %555, %558 : vector<8x32xf32>
    %560 = arith.addf %554, %559 : vector<8x32xf32>
    %561 = math.tanh %560 : vector<8x32xf32>
    %562 = vector.extract_strided_slice %537 {offsets = [0, 32], sizes = [8, 32], strides = [1, 1]} : vector<8x64xf32> to vector<8x32xf32>
    %563 = vector.extract_strided_slice %545 {offsets = [0, 32], sizes = [8, 32], strides = [1, 1]} : vector<8x64xf32> to vector<8x32xf32>
    %cst_228 = arith.constant 1.000000e+00 : f32
    %564 = vector.broadcast %cst_228 : f32 to vector<8x32xf32>
    %565 = arith.subf %564, %562 : vector<8x32xf32>
    %566 = arith.mulf %565, %553 : vector<8x32xf32>
    %567 = arith.mulf %562, %511 : vector<8x32xf32>
    %568 = arith.addf %566, %567 : vector<8x32xf32>
    %cst_229 = arith.constant 1.000000e+00 : f32
    %569 = vector.broadcast %cst_229 : f32 to vector<8x32xf32>
    %570 = arith.subf %569, %563 : vector<8x32xf32>
    %571 = arith.mulf %570, %561 : vector<8x32xf32>
    %572 = arith.mulf %563, %516 : vector<8x32xf32>
    %573 = arith.addf %571, %572 : vector<8x32xf32>
    %574 = arith.addf %517, %568 : vector<8x32xf32>
    %575 = arith.addf %518, %573 : vector<8x32xf32>
    %576 = arith.maximumf %519, %568 : vector<8x32xf32>
    %577 = arith.maximumf %520, %573 : vector<8x32xf32>
    %c2_i32_230 = arith.constant 2 : i32
    %c7_i32_231 = arith.constant 7 : i32
    %578 = arith.subi %c7_i32_231, %c2_i32_230 : i32
    %cst_232 = arith.constant dense<0.000000e+00> : vector<8x96xf32>
    %579 = tpu.matmul %568, %456, %cst_232 {dimension_numbers = #tpu.dot_dimension_numbers<[1], [0], [0], [1], [0, 0, 1, 1], [], []>} : vector<8x32xf32>, vector<32x96xf32>, vector<8x96xf32> -> vector<8x96xf32>
    %cst_233 = arith.constant dense<0.000000e+00> : vector<8x96xf32>
    %580 = tpu.matmul %573, %458, %cst_233 {dimension_numbers = #tpu.dot_dimension_numbers<[1], [0], [0], [1], [0, 0, 1, 1], [], []>} : vector<8x32xf32>, vector<32x96xf32>, vector<8x96xf32> -> vector<8x96xf32>
    %c0_234 = arith.constant 0 : index
    %581 = arith.index_cast %c2_i32_230 : i32 to index
    %c0_235 = arith.constant 0 : index
    %c0_236 = arith.constant 0 : index
    %582 = vector.load %arg12[%c0_234, %581, %c0_235, %c0_236] : memref<2x8x8x128xf32, #tpu.memory_space<vmem>>, vector<1x1x8x128xf32>
    %583 = vector.shape_cast %582 : vector<1x1x8x128xf32> to vector<8x128xf32>
    %c1_237 = arith.constant 1 : index
    %584 = arith.index_cast %578 : i32 to index
    %c0_238 = arith.constant 0 : index
    %c0_239 = arith.constant 0 : index
    %585 = vector.load %arg12[%c1_237, %584, %c0_238, %c0_239] : memref<2x8x8x128xf32, #tpu.memory_space<vmem>>, vector<1x1x8x128xf32>
    %586 = vector.shape_cast %585 : vector<1x1x8x128xf32> to vector<8x128xf32>
    %587 = vector.extract_strided_slice %583 {offsets = [0, 0], sizes = [8, 64], strides = [1, 1]} : vector<8x128xf32> to vector<8x64xf32>
    %588 = vector.extract_strided_slice %579 {offsets = [0, 0], sizes = [8, 64], strides = [1, 1]} : vector<8x96xf32> to vector<8x64xf32>
    %589 = arith.addf %587, %588 : vector<8x64xf32>
    %590 = arith.negf %589 : vector<8x64xf32>
    %591 = math.exp %590 : vector<8x64xf32>
    %cst_240 = arith.constant 1.000000e+00 : f32
    %592 = vector.broadcast %cst_240 : f32 to vector<8x64xf32>
    %593 = arith.addf %592, %591 : vector<8x64xf32>
    %594 = arith.divf %592, %593 : vector<8x64xf32>
    %595 = vector.extract_strided_slice %586 {offsets = [0, 0], sizes = [8, 64], strides = [1, 1]} : vector<8x128xf32> to vector<8x64xf32>
    %596 = vector.extract_strided_slice %580 {offsets = [0, 0], sizes = [8, 64], strides = [1, 1]} : vector<8x96xf32> to vector<8x64xf32>
    %597 = arith.addf %595, %596 : vector<8x64xf32>
    %598 = arith.negf %597 : vector<8x64xf32>
    %599 = math.exp %598 : vector<8x64xf32>
    %cst_241 = arith.constant 1.000000e+00 : f32
    %600 = vector.broadcast %cst_241 : f32 to vector<8x64xf32>
    %601 = arith.addf %600, %599 : vector<8x64xf32>
    %602 = arith.divf %600, %601 : vector<8x64xf32>
    %603 = vector.extract_strided_slice %583 {offsets = [0, 64], sizes = [8, 32], strides = [1, 1]} : vector<8x128xf32> to vector<8x32xf32>
    %604 = vector.extract_strided_slice %594 {offsets = [0, 0], sizes = [8, 32], strides = [1, 1]} : vector<8x64xf32> to vector<8x32xf32>
    %605 = vector.extract_strided_slice %579 {offsets = [0, 64], sizes = [8, 32], strides = [1, 1]} : vector<8x96xf32> to vector<8x32xf32>
    %606 = vector.broadcast %460 : vector<1x32xf32> to vector<8x32xf32>
    %607 = arith.addf %605, %606 : vector<8x32xf32>
    %608 = arith.mulf %604, %607 : vector<8x32xf32>
    %609 = arith.addf %603, %608 : vector<8x32xf32>
    %610 = math.tanh %609 : vector<8x32xf32>
    %611 = vector.extract_strided_slice %586 {offsets = [0, 64], sizes = [8, 32], strides = [1, 1]} : vector<8x128xf32> to vector<8x32xf32>
    %612 = vector.extract_strided_slice %602 {offsets = [0, 0], sizes = [8, 32], strides = [1, 1]} : vector<8x64xf32> to vector<8x32xf32>
    %613 = vector.extract_strided_slice %580 {offsets = [0, 64], sizes = [8, 32], strides = [1, 1]} : vector<8x96xf32> to vector<8x32xf32>
    %614 = vector.broadcast %462 : vector<1x32xf32> to vector<8x32xf32>
    %615 = arith.addf %613, %614 : vector<8x32xf32>
    %616 = arith.mulf %612, %615 : vector<8x32xf32>
    %617 = arith.addf %611, %616 : vector<8x32xf32>
    %618 = math.tanh %617 : vector<8x32xf32>
    %619 = vector.extract_strided_slice %594 {offsets = [0, 32], sizes = [8, 32], strides = [1, 1]} : vector<8x64xf32> to vector<8x32xf32>
    %620 = vector.extract_strided_slice %602 {offsets = [0, 32], sizes = [8, 32], strides = [1, 1]} : vector<8x64xf32> to vector<8x32xf32>
    %cst_242 = arith.constant 1.000000e+00 : f32
    %621 = vector.broadcast %cst_242 : f32 to vector<8x32xf32>
    %622 = arith.subf %621, %619 : vector<8x32xf32>
    %623 = arith.mulf %622, %610 : vector<8x32xf32>
    %624 = arith.mulf %619, %568 : vector<8x32xf32>
    %625 = arith.addf %623, %624 : vector<8x32xf32>
    %cst_243 = arith.constant 1.000000e+00 : f32
    %626 = vector.broadcast %cst_243 : f32 to vector<8x32xf32>
    %627 = arith.subf %626, %620 : vector<8x32xf32>
    %628 = arith.mulf %627, %618 : vector<8x32xf32>
    %629 = arith.mulf %620, %573 : vector<8x32xf32>
    %630 = arith.addf %628, %629 : vector<8x32xf32>
    %631 = arith.addf %574, %625 : vector<8x32xf32>
    %632 = arith.addf %575, %630 : vector<8x32xf32>
    %633 = arith.maximumf %576, %625 : vector<8x32xf32>
    %634 = arith.maximumf %577, %630 : vector<8x32xf32>
    %c3_i32_244 = arith.constant 3 : i32
    %c7_i32_245 = arith.constant 7 : i32
    %635 = arith.subi %c7_i32_245, %c3_i32_244 : i32
    %cst_246 = arith.constant dense<0.000000e+00> : vector<8x96xf32>
    %636 = tpu.matmul %625, %456, %cst_246 {dimension_numbers = #tpu.dot_dimension_numbers<[1], [0], [0], [1], [0, 0, 1, 1], [], []>} : vector<8x32xf32>, vector<32x96xf32>, vector<8x96xf32> -> vector<8x96xf32>
    %cst_247 = arith.constant dense<0.000000e+00> : vector<8x96xf32>
    %637 = tpu.matmul %630, %458, %cst_247 {dimension_numbers = #tpu.dot_dimension_numbers<[1], [0], [0], [1], [0, 0, 1, 1], [], []>} : vector<8x32xf32>, vector<32x96xf32>, vector<8x96xf32> -> vector<8x96xf32>
    %c0_248 = arith.constant 0 : index
    %638 = arith.index_cast %c3_i32_244 : i32 to index
    %c0_249 = arith.constant 0 : index
    %c0_250 = arith.constant 0 : index
    %639 = vector.load %arg12[%c0_248, %638, %c0_249, %c0_250] : memref<2x8x8x128xf32, #tpu.memory_space<vmem>>, vector<1x1x8x128xf32>
    %640 = vector.shape_cast %639 : vector<1x1x8x128xf32> to vector<8x128xf32>
    %c1_251 = arith.constant 1 : index
    %641 = arith.index_cast %635 : i32 to index
    %c0_252 = arith.constant 0 : index
    %c0_253 = arith.constant 0 : index
    %642 = vector.load %arg12[%c1_251, %641, %c0_252, %c0_253] : memref<2x8x8x128xf32, #tpu.memory_space<vmem>>, vector<1x1x8x128xf32>
    %643 = vector.shape_cast %642 : vector<1x1x8x128xf32> to vector<8x128xf32>
    %644 = vector.extract_strided_slice %640 {offsets = [0, 0], sizes = [8, 64], strides = [1, 1]} : vector<8x128xf32> to vector<8x64xf32>
    %645 = vector.extract_strided_slice %636 {offsets = [0, 0], sizes = [8, 64], strides = [1, 1]} : vector<8x96xf32> to vector<8x64xf32>
    %646 = arith.addf %644, %645 : vector<8x64xf32>
    %647 = arith.negf %646 : vector<8x64xf32>
    %648 = math.exp %647 : vector<8x64xf32>
    %cst_254 = arith.constant 1.000000e+00 : f32
    %649 = vector.broadcast %cst_254 : f32 to vector<8x64xf32>
    %650 = arith.addf %649, %648 : vector<8x64xf32>
    %651 = arith.divf %649, %650 : vector<8x64xf32>
    %652 = vector.extract_strided_slice %643 {offsets = [0, 0], sizes = [8, 64], strides = [1, 1]} : vector<8x128xf32> to vector<8x64xf32>
    %653 = vector.extract_strided_slice %637 {offsets = [0, 0], sizes = [8, 64], strides = [1, 1]} : vector<8x96xf32> to vector<8x64xf32>
    %654 = arith.addf %652, %653 : vector<8x64xf32>
    %655 = arith.negf %654 : vector<8x64xf32>
    %656 = math.exp %655 : vector<8x64xf32>
    %cst_255 = arith.constant 1.000000e+00 : f32
    %657 = vector.broadcast %cst_255 : f32 to vector<8x64xf32>
    %658 = arith.addf %657, %656 : vector<8x64xf32>
    %659 = arith.divf %657, %658 : vector<8x64xf32>
    %660 = vector.extract_strided_slice %640 {offsets = [0, 64], sizes = [8, 32], strides = [1, 1]} : vector<8x128xf32> to vector<8x32xf32>
    %661 = vector.extract_strided_slice %651 {offsets = [0, 0], sizes = [8, 32], strides = [1, 1]} : vector<8x64xf32> to vector<8x32xf32>
    %662 = vector.extract_strided_slice %636 {offsets = [0, 64], sizes = [8, 32], strides = [1, 1]} : vector<8x96xf32> to vector<8x32xf32>
    %663 = vector.broadcast %460 : vector<1x32xf32> to vector<8x32xf32>
    %664 = arith.addf %662, %663 : vector<8x32xf32>
    %665 = arith.mulf %661, %664 : vector<8x32xf32>
    %666 = arith.addf %660, %665 : vector<8x32xf32>
    %667 = math.tanh %666 : vector<8x32xf32>
    %668 = vector.extract_strided_slice %643 {offsets = [0, 64], sizes = [8, 32], strides = [1, 1]} : vector<8x128xf32> to vector<8x32xf32>
    %669 = vector.extract_strided_slice %659 {offsets = [0, 0], sizes = [8, 32], strides = [1, 1]} : vector<8x64xf32> to vector<8x32xf32>
    %670 = vector.extract_strided_slice %637 {offsets = [0, 64], sizes = [8, 32], strides = [1, 1]} : vector<8x96xf32> to vector<8x32xf32>
    %671 = vector.broadcast %462 : vector<1x32xf32> to vector<8x32xf32>
    %672 = arith.addf %670, %671 : vector<8x32xf32>
    %673 = arith.mulf %669, %672 : vector<8x32xf32>
    %674 = arith.addf %668, %673 : vector<8x32xf32>
    %675 = math.tanh %674 : vector<8x32xf32>
    %676 = vector.extract_strided_slice %651 {offsets = [0, 32], sizes = [8, 32], strides = [1, 1]} : vector<8x64xf32> to vector<8x32xf32>
    %677 = vector.extract_strided_slice %659 {offsets = [0, 32], sizes = [8, 32], strides = [1, 1]} : vector<8x64xf32> to vector<8x32xf32>
    %cst_256 = arith.constant 1.000000e+00 : f32
    %678 = vector.broadcast %cst_256 : f32 to vector<8x32xf32>
    %679 = arith.subf %678, %676 : vector<8x32xf32>
    %680 = arith.mulf %679, %667 : vector<8x32xf32>
    %681 = arith.mulf %676, %625 : vector<8x32xf32>
    %682 = arith.addf %680, %681 : vector<8x32xf32>
    %cst_257 = arith.constant 1.000000e+00 : f32
    %683 = vector.broadcast %cst_257 : f32 to vector<8x32xf32>
    %684 = arith.subf %683, %677 : vector<8x32xf32>
    %685 = arith.mulf %684, %675 : vector<8x32xf32>
    %686 = arith.mulf %677, %630 : vector<8x32xf32>
    %687 = arith.addf %685, %686 : vector<8x32xf32>
    %688 = arith.addf %631, %682 : vector<8x32xf32>
    %689 = arith.addf %632, %687 : vector<8x32xf32>
    %690 = arith.maximumf %633, %682 : vector<8x32xf32>
    %691 = arith.maximumf %634, %687 : vector<8x32xf32>
    %c4_i32_258 = arith.constant 4 : i32
    %c7_i32_259 = arith.constant 7 : i32
    %692 = arith.subi %c7_i32_259, %c4_i32_258 : i32
    %cst_260 = arith.constant dense<0.000000e+00> : vector<8x96xf32>
    %693 = tpu.matmul %682, %456, %cst_260 {dimension_numbers = #tpu.dot_dimension_numbers<[1], [0], [0], [1], [0, 0, 1, 1], [], []>} : vector<8x32xf32>, vector<32x96xf32>, vector<8x96xf32> -> vector<8x96xf32>
    %cst_261 = arith.constant dense<0.000000e+00> : vector<8x96xf32>
    %694 = tpu.matmul %687, %458, %cst_261 {dimension_numbers = #tpu.dot_dimension_numbers<[1], [0], [0], [1], [0, 0, 1, 1], [], []>} : vector<8x32xf32>, vector<32x96xf32>, vector<8x96xf32> -> vector<8x96xf32>
    %c0_262 = arith.constant 0 : index
    %695 = arith.index_cast %c4_i32_258 : i32 to index
    %c0_263 = arith.constant 0 : index
    %c0_264 = arith.constant 0 : index
    %696 = vector.load %arg12[%c0_262, %695, %c0_263, %c0_264] : memref<2x8x8x128xf32, #tpu.memory_space<vmem>>, vector<1x1x8x128xf32>
    %697 = vector.shape_cast %696 : vector<1x1x8x128xf32> to vector<8x128xf32>
    %c1_265 = arith.constant 1 : index
    %698 = arith.index_cast %692 : i32 to index
    %c0_266 = arith.constant 0 : index
    %c0_267 = arith.constant 0 : index
    %699 = vector.load %arg12[%c1_265, %698, %c0_266, %c0_267] : memref<2x8x8x128xf32, #tpu.memory_space<vmem>>, vector<1x1x8x128xf32>
    %700 = vector.shape_cast %699 : vector<1x1x8x128xf32> to vector<8x128xf32>
    %701 = vector.extract_strided_slice %697 {offsets = [0, 0], sizes = [8, 64], strides = [1, 1]} : vector<8x128xf32> to vector<8x64xf32>
    %702 = vector.extract_strided_slice %693 {offsets = [0, 0], sizes = [8, 64], strides = [1, 1]} : vector<8x96xf32> to vector<8x64xf32>
    %703 = arith.addf %701, %702 : vector<8x64xf32>
    %704 = arith.negf %703 : vector<8x64xf32>
    %705 = math.exp %704 : vector<8x64xf32>
    %cst_268 = arith.constant 1.000000e+00 : f32
    %706 = vector.broadcast %cst_268 : f32 to vector<8x64xf32>
    %707 = arith.addf %706, %705 : vector<8x64xf32>
    %708 = arith.divf %706, %707 : vector<8x64xf32>
    %709 = vector.extract_strided_slice %700 {offsets = [0, 0], sizes = [8, 64], strides = [1, 1]} : vector<8x128xf32> to vector<8x64xf32>
    %710 = vector.extract_strided_slice %694 {offsets = [0, 0], sizes = [8, 64], strides = [1, 1]} : vector<8x96xf32> to vector<8x64xf32>
    %711 = arith.addf %709, %710 : vector<8x64xf32>
    %712 = arith.negf %711 : vector<8x64xf32>
    %713 = math.exp %712 : vector<8x64xf32>
    %cst_269 = arith.constant 1.000000e+00 : f32
    %714 = vector.broadcast %cst_269 : f32 to vector<8x64xf32>
    %715 = arith.addf %714, %713 : vector<8x64xf32>
    %716 = arith.divf %714, %715 : vector<8x64xf32>
    %717 = vector.extract_strided_slice %697 {offsets = [0, 64], sizes = [8, 32], strides = [1, 1]} : vector<8x128xf32> to vector<8x32xf32>
    %718 = vector.extract_strided_slice %708 {offsets = [0, 0], sizes = [8, 32], strides = [1, 1]} : vector<8x64xf32> to vector<8x32xf32>
    %719 = vector.extract_strided_slice %693 {offsets = [0, 64], sizes = [8, 32], strides = [1, 1]} : vector<8x96xf32> to vector<8x32xf32>
    %720 = vector.broadcast %460 : vector<1x32xf32> to vector<8x32xf32>
    %721 = arith.addf %719, %720 : vector<8x32xf32>
    %722 = arith.mulf %718, %721 : vector<8x32xf32>
    %723 = arith.addf %717, %722 : vector<8x32xf32>
    %724 = math.tanh %723 : vector<8x32xf32>
    %725 = vector.extract_strided_slice %700 {offsets = [0, 64], sizes = [8, 32], strides = [1, 1]} : vector<8x128xf32> to vector<8x32xf32>
    %726 = vector.extract_strided_slice %716 {offsets = [0, 0], sizes = [8, 32], strides = [1, 1]} : vector<8x64xf32> to vector<8x32xf32>
    %727 = vector.extract_strided_slice %694 {offsets = [0, 64], sizes = [8, 32], strides = [1, 1]} : vector<8x96xf32> to vector<8x32xf32>
    %728 = vector.broadcast %462 : vector<1x32xf32> to vector<8x32xf32>
    %729 = arith.addf %727, %728 : vector<8x32xf32>
    %730 = arith.mulf %726, %729 : vector<8x32xf32>
    %731 = arith.addf %725, %730 : vector<8x32xf32>
    %732 = math.tanh %731 : vector<8x32xf32>
    %733 = vector.extract_strided_slice %708 {offsets = [0, 32], sizes = [8, 32], strides = [1, 1]} : vector<8x64xf32> to vector<8x32xf32>
    %734 = vector.extract_strided_slice %716 {offsets = [0, 32], sizes = [8, 32], strides = [1, 1]} : vector<8x64xf32> to vector<8x32xf32>
    %cst_270 = arith.constant 1.000000e+00 : f32
    %735 = vector.broadcast %cst_270 : f32 to vector<8x32xf32>
    %736 = arith.subf %735, %733 : vector<8x32xf32>
    %737 = arith.mulf %736, %724 : vector<8x32xf32>
    %738 = arith.mulf %733, %682 : vector<8x32xf32>
    %739 = arith.addf %737, %738 : vector<8x32xf32>
    %cst_271 = arith.constant 1.000000e+00 : f32
    %740 = vector.broadcast %cst_271 : f32 to vector<8x32xf32>
    %741 = arith.subf %740, %734 : vector<8x32xf32>
    %742 = arith.mulf %741, %732 : vector<8x32xf32>
    %743 = arith.mulf %734, %687 : vector<8x32xf32>
    %744 = arith.addf %742, %743 : vector<8x32xf32>
    %745 = arith.addf %688, %739 : vector<8x32xf32>
    %746 = arith.addf %689, %744 : vector<8x32xf32>
    %747 = arith.maximumf %690, %739 : vector<8x32xf32>
    %748 = arith.maximumf %691, %744 : vector<8x32xf32>
    %c5_i32_272 = arith.constant 5 : i32
    %c7_i32_273 = arith.constant 7 : i32
    %749 = arith.subi %c7_i32_273, %c5_i32_272 : i32
    %cst_274 = arith.constant dense<0.000000e+00> : vector<8x96xf32>
    %750 = tpu.matmul %739, %456, %cst_274 {dimension_numbers = #tpu.dot_dimension_numbers<[1], [0], [0], [1], [0, 0, 1, 1], [], []>} : vector<8x32xf32>, vector<32x96xf32>, vector<8x96xf32> -> vector<8x96xf32>
    %cst_275 = arith.constant dense<0.000000e+00> : vector<8x96xf32>
    %751 = tpu.matmul %744, %458, %cst_275 {dimension_numbers = #tpu.dot_dimension_numbers<[1], [0], [0], [1], [0, 0, 1, 1], [], []>} : vector<8x32xf32>, vector<32x96xf32>, vector<8x96xf32> -> vector<8x96xf32>
    %c0_276 = arith.constant 0 : index
    %752 = arith.index_cast %c5_i32_272 : i32 to index
    %c0_277 = arith.constant 0 : index
    %c0_278 = arith.constant 0 : index
    %753 = vector.load %arg12[%c0_276, %752, %c0_277, %c0_278] : memref<2x8x8x128xf32, #tpu.memory_space<vmem>>, vector<1x1x8x128xf32>
    %754 = vector.shape_cast %753 : vector<1x1x8x128xf32> to vector<8x128xf32>
    %c1_279 = arith.constant 1 : index
    %755 = arith.index_cast %749 : i32 to index
    %c0_280 = arith.constant 0 : index
    %c0_281 = arith.constant 0 : index
    %756 = vector.load %arg12[%c1_279, %755, %c0_280, %c0_281] : memref<2x8x8x128xf32, #tpu.memory_space<vmem>>, vector<1x1x8x128xf32>
    %757 = vector.shape_cast %756 : vector<1x1x8x128xf32> to vector<8x128xf32>
    %758 = vector.extract_strided_slice %754 {offsets = [0, 0], sizes = [8, 64], strides = [1, 1]} : vector<8x128xf32> to vector<8x64xf32>
    %759 = vector.extract_strided_slice %750 {offsets = [0, 0], sizes = [8, 64], strides = [1, 1]} : vector<8x96xf32> to vector<8x64xf32>
    %760 = arith.addf %758, %759 : vector<8x64xf32>
    %761 = arith.negf %760 : vector<8x64xf32>
    %762 = math.exp %761 : vector<8x64xf32>
    %cst_282 = arith.constant 1.000000e+00 : f32
    %763 = vector.broadcast %cst_282 : f32 to vector<8x64xf32>
    %764 = arith.addf %763, %762 : vector<8x64xf32>
    %765 = arith.divf %763, %764 : vector<8x64xf32>
    %766 = vector.extract_strided_slice %757 {offsets = [0, 0], sizes = [8, 64], strides = [1, 1]} : vector<8x128xf32> to vector<8x64xf32>
    %767 = vector.extract_strided_slice %751 {offsets = [0, 0], sizes = [8, 64], strides = [1, 1]} : vector<8x96xf32> to vector<8x64xf32>
    %768 = arith.addf %766, %767 : vector<8x64xf32>
    %769 = arith.negf %768 : vector<8x64xf32>
    %770 = math.exp %769 : vector<8x64xf32>
    %cst_283 = arith.constant 1.000000e+00 : f32
    %771 = vector.broadcast %cst_283 : f32 to vector<8x64xf32>
    %772 = arith.addf %771, %770 : vector<8x64xf32>
    %773 = arith.divf %771, %772 : vector<8x64xf32>
    %774 = vector.extract_strided_slice %754 {offsets = [0, 64], sizes = [8, 32], strides = [1, 1]} : vector<8x128xf32> to vector<8x32xf32>
    %775 = vector.extract_strided_slice %765 {offsets = [0, 0], sizes = [8, 32], strides = [1, 1]} : vector<8x64xf32> to vector<8x32xf32>
    %776 = vector.extract_strided_slice %750 {offsets = [0, 64], sizes = [8, 32], strides = [1, 1]} : vector<8x96xf32> to vector<8x32xf32>
    %777 = vector.broadcast %460 : vector<1x32xf32> to vector<8x32xf32>
    %778 = arith.addf %776, %777 : vector<8x32xf32>
    %779 = arith.mulf %775, %778 : vector<8x32xf32>
    %780 = arith.addf %774, %779 : vector<8x32xf32>
    %781 = math.tanh %780 : vector<8x32xf32>
    %782 = vector.extract_strided_slice %757 {offsets = [0, 64], sizes = [8, 32], strides = [1, 1]} : vector<8x128xf32> to vector<8x32xf32>
    %783 = vector.extract_strided_slice %773 {offsets = [0, 0], sizes = [8, 32], strides = [1, 1]} : vector<8x64xf32> to vector<8x32xf32>
    %784 = vector.extract_strided_slice %751 {offsets = [0, 64], sizes = [8, 32], strides = [1, 1]} : vector<8x96xf32> to vector<8x32xf32>
    %785 = vector.broadcast %462 : vector<1x32xf32> to vector<8x32xf32>
    %786 = arith.addf %784, %785 : vector<8x32xf32>
    %787 = arith.mulf %783, %786 : vector<8x32xf32>
    %788 = arith.addf %782, %787 : vector<8x32xf32>
    %789 = math.tanh %788 : vector<8x32xf32>
    %790 = vector.extract_strided_slice %765 {offsets = [0, 32], sizes = [8, 32], strides = [1, 1]} : vector<8x64xf32> to vector<8x32xf32>
    %791 = vector.extract_strided_slice %773 {offsets = [0, 32], sizes = [8, 32], strides = [1, 1]} : vector<8x64xf32> to vector<8x32xf32>
    %cst_284 = arith.constant 1.000000e+00 : f32
    %792 = vector.broadcast %cst_284 : f32 to vector<8x32xf32>
    %793 = arith.subf %792, %790 : vector<8x32xf32>
    %794 = arith.mulf %793, %781 : vector<8x32xf32>
    %795 = arith.mulf %790, %739 : vector<8x32xf32>
    %796 = arith.addf %794, %795 : vector<8x32xf32>
    %cst_285 = arith.constant 1.000000e+00 : f32
    %797 = vector.broadcast %cst_285 : f32 to vector<8x32xf32>
    %798 = arith.subf %797, %791 : vector<8x32xf32>
    %799 = arith.mulf %798, %789 : vector<8x32xf32>
    %800 = arith.mulf %791, %744 : vector<8x32xf32>
    %801 = arith.addf %799, %800 : vector<8x32xf32>
    %802 = arith.addf %745, %796 : vector<8x32xf32>
    %803 = arith.addf %746, %801 : vector<8x32xf32>
    %804 = arith.maximumf %747, %796 : vector<8x32xf32>
    %805 = arith.maximumf %748, %801 : vector<8x32xf32>
    %c6_i32_286 = arith.constant 6 : i32
    %c7_i32_287 = arith.constant 7 : i32
    %806 = arith.subi %c7_i32_287, %c6_i32_286 : i32
    %cst_288 = arith.constant dense<0.000000e+00> : vector<8x96xf32>
    %807 = tpu.matmul %796, %456, %cst_288 {dimension_numbers = #tpu.dot_dimension_numbers<[1], [0], [0], [1], [0, 0, 1, 1], [], []>} : vector<8x32xf32>, vector<32x96xf32>, vector<8x96xf32> -> vector<8x96xf32>
    %cst_289 = arith.constant dense<0.000000e+00> : vector<8x96xf32>
    %808 = tpu.matmul %801, %458, %cst_289 {dimension_numbers = #tpu.dot_dimension_numbers<[1], [0], [0], [1], [0, 0, 1, 1], [], []>} : vector<8x32xf32>, vector<32x96xf32>, vector<8x96xf32> -> vector<8x96xf32>
    %c0_290 = arith.constant 0 : index
    %809 = arith.index_cast %c6_i32_286 : i32 to index
    %c0_291 = arith.constant 0 : index
    %c0_292 = arith.constant 0 : index
    %810 = vector.load %arg12[%c0_290, %809, %c0_291, %c0_292] : memref<2x8x8x128xf32, #tpu.memory_space<vmem>>, vector<1x1x8x128xf32>
    %811 = vector.shape_cast %810 : vector<1x1x8x128xf32> to vector<8x128xf32>
    %c1_293 = arith.constant 1 : index
    %812 = arith.index_cast %806 : i32 to index
    %c0_294 = arith.constant 0 : index
    %c0_295 = arith.constant 0 : index
    %813 = vector.load %arg12[%c1_293, %812, %c0_294, %c0_295] : memref<2x8x8x128xf32, #tpu.memory_space<vmem>>, vector<1x1x8x128xf32>
    %814 = vector.shape_cast %813 : vector<1x1x8x128xf32> to vector<8x128xf32>
    %815 = vector.extract_strided_slice %811 {offsets = [0, 0], sizes = [8, 64], strides = [1, 1]} : vector<8x128xf32> to vector<8x64xf32>
    %816 = vector.extract_strided_slice %807 {offsets = [0, 0], sizes = [8, 64], strides = [1, 1]} : vector<8x96xf32> to vector<8x64xf32>
    %817 = arith.addf %815, %816 : vector<8x64xf32>
    %818 = arith.negf %817 : vector<8x64xf32>
    %819 = math.exp %818 : vector<8x64xf32>
    %cst_296 = arith.constant 1.000000e+00 : f32
    %820 = vector.broadcast %cst_296 : f32 to vector<8x64xf32>
    %821 = arith.addf %820, %819 : vector<8x64xf32>
    %822 = arith.divf %820, %821 : vector<8x64xf32>
    %823 = vector.extract_strided_slice %814 {offsets = [0, 0], sizes = [8, 64], strides = [1, 1]} : vector<8x128xf32> to vector<8x64xf32>
    %824 = vector.extract_strided_slice %808 {offsets = [0, 0], sizes = [8, 64], strides = [1, 1]} : vector<8x96xf32> to vector<8x64xf32>
    %825 = arith.addf %823, %824 : vector<8x64xf32>
    %826 = arith.negf %825 : vector<8x64xf32>
    %827 = math.exp %826 : vector<8x64xf32>
    %cst_297 = arith.constant 1.000000e+00 : f32
    %828 = vector.broadcast %cst_297 : f32 to vector<8x64xf32>
    %829 = arith.addf %828, %827 : vector<8x64xf32>
    %830 = arith.divf %828, %829 : vector<8x64xf32>
    %831 = vector.extract_strided_slice %811 {offsets = [0, 64], sizes = [8, 32], strides = [1, 1]} : vector<8x128xf32> to vector<8x32xf32>
    %832 = vector.extract_strided_slice %822 {offsets = [0, 0], sizes = [8, 32], strides = [1, 1]} : vector<8x64xf32> to vector<8x32xf32>
    %833 = vector.extract_strided_slice %807 {offsets = [0, 64], sizes = [8, 32], strides = [1, 1]} : vector<8x96xf32> to vector<8x32xf32>
    %834 = vector.broadcast %460 : vector<1x32xf32> to vector<8x32xf32>
    %835 = arith.addf %833, %834 : vector<8x32xf32>
    %836 = arith.mulf %832, %835 : vector<8x32xf32>
    %837 = arith.addf %831, %836 : vector<8x32xf32>
    %838 = math.tanh %837 : vector<8x32xf32>
    %839 = vector.extract_strided_slice %814 {offsets = [0, 64], sizes = [8, 32], strides = [1, 1]} : vector<8x128xf32> to vector<8x32xf32>
    %840 = vector.extract_strided_slice %830 {offsets = [0, 0], sizes = [8, 32], strides = [1, 1]} : vector<8x64xf32> to vector<8x32xf32>
    %841 = vector.extract_strided_slice %808 {offsets = [0, 64], sizes = [8, 32], strides = [1, 1]} : vector<8x96xf32> to vector<8x32xf32>
    %842 = vector.broadcast %462 : vector<1x32xf32> to vector<8x32xf32>
    %843 = arith.addf %841, %842 : vector<8x32xf32>
    %844 = arith.mulf %840, %843 : vector<8x32xf32>
    %845 = arith.addf %839, %844 : vector<8x32xf32>
    %846 = math.tanh %845 : vector<8x32xf32>
    %847 = vector.extract_strided_slice %822 {offsets = [0, 32], sizes = [8, 32], strides = [1, 1]} : vector<8x64xf32> to vector<8x32xf32>
    %848 = vector.extract_strided_slice %830 {offsets = [0, 32], sizes = [8, 32], strides = [1, 1]} : vector<8x64xf32> to vector<8x32xf32>
    %cst_298 = arith.constant 1.000000e+00 : f32
    %849 = vector.broadcast %cst_298 : f32 to vector<8x32xf32>
    %850 = arith.subf %849, %847 : vector<8x32xf32>
    %851 = arith.mulf %850, %838 : vector<8x32xf32>
    %852 = arith.mulf %847, %796 : vector<8x32xf32>
    %853 = arith.addf %851, %852 : vector<8x32xf32>
    %cst_299 = arith.constant 1.000000e+00 : f32
    %854 = vector.broadcast %cst_299 : f32 to vector<8x32xf32>
    %855 = arith.subf %854, %848 : vector<8x32xf32>
    %856 = arith.mulf %855, %846 : vector<8x32xf32>
    %857 = arith.mulf %848, %801 : vector<8x32xf32>
    %858 = arith.addf %856, %857 : vector<8x32xf32>
    %859 = arith.addf %802, %853 : vector<8x32xf32>
    %860 = arith.addf %803, %858 : vector<8x32xf32>
    %861 = arith.maximumf %804, %853 : vector<8x32xf32>
    %862 = arith.maximumf %805, %858 : vector<8x32xf32>
    %c7_i32_300 = arith.constant 7 : i32
    %c7_i32_301 = arith.constant 7 : i32
    %863 = arith.subi %c7_i32_301, %c7_i32_300 : i32
    %cst_302 = arith.constant dense<0.000000e+00> : vector<8x96xf32>
    %864 = tpu.matmul %853, %456, %cst_302 {dimension_numbers = #tpu.dot_dimension_numbers<[1], [0], [0], [1], [0, 0, 1, 1], [], []>} : vector<8x32xf32>, vector<32x96xf32>, vector<8x96xf32> -> vector<8x96xf32>
    %cst_303 = arith.constant dense<0.000000e+00> : vector<8x96xf32>
    %865 = tpu.matmul %858, %458, %cst_303 {dimension_numbers = #tpu.dot_dimension_numbers<[1], [0], [0], [1], [0, 0, 1, 1], [], []>} : vector<8x32xf32>, vector<32x96xf32>, vector<8x96xf32> -> vector<8x96xf32>
    %c0_304 = arith.constant 0 : index
    %866 = arith.index_cast %c7_i32_300 : i32 to index
    %c0_305 = arith.constant 0 : index
    %c0_306 = arith.constant 0 : index
    %867 = vector.load %arg12[%c0_304, %866, %c0_305, %c0_306] : memref<2x8x8x128xf32, #tpu.memory_space<vmem>>, vector<1x1x8x128xf32>
    %868 = vector.shape_cast %867 : vector<1x1x8x128xf32> to vector<8x128xf32>
    %c1_307 = arith.constant 1 : index
    %869 = arith.index_cast %863 : i32 to index
    %c0_308 = arith.constant 0 : index
    %c0_309 = arith.constant 0 : index
    %870 = vector.load %arg12[%c1_307, %869, %c0_308, %c0_309] : memref<2x8x8x128xf32, #tpu.memory_space<vmem>>, vector<1x1x8x128xf32>
    %871 = vector.shape_cast %870 : vector<1x1x8x128xf32> to vector<8x128xf32>
    %872 = vector.extract_strided_slice %868 {offsets = [0, 0], sizes = [8, 64], strides = [1, 1]} : vector<8x128xf32> to vector<8x64xf32>
    %873 = vector.extract_strided_slice %864 {offsets = [0, 0], sizes = [8, 64], strides = [1, 1]} : vector<8x96xf32> to vector<8x64xf32>
    %874 = arith.addf %872, %873 : vector<8x64xf32>
    %875 = arith.negf %874 : vector<8x64xf32>
    %876 = math.exp %875 : vector<8x64xf32>
    %cst_310 = arith.constant 1.000000e+00 : f32
    %877 = vector.broadcast %cst_310 : f32 to vector<8x64xf32>
    %878 = arith.addf %877, %876 : vector<8x64xf32>
    %879 = arith.divf %877, %878 : vector<8x64xf32>
    %880 = vector.extract_strided_slice %871 {offsets = [0, 0], sizes = [8, 64], strides = [1, 1]} : vector<8x128xf32> to vector<8x64xf32>
    %881 = vector.extract_strided_slice %865 {offsets = [0, 0], sizes = [8, 64], strides = [1, 1]} : vector<8x96xf32> to vector<8x64xf32>
    %882 = arith.addf %880, %881 : vector<8x64xf32>
    %883 = arith.negf %882 : vector<8x64xf32>
    %884 = math.exp %883 : vector<8x64xf32>
    %cst_311 = arith.constant 1.000000e+00 : f32
    %885 = vector.broadcast %cst_311 : f32 to vector<8x64xf32>
    %886 = arith.addf %885, %884 : vector<8x64xf32>
    %887 = arith.divf %885, %886 : vector<8x64xf32>
    %888 = vector.extract_strided_slice %868 {offsets = [0, 64], sizes = [8, 32], strides = [1, 1]} : vector<8x128xf32> to vector<8x32xf32>
    %889 = vector.extract_strided_slice %879 {offsets = [0, 0], sizes = [8, 32], strides = [1, 1]} : vector<8x64xf32> to vector<8x32xf32>
    %890 = vector.extract_strided_slice %864 {offsets = [0, 64], sizes = [8, 32], strides = [1, 1]} : vector<8x96xf32> to vector<8x32xf32>
    %891 = vector.broadcast %460 : vector<1x32xf32> to vector<8x32xf32>
    %892 = arith.addf %890, %891 : vector<8x32xf32>
    %893 = arith.mulf %889, %892 : vector<8x32xf32>
    %894 = arith.addf %888, %893 : vector<8x32xf32>
    %895 = math.tanh %894 : vector<8x32xf32>
    %896 = vector.extract_strided_slice %871 {offsets = [0, 64], sizes = [8, 32], strides = [1, 1]} : vector<8x128xf32> to vector<8x32xf32>
    %897 = vector.extract_strided_slice %887 {offsets = [0, 0], sizes = [8, 32], strides = [1, 1]} : vector<8x64xf32> to vector<8x32xf32>
    %898 = vector.extract_strided_slice %865 {offsets = [0, 64], sizes = [8, 32], strides = [1, 1]} : vector<8x96xf32> to vector<8x32xf32>
    %899 = vector.broadcast %462 : vector<1x32xf32> to vector<8x32xf32>
    %900 = arith.addf %898, %899 : vector<8x32xf32>
    %901 = arith.mulf %897, %900 : vector<8x32xf32>
    %902 = arith.addf %896, %901 : vector<8x32xf32>
    %903 = math.tanh %902 : vector<8x32xf32>
    %904 = vector.extract_strided_slice %879 {offsets = [0, 32], sizes = [8, 32], strides = [1, 1]} : vector<8x64xf32> to vector<8x32xf32>
    %905 = vector.extract_strided_slice %887 {offsets = [0, 32], sizes = [8, 32], strides = [1, 1]} : vector<8x64xf32> to vector<8x32xf32>
    %cst_312 = arith.constant 1.000000e+00 : f32
    %906 = vector.broadcast %cst_312 : f32 to vector<8x32xf32>
    %907 = arith.subf %906, %904 : vector<8x32xf32>
    %908 = arith.mulf %907, %895 : vector<8x32xf32>
    %909 = arith.mulf %904, %853 : vector<8x32xf32>
    %910 = arith.addf %908, %909 : vector<8x32xf32>
    %cst_313 = arith.constant 1.000000e+00 : f32
    %911 = vector.broadcast %cst_313 : f32 to vector<8x32xf32>
    %912 = arith.subf %911, %905 : vector<8x32xf32>
    %913 = arith.mulf %912, %903 : vector<8x32xf32>
    %914 = arith.mulf %905, %858 : vector<8x32xf32>
    %915 = arith.addf %913, %914 : vector<8x32xf32>
    %916 = arith.addf %859, %910 : vector<8x32xf32>
    %917 = arith.addf %860, %915 : vector<8x32xf32>
    %918 = arith.maximumf %861, %910 : vector<8x32xf32>
    %919 = arith.maximumf %862, %915 : vector<8x32xf32>
    %c8_i32_314 = arith.constant 8 : i32
    %cst_315 = arith.constant 1.250000e-01 : f32
    %920 = vector.broadcast %cst_315 : f32 to vector<8x32xf32>
    %921 = arith.mulf %916, %920 : vector<8x32xf32>
    %cst_316 = arith.constant 1.250000e-01 : f32
    %922 = vector.broadcast %cst_316 : f32 to vector<8x32xf32>
    %923 = arith.mulf %917, %922 : vector<8x32xf32>
    %924 = tpu.concatenate %921, %923, %918, %919 in 1 : vector<8x32xf32>, vector<8x32xf32>, vector<8x32xf32>, vector<8x32xf32> -> vector<8x128xf32>
    %c0_317 = arith.constant 0 : index
    %c0_318 = arith.constant 0 : index
    %925 = vector.load %arg9[%c0_317, %c0_318] : memref<128x128xf32, #tpu.memory_space<vmem>>, vector<128x128xf32>
    %cst_319 = arith.constant dense<0.000000e+00> : vector<8x128xf32>
    %926 = tpu.matmul %924, %925, %cst_319 {dimension_numbers = #tpu.dot_dimension_numbers<[1], [0], [0], [1], [0, 0, 1, 1], [], []>} : vector<8x128xf32>, vector<128x128xf32>, vector<8x128xf32> -> vector<8x128xf32>
    %c0_320 = arith.constant 0 : index
    %c0_321 = arith.constant 0 : index
    %927 = vector.load %arg10[%c0_320, %c0_321] : memref<1x128xf32, #tpu.memory_space<vmem>>, vector<1x128xf32>
    %928 = vector.broadcast %927 : vector<1x128xf32> to vector<8x128xf32>
    %929 = arith.addf %926, %928 : vector<8x128xf32>
    %c0_322 = arith.constant 0 : index
    %c0_323 = arith.constant 0 : index
    %930 = vector.load %arg11[%c0_322, %c0_323] : memref<8x128xf32, #tpu.memory_space<vmem>>, vector<8x128xf32>
    tpu.vector_store %arg11[%c0_322, %c0_323], %929 {strides = array<i32>} : memref<8x128xf32, #tpu.memory_space<vmem>>, vector<8x128xf32>,
    return
  }
  func.func @transform_0(%arg0: i32) -> (i32, i32, i32) {
    %c0_i32 = arith.constant 0 : i32
    %c0_i32_0 = arith.constant 0 : i32
    %c0_i32_1 = arith.constant 0 : i32
    return %c0_i32, %arg0, %c0_i32_0 : i32, i32, i32
  }
  func.func @transform_1(%arg0: i32) -> (i32, i32, i32) {
    %c0_i32 = arith.constant 0 : i32
    %c0_i32_0 = arith.constant 0 : i32
    %c0_i32_1 = arith.constant 0 : i32
    %c0_i32_2 = arith.constant 0 : i32
    return %c0_i32, %c0_i32_0, %c0_i32_1 : i32, i32, i32
  }
  func.func @transform_2(%arg0: i32) -> (i32, i32, i32) {
    %c0_i32 = arith.constant 0 : i32
    %c0_i32_0 = arith.constant 0 : i32
    %c0_i32_1 = arith.constant 0 : i32
    %c0_i32_2 = arith.constant 0 : i32
    return %c0_i32, %c0_i32_0, %c0_i32_1 : i32, i32, i32
  }
  func.func @transform_3(%arg0: i32) -> (i32, i32, i32) {
    %c0_i32 = arith.constant 0 : i32
    %c0_i32_0 = arith.constant 0 : i32
    %c0_i32_1 = arith.constant 0 : i32
    %c0_i32_2 = arith.constant 0 : i32
    return %c0_i32, %c0_i32_0, %c0_i32_1 : i32, i32, i32
  }
  func.func @transform_4(%arg0: i32) -> (i32, i32, i32, i32) {
    %c0_i32 = arith.constant 0 : i32
    %c0_i32_0 = arith.constant 0 : i32
    %c0_i32_1 = arith.constant 0 : i32
    %c0_i32_2 = arith.constant 0 : i32
    %c0_i32_3 = arith.constant 0 : i32
    return %c0_i32, %c0_i32_0, %c0_i32_1, %c0_i32_2 : i32, i32, i32, i32
  }
  func.func @transform_5(%arg0: i32) -> (i32, i32, i32) {
    %c0_i32 = arith.constant 0 : i32
    %c0_i32_0 = arith.constant 0 : i32
    %c0_i32_1 = arith.constant 0 : i32
    %c0_i32_2 = arith.constant 0 : i32
    return %c0_i32, %c0_i32_0, %c0_i32_1 : i32, i32, i32
  }
  func.func @transform_6(%arg0: i32) -> (i32, i32, i32) {
    %c0_i32 = arith.constant 0 : i32
    %c0_i32_0 = arith.constant 0 : i32
    %c0_i32_1 = arith.constant 0 : i32
    %c0_i32_2 = arith.constant 0 : i32
    return %c0_i32, %c0_i32_0, %c0_i32_1 : i32, i32, i32
  }
  func.func @transform_7(%arg0: i32) -> (i32, i32, i32) {
    %c0_i32 = arith.constant 0 : i32
    %c0_i32_0 = arith.constant 0 : i32
    %c0_i32_1 = arith.constant 0 : i32
    %c0_i32_2 = arith.constant 0 : i32
    return %c0_i32, %c0_i32_0, %c0_i32_1 : i32, i32, i32
  }
  func.func @transform_8(%arg0: i32) -> (i32, i32) {
    %c0_i32 = arith.constant 0 : i32
    %c0_i32_0 = arith.constant 0 : i32
    %c0_i32_1 = arith.constant 0 : i32
    return %c0_i32, %c0_i32_0 : i32, i32
  }
  func.func @transform_9(%arg0: i32) -> (i32, i32) {
    %c0_i32 = arith.constant 0 : i32
    %c0_i32_0 = arith.constant 0 : i32
    %c0_i32_1 = arith.constant 0 : i32
    return %c0_i32, %c0_i32_0 : i32, i32
  }
  func.func @transform_10(%arg0: i32) -> (i32, i32) {
    %c0_i32 = arith.constant 0 : i32
    %c0_i32_0 = arith.constant 0 : i32
    return %arg0, %c0_i32 : i32, i32
  }
}

</mosaic_0001>

<llo_original>
// kernel: tpu_custom_call.1
$region0: #{tpu_custom_call.1}
  #allocation0 [shape = 'u32[]', space=smem, size = 0x4, offset = 0x4, fixed_abs, tag = 'smem constant byte address 0x4 - core index']
  #allocation1 [shape = 'u32[144,128]{1,0:T(1,128)}', space=vmem, size = 0x12000, scoped, tag = 'internal scratch']
  #allocation2 [shape = 'f32[2,8,8,128]{3,2,1,0:T(8,128)}', space=vmem, size = 0x10000, scoped, tag = 'scratch operand']
  #allocation3 [shape = 'f32[8,8,32]{2,1,0:T(8,128)}', space=vmem, size = 0x8000, scoped, tag = 'scratch operand']
  #allocation4 [shape = 'f32[8,8,32]{2,1,0:T(8,128)}', space=vmem, size = 0x8000, scoped, tag = 'scratch operand']
  %s0 = inlined_call_operand.hbm [shape: f32[8,8,16], index: 0, kind: input, shape index: {}]
  %s1 = inlined_call_operand.hbm [shape: f32[2,16,128], index: 1, kind: input, shape index: {}]
  %s2 = inlined_call_operand.hbm [shape: f32[2,32,128], index: 2, kind: input, shape index: {}]
  %s3 = inlined_call_operand.vmem [shape: f32[2,1,128], index: 3, kind: input, shape index: {}]
  %s4 = inlined_call_operand.hbm [shape: f32[2,2,32,128], index: 4, kind: input, shape index: {}]
  %s5 = inlined_call_operand.hbm [shape: f32[2,32,96], index: 5, kind: input, shape index: {}]
  %s6 = inlined_call_operand.vmem [shape: f32[2,1,128], index: 6, kind: input, shape index: {}]
  %s7 = inlined_call_operand.vmem [shape: f32[2,1,32], index: 7, kind: input, shape index: {}]
  %s8 = inlined_call_operand.hbm [shape: f32[128,128], index: 8, kind: input, shape index: {}]
  %s9 = inlined_call_operand.vmem [shape: f32[1,128], index: 9, kind: input, shape index: {}]
  %s10 = inlined_call_operand.hbm [shape: f32[8,128], index: 10, kind: output, shape index: {}]
  %s11 = sld [smem:[#allocation0]]
  $region74: #{tpu_custom_call.1} parent=0
    _
  %s13 = ssub.s32 1, %s11
  %s14 = scalar_select 0, %s13, %s11
  $region1: #{tpu_custom_call.1} parent=0
    #allocation5 [shape = 'u8[32768]{0}', space=vmem, size = 0x8000, scoped, tag = 'input window, operand 0, single buffered']
    #allocation6 [shape = 's32[1]{0}', space=sflag, size = 0x4, scoped, tag = 'scoped memory for tpu_custom_call.1']
    #allocation7 [shape = 's32[1]{0}', space=sflag, size = 0x4, scoped, tag = 'scoped memory for tpu_custom_call.1']
    #allocation8 [shape = 'u8[16384]{0}', space=vmem, size = 0x4000, scoped, tag = 'input window, operand 1, single buffered']
    #allocation9 [shape = 's32[1]{0}', space=sflag, size = 0x4, scoped, tag = 'scoped memory for tpu_custom_call.1']
    #allocation10 [shape = 'u8[32768]{0}', space=vmem, size = 0x8000, scoped, tag = 'input window, operand 2, single buffered']
    #allocation11 [shape = 'u8[65536]{0}', space=vmem, size = 0x10000, scoped, tag = 'input window, operand 4, single buffered']
    #allocation12 [shape = 's32[1]{0}', space=sflag, size = 0x4, scoped, tag = 'scoped memory for tpu_custom_call.1']
    #allocation13 [shape = 'u8[32768]{0}', space=vmem, size = 0x8000, scoped, tag = 'input window, operand 5, single buffered']
    #allocation14 [shape = 'u8[65536]{0}', space=vmem, size = 0x10000, scoped, tag = 'input window, operand 8, single buffered']
    #allocation15 [shape = 's32[1]{0}', space=sflag, size = 0x4, scoped, tag = 'scoped memory for tpu_custom_call.1']
    #allocation16 [shape = 'u8[4096]{0}', space=vmem, size = 0x1000, scoped, tag = 'output window, operand 0, single buffered']
    %15 = vsyncpa [#allocation6], 0
    %16 = vsyncpa [#allocation9], 0
    %17 = vsyncpa [#allocation12], 0
    %18 = vsyncpa [#allocation15], 0
    %19 = vsyncpa [#allocation7], 0
    // Predicated region
    $region2: #{tpu_custom_call.1} parent=1 // pred_check
      _
    $region3: #{tpu_custom_call.1} parent=1 // pred_check_branch
      %21 = sbr.rel (0) target = $region5
    $region4: #{tpu_custom_call.1} parent=1 // pred_region
      %s23 = ssub.s32 1024, 1024
      %24 = vsyncadd [#allocation6], %s23
      %s25 = sshll.u32 [#allocation5], 4
      %s26 = int_to_ptr.vmem [resolvable:$true] %s25
      %31 = dma.hbm_to_vmem [thread:$0]  %s0, 1024, %s26, [#allocation6], 128, 128, 8
    $region5: #{tpu_custom_call.1} parent=1 // pred_fallthru
      _
    // Predicated region
    $region6: #{tpu_custom_call.1} parent=1 // pred_check
      _
    $region7: #{tpu_custom_call.1} parent=1 // pred_check_branch
      %33 = sbr.rel (0) target = $region9
    $region8: #{tpu_custom_call.1} parent=1 // pred_region
      %s35 = ssub.s32 512, 512
      %36 = vsyncadd [#allocation9], %s35
      %s37 = sshll.u32 [#allocation8], 4
      %s38 = int_to_ptr.vmem [resolvable:$true] %s37
      %43 = dma.hbm_to_vmem [thread:$0]  %s1, 512, %s38, [#allocation9], 128, 128, 8
    $region9: #{tpu_custom_call.1} parent=1 // pred_fallthru
      _
    // Predicated region
    $region10: #{tpu_custom_call.1} parent=1 // pred_check
      _
    $region11: #{tpu_custom_call.1} parent=1 // pred_check_branch
      %45 = sbr.rel (0) target = $region13
    $region12: #{tpu_custom_call.1} parent=1 // pred_region
      %s47 = ssub.s32 1024, 1024
      %48 = vsyncadd [#allocation9], %s47
      %s49 = sshll.u32 [#allocation10], 4
      %s50 = int_to_ptr.vmem [resolvable:$true] %s49
      %55 = dma.hbm_to_vmem [thread:$0]  %s2, 1024, %s50, [#allocation9], 128, 128, 8
    $region13: #{tpu_custom_call.1} parent=1 // pred_fallthru
      _
    // Predicated region
    $region14: #{tpu_custom_call.1} parent=1 // pred_check
      _
    $region15: #{tpu_custom_call.1} parent=1 // pred_check_branch
      %57 = sbr.rel (0) target = $region17
    $region16: #{tpu_custom_call.1} parent=1 // pred_region
      _
    $region17: #{tpu_custom_call.1} parent=1 // pred_fallthru
      _
    // Predicated region
    $region18: #{tpu_custom_call.1} parent=1 // pred_check
      _
    $region19: #{tpu_custom_call.1} parent=1 // pred_check_branch
      %59 = sbr.rel (0) target = $region21
    $region20: #{tpu_custom_call.1} parent=1 // pred_region
      %s61 = ssub.s32 2048, 2048
      %62 = vsyncadd [#allocation12], %s61
      %s63 = sshll.u32 [#allocation11], 4
      %s64 = int_to_ptr.vmem [resolvable:$true] %s63
      %69 = dma.hbm_to_vmem [thread:$0]  %s4, 2048, %s64, [#allocation12], 128, 128, 8
    $region21: #{tpu_custom_call.1} parent=1 // pred_fallthru
      _
    // Predicated region
    $region22: #{tpu_custom_call.1} parent=1 // pred_check
      _
    $region23: #{tpu_custom_call.1} parent=1 // pred_check_branch
      %71 = sbr.rel (0) target = $region25
    $region24: #{tpu_custom_call.1} parent=1 // pred_region
      %s73 = ssub.s32 1024, 1024
      %74 = vsyncadd [#allocation12], %s73
      %s75 = sshll.u32 [#allocation13], 4
      %s76 = int_to_ptr.vmem [resolvable:$true] %s75
      %81 = dma.hbm_to_vmem [thread:$0]  %s5, 1024, %s76, [#allocation12], 128, 128, 8
    $region25: #{tpu_custom_call.1} parent=1 // pred_fallthru
      _
    // Predicated region
    $region26: #{tpu_custom_call.1} parent=1 // pred_check
      _
    $region27: #{tpu_custom_call.1} parent=1 // pred_check_branch
      %83 = sbr.rel (0) target = $region29
    $region28: #{tpu_custom_call.1} parent=1 // pred_region
      _
    $region29: #{tpu_custom_call.1} parent=1 // pred_fallthru
      _
    // Predicated region
    $region30: #{tpu_custom_call.1} parent=1 // pred_check
      _
    $region31: #{tpu_custom_call.1} parent=1 // pred_check_branch
      %85 = sbr.rel (0) target = $region33
    $region32: #{tpu_custom_call.1} parent=1 // pred_region
      _
    $region33: #{tpu_custom_call.1} parent=1 // pred_fallthru
      _
    // Predicated region
    $region34: #{tpu_custom_call.1} parent=1 // pred_check
      _
    $region35: #{tpu_custom_call.1} parent=1 // pred_check_branch
      %87 = sbr.rel (0) target = $region37
    $region36: #{tpu_custom_call.1} parent=1 // pred_region
      %s89 = ssub.s32 2048, 2048
      %90 = vsyncadd [#allocation15], %s89
      %s91 = sshll.u32 [#allocation14], 4
      %s92 = int_to_ptr.vmem [resolvable:$true] %s91
      %97 = dma.hbm_to_vmem [thread:$0]  %s8, 2048, %s92, [#allocation15], 128, 128, 8
    $region37: #{tpu_custom_call.1} parent=1 // pred_fallthru
      _
    // Predicated region
    $region38: #{tpu_custom_call.1} parent=1 // pred_check
      _
    $region39: #{tpu_custom_call.1} parent=1 // pred_check_branch
      %99 = sbr.rel (0) target = $region41
    $region40: #{tpu_custom_call.1} parent=1 // pred_region
      _
    $region41: #{tpu_custom_call.1} parent=1 // pred_fallthru
      _
    // Predicated region
    $region42: #{tpu_custom_call.1} parent=1 // pred_check
      _
    $region43: #{tpu_custom_call.1} parent=1 // pred_check_branch
      %101 = sbr.rel (0) target = $region45
    $region44: #{tpu_custom_call.1} parent=1 // pred_region
      %102 = dma.done [#allocation6], 1024
    $region45: #{tpu_custom_call.1} parent=1 // pred_fallthru
      _
    // Predicated region
    $region46: #{tpu_custom_call.1} parent=1 // pred_check
      _
    $region47: #{tpu_custom_call.1} parent=1 // pred_check_branch
      %104 = sbr.rel (0) target = $region49
    $region48: #{tpu_custom_call.1} parent=1 // pred_region
      %105 = dma.done [#allocation9], 512
    $region49: #{tpu_custom_call.1} parent=1 // pred_fallthru
      _
    // Predicated region
    $region50: #{tpu_custom_call.1} parent=1 // pred_check
      _
    $region51: #{tpu_custom_call.1} parent=1 // pred_check_branch
      %107 = sbr.rel (0) target = $region53
    $region52: #{tpu_custom_call.1} parent=1 // pred_region
      %108 = dma.done [#allocation9], 1024
    $region53: #{tpu_custom_call.1} parent=1 // pred_fallthru
      _
    // Predicated region
    $region54: #{tpu_custom_call.1} parent=1 // pred_check
      _
    $region55: #{tpu_custom_call.1} parent=1 // pred_check_branch
      %110 = sbr.rel (0) target = $region57
    $region56: #{tpu_custom_call.1} parent=1 // pred_region
      %111 = dma.done [#allocation12], 2048
    $region57: #{tpu_custom_call.1} parent=1 // pred_fallthru
      _
    // Predicated region
    $region58: #{tpu_custom_call.1} parent=1 // pred_check
      _
    $region59: #{tpu_custom_call.1} parent=1 // pred_check_branch
      %113 = sbr.rel (0) target = $region61
    $region60: #{tpu_custom_call.1} parent=1 // pred_region
      %114 = dma.done [#allocation12], 1024
    $region61: #{tpu_custom_call.1} parent=1 // pred_fallthru
      _
    // Predicated region
    $region62: #{tpu_custom_call.1} parent=1 // pred_check
      _
    $region63: #{tpu_custom_call.1} parent=1 // pred_check_branch
      %116 = sbr.rel (0) target = $region65
    $region64: #{tpu_custom_call.1} parent=1 // pred_region
      %117 = dma.done [#allocation15], 2048
    $region65: #{tpu_custom_call.1} parent=1 // pred_fallthru
      _
    %v118 = vld [vmem:[#allocation5] sm:$0xff]
    %v119 = vld [vmem:[#allocation5 + $0x8] sm:$0xff]
    %v120 = vld [vmem:[#allocation5 + $0x10] sm:$0xff]
    %v121 = vld [vmem:[#allocation5 + $0x18] sm:$0xff]
    %v122 = vld [vmem:[#allocation5 + $0x20] sm:$0xff]
    %v123 = vld [vmem:[#allocation5 + $0x28] sm:$0xff]
    %v124 = vld [vmem:[#allocation5 + $0x30] sm:$0xff]
    %v125 = vld [vmem:[#allocation5 + $0x38] sm:$0xff]
    %v126 = vld [vmem:[#allocation8] sm:$0xff]
    %v127 = vld [vmem:[#allocation8 + $0x8] sm:$0xff]
    %v128 = vld [vmem:[%s3] sm:$0x1]
    %v130 = vlaneseq
    %v131 = vshrl.u32 %v130, 7
    %v132 = vsub.s32 0, %v131
    %v133 = vrot.slane %v128, %v132
    %vm135 = vcmask 130048
    %v137 = vsel %vm135, %v118, 0
    %v140 = vsel %vm135, %v119, 0
    %v143 = vsel %vm135, %v120, 0
    %v146 = vsel %vm135, %v121, 0
    %v149 = vsel %vm135, %v122, 0
    %v152 = vsel %vm135, %v123, 0
    %v155 = vsel %vm135, %v124, 0
    %v158 = vsel %vm135, %v125, 0
    %160 = vmatprep.subr.mxu0 0.0
    %161 = vmatpush1.msra.mxu0 %v126
    %162 = vmatprep.subr.mxu0 0.0
    %163 = vmatpush1.msra.mxu0 %v127
    %164 = vmatprep.subr.mxu0 0.0
    %165 = vmatpush1.msra.mxu0 0.0
    %166 = vmatprep.subr.mxu0 0.0
    %167 = vmatpush1.msra.mxu0 0.0
    %168 = vmatprep.subr.mxu0 0.0
    %169 = vmatpush1.msra.mxu0 0.0
    %170 = vmatprep.subr.mxu0 0.0
    %171 = vmatpush1.msra.mxu0 0.0
    %172 = vmatprep.subr.mxu0 0.0
    %173 = vmatpush1.msra.mxu0 0.0
    %174 = vmatprep.subr.mxu0 0.0
    %175 = vmatpush1.msra.mxu0 0.0
    %176 = vmatprep.subr.mxu0 0.0
    %177 = vmatpush1.msra.mxu0 0.0
    %178 = vmatprep.subr.mxu0 0.0
    %179 = vmatpush1.msra.mxu0 0.0
    %180 = vmatprep.subr.mxu0 0.0
    %181 = vmatpush1.msra.mxu0 0.0
    %182 = vmatprep.subr.mxu0 0.0
    %183 = vmatpush1.msra.mxu0 0.0
    %184 = vmatprep.subr.mxu0 0.0
    %185 = vmatpush1.msra.mxu0 0.0
    %186 = vmatprep.subr.mxu0 0.0
    %187 = vmatpush1.msra.mxu0 0.0
    %188 = vmatprep.subr.mxu0 0.0
    %189 = vmatpush1.msra.mxu0 0.0
    %190 = vmatprep.subr.mxu0 0.0
    %191 = vmatpush1.msra.mxu0 0.0
    %192 = vmatprep.subr.mxu0 0.0
    %193 = vmatpush1.msra.mxu0 0.0
    %194 = vmatprep.subr.mxu0 0.0
    %195 = vmatpush1.msra.mxu0 0.0
    %196 = vmatprep.subr.mxu0 0.0
    %197 = vmatpush1.msra.mxu0 0.0
    %198 = vmatprep.subr.mxu0 0.0
    %199 = vmatpush1.msra.mxu0 0.0
    %200 = vmatprep.subr.mxu0 0.0
    %201 = vmatpush1.msra.mxu0 0.0
    %202 = vmatprep.subr.mxu0 0.0
    %203 = vmatpush1.msra.mxu0 0.0
    %204 = vmatprep.subr.mxu0 0.0
    %205 = vmatpush1.msra.mxu0 0.0
    %206 = vmatprep.subr.mxu0 0.0
    %207 = vmatpush1.msra.mxu0 0.0
    %208 = vmatprep.subr.mxu0 0.0
    %209 = vmatpush1.msra.mxu0 0.0
    %210 = vmatprep.subr.mxu0 0.0
    %211 = vmatpush1.msra.mxu0 0.0
    %212 = vmatprep.subr.mxu0 0.0
    %213 = vmatpush1.msra.mxu0 0.0
    %214 = vmatprep.subr.mxu0 0.0
    %215 = vmatpush1.msra.mxu0 0.0
    %216 = vmatprep.subr.mxu0 0.0
    %217 = vmatpush1.msra.mxu0 0.0
    %218 = vmatprep.subr.mxu0 0.0
    %219 = vmatpush1.msra.mxu0 0.0
    %220 = vmatprep.subr.mxu0 0.0
    %221 = vmatpush1.msra.mxu0 0.0
    %222 = vmatprep.subr.mxu0 0.0
    %223 = vmatpush1.msra.mxu0 0.0
    %224 = vmatprep.mubr.f32.mxu0 0.0
    %225 = vmatmul.mubr.f32.gmra.mrb[0].mxu0 %v137
    %v226 = vpop.f32.mrb[0].mxu0
    %v227 = vadd.f32 %v133, %v226
    %v228 = vpop.f32.mrb[0].mxu0
    %229 = vmatprep.mubr.f32.mxu0 0.0
    %230 = vmatmul.mubr.f32.gmra.mrb[0].mxu0 %v140
    %v231 = vpop.f32.mrb[0].mxu0
    %v232 = vadd.f32 %v133, %v231
    %v233 = vpop.f32.mrb[0].mxu0
    %234 = vmatprep.mubr.f32.mxu0 0.0
    %235 = vmatmul.mubr.f32.gmra.mrb[0].mxu0 %v143
    %v236 = vpop.f32.mrb[0].mxu0
    %v237 = vadd.f32 %v133, %v236
    %v238 = vpop.f32.mrb[0].mxu0
    %239 = vmatprep.mubr.f32.mxu0 0.0
    %240 = vmatmul.mubr.f32.gmra.mrb[0].mxu0 %v146
    %v241 = vpop.f32.mrb[0].mxu0
    %v242 = vadd.f32 %v133, %v241
    %v243 = vpop.f32.mrb[0].mxu0
    %244 = vmatprep.mubr.f32.mxu0 0.0
    %245 = vmatmul.mubr.f32.gmra.mrb[0].mxu0 %v149
    %v246 = vpop.f32.mrb[0].mxu0
    %v247 = vadd.f32 %v133, %v246
    %v248 = vpop.f32.mrb[0].mxu0
    %249 = vmatprep.mubr.f32.mxu0 0.0
    %250 = vmatmul.mubr.f32.gmra.mrb[0].mxu0 %v152
    %v251 = vpop.f32.mrb[0].mxu0
    %v252 = vadd.f32 %v133, %v251
    %v253 = vpop.f32.mrb[0].mxu0
    %254 = vmatprep.mubr.f32.mxu0 0.0
    %255 = vmatmul.mubr.f32.gmra.mrb[0].mxu0 %v155
    %v256 = vpop.f32.mrb[0].mxu0
    %v257 = vadd.f32 %v133, %v256
    %v258 = vpop.f32.mrb[0].mxu0
    %259 = vmatprep.mubr.f32.mxu0 0.0
    %260 = vmatmul.mubr.f32.gmra.mrb[0].mxu0 %v158
    %v261 = vpop.f32.mrb[0].mxu0
    %v262 = vadd.f32 %v133, %v261
    %v263 = vpop.f32.mrb[0].mxu0
    %264 = vdwg.mxu0
    %265 = vst [vmem:[#allocation2] sm:$0xff] %v227
    %266 = vst [vmem:[#allocation2 + $0x8] sm:$0xff] %v232
    %267 = vst [vmem:[#allocation2 + $0x10] sm:$0xff] %v237
    %268 = vst [vmem:[#allocation2 + $0x18] sm:$0xff] %v242
    %269 = vst [vmem:[#allocation2 + $0x20] sm:$0xff] %v247
    %270 = vst [vmem:[#allocation2 + $0x28] sm:$0xff] %v252
    %271 = vst [vmem:[#allocation2 + $0x30] sm:$0xff] %v257
    %272 = vst [vmem:[#allocation2 + $0x38] sm:$0xff] %v262
    %s273 = scalar_lea.vmem [#allocation8], 16
    %v274 = vld [vmem:[%s273] sm:$0xff]
    %v275 = vld [vmem:[%s273 + $0x8] sm:$0xff]
    %s276 = scalar_lea.vmem %s3, 1
    %v277 = vld [vmem:[%s276] sm:$0x1]
    %v279 = vlaneseq
    %v280 = vshrl.u32 %v279, 7
    %v281 = vsub.s32 0, %v280
    %v282 = vrot.slane %v277, %v281
    %284 = vmatprep.subr.mxu0 0.0
    %285 = vmatpush1.msra.mxu0 %v274
    %286 = vmatprep.subr.mxu0 0.0
    %287 = vmatpush1.msra.mxu0 %v275
    %288 = vmatprep.subr.mxu0 0.0
    %289 = vmatpush1.msra.mxu0 0.0
    %290 = vmatprep.subr.mxu0 0.0
    %291 = vmatpush1.msra.mxu0 0.0
    %292 = vmatprep.subr.mxu0 0.0
    %293 = vmatpush1.msra.mxu0 0.0
    %294 = vmatprep.subr.mxu0 0.0
    %295 = vmatpush1.msra.mxu0 0.0
    %296 = vmatprep.subr.mxu0 0.0
    %297 = vmatpush1.msra.mxu0 0.0
    %298 = vmatprep.subr.mxu0 0.0
    %299 = vmatpush1.msra.mxu0 0.0
    %300 = vmatprep.subr.mxu0 0.0
    %301 = vmatpush1.msra.mxu0 0.0
    %302 = vmatprep.subr.mxu0 0.0
    %303 = vmatpush1.msra.mxu0 0.0
    %304 = vmatprep.subr.mxu0 0.0
    %305 = vmatpush1.msra.mxu0 0.0
    %306 = vmatprep.subr.mxu0 0.0
    %307 = vmatpush1.msra.mxu0 0.0
    %308 = vmatprep.subr.mxu0 0.0
    %309 = vmatpush1.msra.mxu0 0.0
    %310 = vmatprep.subr.mxu0 0.0
    %311 = vmatpush1.msra.mxu0 0.0
    %312 = vmatprep.subr.mxu0 0.0
    %313 = vmatpush1.msra.mxu0 0.0
    %314 = vmatprep.subr.mxu0 0.0
    %315 = vmatpush1.msra.mxu0 0.0
    %316 = vmatprep.subr.mxu0 0.0
    %317 = vmatpush1.msra.mxu0 0.0
    %318 = vmatprep.subr.mxu0 0.0
    %319 = vmatpush1.msra.mxu0 0.0
    %320 = vmatprep.subr.mxu0 0.0
    %321 = vmatpush1.msra.mxu0 0.0
    %322 = vmatprep.subr.mxu0 0.0
    %323 = vmatpush1.msra.mxu0 0.0
    %324 = vmatprep.subr.mxu0 0.0
    %325 = vmatpush1.msra.mxu0 0.0
    %326 = vmatprep.subr.mxu0 0.0
    %327 = vmatpush1.msra.mxu0 0.0
    %328 = vmatprep.subr.mxu0 0.0
    %329 = vmatpush1.msra.mxu0 0.0
    %330 = vmatprep.subr.mxu0 0.0
    %331 = vmatpush1.msra.mxu0 0.0
    %332 = vmatprep.subr.mxu0 0.0
    %333 = vmatpush1.msra.mxu0 0.0
    %334 = vmatprep.subr.mxu0 0.0
    %335 = vmatpush1.msra.mxu0 0.0
    %336 = vmatprep.subr.mxu0 0.0
    %337 = vmatpush1.msra.mxu0 0.0
    %338 = vmatprep.subr.mxu0 0.0
    %339 = vmatpush1.msra.mxu0 0.0
    %340 = vmatprep.subr.mxu0 0.0
    %341 = vmatpush1.msra.mxu0 0.0
    %342 = vmatprep.subr.mxu0 0.0
    %343 = vmatpush1.msra.mxu0 0.0
    %344 = vmatprep.subr.mxu0 0.0
    %345 = vmatpush1.msra.mxu0 0.0
    %346 = vmatprep.subr.mxu0 0.0
    %347 = vmatpush1.msra.mxu0 0.0
    %348 = vmatprep.mubr.f32.mxu0 0.0
    %349 = vmatmul.mubr.f32.gmra.mrb[0].mxu0 %v137
    %v350 = vpop.f32.mrb[0].mxu0
    %v351 = vadd.f32 %v282, %v350
    %v352 = vpop.f32.mrb[0].mxu0
    %353 = vmatprep.mubr.f32.mxu0 0.0
    %354 = vmatmul.mubr.f32.gmra.mrb[0].mxu0 %v140
    %v355 = vpop.f32.mrb[0].mxu0
    %v356 = vadd.f32 %v282, %v355
    %v357 = vpop.f32.mrb[0].mxu0
    %358 = vmatprep.mubr.f32.mxu0 0.0
    %359 = vmatmul.mubr.f32.gmra.mrb[0].mxu0 %v143
    %v360 = vpop.f32.mrb[0].mxu0
    %v361 = vadd.f32 %v282, %v360
    %v362 = vpop.f32.mrb[0].mxu0
    %363 = vmatprep.mubr.f32.mxu0 0.0
    %364 = vmatmul.mubr.f32.gmra.mrb[0].mxu0 %v146
    %v365 = vpop.f32.mrb[0].mxu0
    %v366 = vadd.f32 %v282, %v365
    %v367 = vpop.f32.mrb[0].mxu0
    %368 = vmatprep.mubr.f32.mxu0 0.0
    %369 = vmatmul.mubr.f32.gmra.mrb[0].mxu0 %v149
    %v370 = vpop.f32.mrb[0].mxu0
    %v371 = vadd.f32 %v282, %v370
    %v372 = vpop.f32.mrb[0].mxu0
    %373 = vmatprep.mubr.f32.mxu0 0.0
    %374 = vmatmul.mubr.f32.gmra.mrb[0].mxu0 %v152
    %v375 = vpop.f32.mrb[0].mxu0
    %v376 = vadd.f32 %v282, %v375
    %v377 = vpop.f32.mrb[0].mxu0
    %378 = vmatprep.mubr.f32.mxu0 0.0
    %379 = vmatmul.mubr.f32.gmra.mrb[0].mxu0 %v155
    %v380 = vpop.f32.mrb[0].mxu0
    %v381 = vadd.f32 %v282, %v380
    %v382 = vpop.f32.mrb[0].mxu0
    %383 = vmatprep.mubr.f32.mxu0 0.0
    %384 = vmatmul.mubr.f32.gmra.mrb[0].mxu0 %v158
    %v385 = vpop.f32.mrb[0].mxu0
    %v386 = vadd.f32 %v282, %v385
    %v387 = vpop.f32.mrb[0].mxu0
    %388 = vdwg.mxu0
    %s389 = scalar_lea.vmem [#allocation2], 64
    %390 = vst [vmem:[%s389] sm:$0xff] %v351
    %391 = vst [vmem:[%s389 + $0x8] sm:$0xff] %v356
    %392 = vst [vmem:[%s389 + $0x10] sm:$0xff] %v361
    %393 = vst [vmem:[%s389 + $0x18] sm:$0xff] %v366
    %394 = vst [vmem:[%s389 + $0x20] sm:$0xff] %v371
    %395 = vst [vmem:[%s389 + $0x28] sm:$0xff] %v376
    %396 = vst [vmem:[%s389 + $0x30] sm:$0xff] %v381
    %397 = vst [vmem:[%s389 + $0x38] sm:$0xff] %v386
    %v398 = vld [vmem:[#allocation10] sm:$0xff]
    %v399 = vld [vmem:[#allocation10 + $0x8] sm:$0xff]
    %v400 = vld [vmem:[#allocation10 + $0x10] sm:$0xff]
    %v401 = vld [vmem:[#allocation10 + $0x18] sm:$0xff]
    %s402 = scalar_lea.vmem [#allocation10], 32
    %v403 = vld [vmem:[%s402] sm:$0xff]
    %v404 = vld [vmem:[%s402 + $0x8] sm:$0xff]
    %v405 = vld [vmem:[%s402 + $0x10] sm:$0xff]
    %v406 = vld [vmem:[%s402 + $0x18] sm:$0xff]
    %v407 = vld [vmem:[#allocation2] sm:$0xff]
    %vm408 = vcmask 261120
    %v410 = vsel %vm408, 0.0, 0
    %412 = vmatprep.subr.mxu0 0.0
    %413 = vmatpush1.msra.mxu0 %v398
    %414 = vmatprep.subr.mxu0 0.0
    %415 = vmatpush1.msra.mxu0 %v399
    %416 = vmatprep.subr.mxu0 0.0
    %417 = vmatpush1.msra.mxu0 %v400
    %418 = vmatprep.subr.mxu0 0.0
    %419 = vmatpush1.msra.mxu0 %v401
    %420 = vmatprep.subr.mxu0 0.0
    %421 = vmatpush1.msra.mxu0 0.0
    %422 = vmatprep.subr.mxu0 0.0
    %423 = vmatpush1.msra.mxu0 0.0
    %424 = vmatprep.subr.mxu0 0.0
    %425 = vmatpush1.msra.mxu0 0.0
    %426 = vmatprep.subr.mxu0 0.0
    %427 = vmatpush1.msra.mxu0 0.0
    %428 = vmatprep.subr.mxu0 0.0
    %429 = vmatpush1.msra.mxu0 0.0
    %430 = vmatprep.subr.mxu0 0.0
    %431 = vmatpush1.msra.mxu0 0.0
    %432 = vmatprep.subr.mxu0 0.0
    %433 = vmatpush1.msra.mxu0 0.0
    %434 = vmatprep.subr.mxu0 0.0
    %435 = vmatpush1.msra.mxu0 0.0
    %436 = vmatprep.subr.mxu0 0.0
    %437 = vmatpush1.msra.mxu0 0.0
    %438 = vmatprep.subr.mxu0 0.0
    %439 = vmatpush1.msra.mxu0 0.0
    %440 = vmatprep.subr.mxu0 0.0
    %441 = vmatpush1.msra.mxu0 0.0
    %442 = vmatprep.subr.mxu0 0.0
    %443 = vmatpush1.msra.mxu0 0.0
    %444 = vmatprep.subr.mxu0 0.0
    %445 = vmatpush1.msra.mxu0 0.0
    %446 = vmatprep.subr.mxu0 0.0
    %447 = vmatpush1.msra.mxu0 0.0
    %448 = vmatprep.subr.mxu0 0.0
    %449 = vmatpush1.msra.mxu0 0.0
    %450 = vmatprep.subr.mxu0 0.0
    %451 = vmatpush1.msra.mxu0 0.0
    %452 = vmatprep.subr.mxu0 0.0
    %453 = vmatpush1.msra.mxu0 0.0
    %454 = vmatprep.subr.mxu0 0.0
    %455 = vmatpush1.msra.mxu0 0.0
    %456 = vmatprep.subr.mxu0 0.0
    %457 = vmatpush1.msra.mxu0 0.0
    %458 = vmatprep.subr.mxu0 0.0
    %459 = vmatpush1.msra.mxu0 0.0
    %460 = vmatprep.subr.mxu0 0.0
    %461 = vmatpush1.msra.mxu0 0.0
    %462 = vmatprep.subr.mxu0 0.0
    %463 = vmatpush1.msra.mxu0 0.0
    %464 = vmatprep.subr.mxu0 0.0
    %465 = vmatpush1.msra.mxu0 0.0
    %466 = vmatprep.subr.mxu0 0.0
    %467 = vmatpush1.msra.mxu0 0.0
    %468 = vmatprep.subr.mxu0 0.0
    %469 = vmatpush1.msra.mxu0 0.0
    %470 = vmatprep.subr.mxu0 0.0
    %471 = vmatpush1.msra.mxu0 0.0
    %472 = vmatprep.subr.mxu0 0.0
    %473 = vmatpush1.msra.mxu0 0.0
    %474 = vmatprep.subr.mxu0 0.0
    %475 = vmatpush1.msra.mxu0 0.0
    %476 = vmatprep.mubr.f32.mxu0 0.0
    %477 = vmatmul.mubr.f32.gmra.mrb[0].mxu0 %v410
    %v478 = vpop.f32.mrb[0].mxu0
    %v479 = vadd.f32 0.0, %v478
    %v480 = vpop.f32.mrb[0].mxu0
    %481 = vdwg.mxu0
    %v482 = vadd.f32 %v407, %v479
    %s483 = scalar_lea.vmem [#allocation2], 120
    %v484 = vld [vmem:[%s483] sm:$0xff]
    %485 = vmatprep.subr.mxu0 0.0
    %486 = vmatpush1.msra.mxu0 %v403
    %487 = vmatprep.subr.mxu0 0.0
    %488 = vmatpush1.msra.mxu0 %v404
    %489 = vmatprep.subr.mxu0 0.0
    %490 = vmatpush1.msra.mxu0 %v405
    %491 = vmatprep.subr.mxu0 0.0
    %492 = vmatpush1.msra.mxu0 %v406
    %493 = vmatprep.subr.mxu0 0.0
    %494 = vmatpush1.msra.mxu0 0.0
    %495 = vmatprep.subr.mxu0 0.0
    %496 = vmatpush1.msra.mxu0 0.0
    %497 = vmatprep.subr.mxu0 0.0
    %498 = vmatpush1.msra.mxu0 0.0
    %499 = vmatprep.subr.mxu0 0.0
    %500 = vmatpush1.msra.mxu0 0.0
    %501 = vmatprep.subr.mxu0 0.0
    %502 = vmatpush1.msra.mxu0 0.0
    %503 = vmatprep.subr.mxu0 0.0
    %504 = vmatpush1.msra.mxu0 0.0
    %505 = vmatprep.subr.mxu0 0.0
    %506 = vmatpush1.msra.mxu0 0.0
    %507 = vmatprep.subr.mxu0 0.0
    %508 = vmatpush1.msra.mxu0 0.0
    %509 = vmatprep.subr.mxu0 0.0
    %510 = vmatpush1.msra.mxu0 0.0
    %511 = vmatprep.subr.mxu0 0.0
    %512 = vmatpush1.msra.mxu0 0.0
    %513 = vmatprep.subr.mxu0 0.0
    %514 = vmatpush1.msra.mxu0 0.0
    %515 = vmatprep.subr.mxu0 0.0
    %516 = vmatpush1.msra.mxu0 0.0
    %517 = vmatprep.subr.mxu0 0.0
    %518 = vmatpush1.msra.mxu0 0.0
    %519 = vmatprep.subr.mxu0 0.0
    %520 = vmatpush1.msra.mxu0 0.0
    %521 = vmatprep.subr.mxu0 0.0
    %522 = vmatpush1.msra.mxu0 0.0
    %523 = vmatprep.subr.mxu0 0.0
    %524 = vmatpush1.msra.mxu0 0.0
    %525 = vmatprep.subr.mxu0 0.0
    %526 = vmatpush1.msra.mxu0 0.0
    %527 = vmatprep.subr.mxu0 0.0
    %528 = vmatpush1.msra.mxu0 0.0
    %529 = vmatprep.subr.mxu0 0.0
    %530 = vmatpush1.msra.mxu0 0.0
    %531 = vmatprep.subr.mxu0 0.0
    %532 = vmatpush1.msra.mxu0 0.0
    %533 = vmatprep.subr.mxu0 0.0
    %534 = vmatpush1.msra.mxu0 0.0
    %535 = vmatprep.subr.mxu0 0.0
    %536 = vmatpush1.msra.mxu0 0.0
    %537 = vmatprep.subr.mxu0 0.0
    %538 = vmatpush1.msra.mxu0 0.0
    %539 = vmatprep.subr.mxu0 0.0
    %540 = vmatpush1.msra.mxu0 0.0
    %541 = vmatprep.subr.mxu0 0.0
    %542 = vmatpush1.msra.mxu0 0.0
    %543 = vmatprep.subr.mxu0 0.0
    %544 = vmatpush1.msra.mxu0 0.0
    %545 = vmatprep.subr.mxu0 0.0
    %546 = vmatpush1.msra.mxu0 0.0
    %547 = vmatprep.subr.mxu0 0.0
    %548 = vmatpush1.msra.mxu0 0.0
    %549 = vmatprep.mubr.f32.mxu0 0.0
    %550 = vmatmul.mubr.f32.gmra.mrb[0].mxu0 %v410
    %v551 = vpop.f32.mrb[0].mxu0
    %v552 = vadd.f32 0.0, %v551
    %v553 = vpop.f32.mrb[0].mxu0
    %554 = vdwg.mxu0
    %v555 = vadd.f32 %v484, %v552
    %v556 = vxor.u32 %v482, 2147483648
    %v557 = vmul.f32 %v556, 1.442695
    %v558 = vpow.pop %v557
    %v559 = vadd.f32 %v558, 1.0
    %v560 = vrcp.pop %v559
    %v561 = vmul.f32 1.0, %v560
    %v562 = vxor.u32 %v555, 2147483648
    %v563 = vmul.f32 %v562, 1.442695
    %v564 = vpow.pop %v563
    %v565 = vadd.f32 %v564, 1.0
    %v566 = vrcp.pop %v565
    %v567 = vmul.f32 1.0, %v566
    %v568 = vmul.f32 %v561, 0.0
    %v569 = vtanh.pop %v482
    %571 = vrot.lane.b32.xlu0 %v569, 64
    %v572 = vpop.permute.xlu0 %571
    %v574 = vmul.f32 %v561, %v572
    %576 = vrot.lane.b32.xlu0 %v574, 32
    %v577 = vpop.permute.xlu0 %576
    %v579 = vadd.f32 %v568, %v577
    %v580 = vmul.f32 %v567, 0.0
    %v581 = vtanh.pop %v555
    %583 = vrot.lane.b32.xlu0 %v581, 64
    %v584 = vpop.permute.xlu0 %583
    %v586 = vmul.f32 %v567, %v584
    %588 = vrot.lane.b32.xlu0 %v586, 32
    %v589 = vpop.permute.xlu0 %588
    %v591 = vadd.f32 %v580, %v589
    %v592 = vtanh.pop %v579
    %594 = vrot.lane.b32.xlu0 %v592, 64
    %v595 = vpop.permute.xlu0 %594
    %v597 = vmul.f32 %v561, %v595
    %v598 = vtanh.pop %v591
    %600 = vrot.lane.b32.xlu0 %v598, 64
    %v601 = vpop.permute.xlu0 %600
    %v603 = vmul.f32 %v567, %v601
    %605 = vrot.lane.b32.xlu0 %v597, 32
    %v606 = vpop.permute.xlu0 %605
    %608 = vst.msk [vmem:[#allocation3] sm:$0xff] %vm408, %v606
    %610 = vrot.lane.b32.xlu0 %v603, 32
    %v611 = vpop.permute.xlu0 %610
    %s613 = scalar_lea.vmem [#allocation4], 56
    %614 = vst.msk [vmem:[%s613] sm:$0xff] %vm408, %v611
    %s615 = scalar_lea.vmem [#allocation2], 8
    %v616 = vld [vmem:[%s615] sm:$0xff]
    %v617 = vsel %vm408, %v606, 0
    %619 = vmatprep.subr.mxu0 0.0
    %620 = vmatpush1.msra.mxu0 %v398
    %621 = vmatprep.subr.mxu0 0.0
    %622 = vmatpush1.msra.mxu0 %v399
    %623 = vmatprep.subr.mxu0 0.0
    %624 = vmatpush1.msra.mxu0 %v400
    %625 = vmatprep.subr.mxu0 0.0
    %626 = vmatpush1.msra.mxu0 %v401
    %627 = vmatprep.subr.mxu0 0.0
    %628 = vmatpush1.msra.mxu0 0.0
    %629 = vmatprep.subr.mxu0 0.0
    %630 = vmatpush1.msra.mxu0 0.0
    %631 = vmatprep.subr.mxu0 0.0
    %632 = vmatpush1.msra.mxu0 0.0
    %633 = vmatprep.subr.mxu0 0.0
    %634 = vmatpush1.msra.mxu0 0.0
    %635 = vmatprep.subr.mxu0 0.0
    %636 = vmatpush1.msra.mxu0 0.0
    %637 = vmatprep.subr.mxu0 0.0
    %638 = vmatpush1.msra.mxu0 0.0
    %639 = vmatprep.subr.mxu0 0.0
    %640 = vmatpush1.msra.mxu0 0.0
    %641 = vmatprep.subr.mxu0 0.0
    %642 = vmatpush1.msra.mxu0 0.0
    %643 = vmatprep.subr.mxu0 0.0
    %644 = vmatpush1.msra.mxu0 0.0
    %645 = vmatprep.subr.mxu0 0.0
    %646 = vmatpush1.msra.mxu0 0.0
    %647 = vmatprep.subr.mxu0 0.0
    %648 = vmatpush1.msra.mxu0 0.0
    %649 = vmatprep.subr.mxu0 0.0
    %650 = vmatpush1.msra.mxu0 0.0
    %651 = vmatprep.subr.mxu0 0.0
    %652 = vmatpush1.msra.mxu0 0.0
    %653 = vmatprep.subr.mxu0 0.0
    %654 = vmatpush1.msra.mxu0 0.0
    %655 = vmatprep.subr.mxu0 0.0
    %656 = vmatpush1.msra.mxu0 0.0
    %657 = vmatprep.subr.mxu0 0.0
    %658 = vmatpush1.msra.mxu0 0.0
    %659 = vmatprep.subr.mxu0 0.0
    %660 = vmatpush1.msra.mxu0 0.0
    %661 = vmatprep.subr.mxu0 0.0
    %662 = vmatpush1.msra.mxu0 0.0
    %663 = vmatprep.subr.mxu0 0.0
    %664 = vmatpush1.msra.mxu0 0.0
    %665 = vmatprep.subr.mxu0 0.0
    %666 = vmatpush1.msra.mxu0 0.0
    %667 = vmatprep.subr.mxu0 0.0
    %668 = vmatpush1.msra.mxu0 0.0
    %669 = vmatprep.subr.mxu0 0.0
    %670 = vmatpush1.msra.mxu0 0.0
    %671 = vmatprep.subr.mxu0 0.0
    %672 = vmatpush1.msra.mxu0 0.0
    %673 = vmatprep.subr.mxu0 0.0
    %674 = vmatpush1.msra.mxu0 0.0
    %675 = vmatprep.subr.mxu0 0.0
    %676 = vmatpush1.msra.mxu0 0.0
    %677 = vmatprep.subr.mxu0 0.0
    %678 = vmatpush1.msra.mxu0 0.0
    %679 = vmatprep.subr.mxu0 0.0
    %680 = vmatpush1.msra.mxu0 0.0
    %681 = vmatprep.subr.mxu0 0.0
    %682 = vmatpush1.msra.mxu0 0.0
    %683 = vmatprep.mubr.f32.mxu0 0.0
    %684 = vmatmul.mubr.f32.gmra.mrb[0].mxu0 %v617
    %v685 = vpop.f32.mrb[0].mxu0
    %v686 = vadd.f32 0.0, %v685
    %v687 = vpop.f32.mrb[0].mxu0
    %688 = vdwg.mxu0
    %v689 = vadd.f32 %v616, %v686
    %s690 = scalar_lea.vmem [#allocation2], 112
    %v691 = vld [vmem:[%s690] sm:$0xff]
    %v692 = vsel %vm408, %v611, 0
    %694 = vmatprep.subr.mxu0 0.0
    %695 = vmatpush1.msra.mxu0 %v403
    %696 = vmatprep.subr.mxu0 0.0
    %697 = vmatpush1.msra.mxu0 %v404
    %698 = vmatprep.subr.mxu0 0.0
    %699 = vmatpush1.msra.mxu0 %v405
    %700 = vmatprep.subr.mxu0 0.0
    %701 = vmatpush1.msra.mxu0 %v406
    %702 = vmatprep.subr.mxu0 0.0
    %703 = vmatpush1.msra.mxu0 0.0
    %704 = vmatprep.subr.mxu0 0.0
    %705 = vmatpush1.msra.mxu0 0.0
    %706 = vmatprep.subr.mxu0 0.0
    %707 = vmatpush1.msra.mxu0 0.0
    %708 = vmatprep.subr.mxu0 0.0
    %709 = vmatpush1.msra.mxu0 0.0
    %710 = vmatprep.subr.mxu0 0.0
    %711 = vmatpush1.msra.mxu0 0.0
    %712 = vmatprep.subr.mxu0 0.0
    %713 = vmatpush1.msra.mxu0 0.0
    %714 = vmatprep.subr.mxu0 0.0
    %715 = vmatpush1.msra.mxu0 0.0
    %716 = vmatprep.subr.mxu0 0.0
    %717 = vmatpush1.msra.mxu0 0.0
    %718 = vmatprep.subr.mxu0 0.0
    %719 = vmatpush1.msra.mxu0 0.0
    %720 = vmatprep.subr.mxu0 0.0
    %721 = vmatpush1.msra.mxu0 0.0
    %722 = vmatprep.subr.mxu0 0.0
    %723 = vmatpush1.msra.mxu0 0.0
    %724 = vmatprep.subr.mxu0 0.0
    %725 = vmatpush1.msra.mxu0 0.0
    %726 = vmatprep.subr.mxu0 0.0
    %727 = vmatpush1.msra.mxu0 0.0
    %728 = vmatprep.subr.mxu0 0.0
    %729 = vmatpush1.msra.mxu0 0.0
    %730 = vmatprep.subr.mxu0 0.0
    %731 = vmatpush1.msra.mxu0 0.0
    %732 = vmatprep.subr.mxu0 0.0
    %733 = vmatpush1.msra.mxu0 0.0
    %734 = vmatprep.subr.mxu0 0.0
    %735 = vmatpush1.msra.mxu0 0.0
    %736 = vmatprep.subr.mxu0 0.0
    %737 = vmatpush1.msra.mxu0 0.0
    %738 = vmatprep.subr.mxu0 0.0
    %739 = vmatpush1.msra.mxu0 0.0
    %740 = vmatprep.subr.mxu0 0.0
    %741 = vmatpush1.msra.mxu0 0.0
    %742 = vmatprep.subr.mxu0 0.0
    %743 = vmatpush1.msra.mxu0 0.0
    %744 = vmatprep.subr.mxu0 0.0
    %745 = vmatpush1.msra.mxu0 0.0
    %746 = vmatprep.subr.mxu0 0.0
    %747 = vmatpush1.msra.mxu0 0.0
    %748 = vmatprep.subr.mxu0 0.0
    %749 = vmatpush1.msra.mxu0 0.0
    %750 = vmatprep.subr.mxu0 0.0
    %751 = vmatpush1.msra.mxu0 0.0
    %752 = vmatprep.subr.mxu0 0.0
    %753 = vmatpush1.msra.mxu0 0.0
    %754 = vmatprep.subr.mxu0 0.0
    %755 = vmatpush1.msra.mxu0 0.0
    %756 = vmatprep.subr.mxu0 0.0
    %757 = vmatpush1.msra.mxu0 0.0
    %758 = vmatprep.mubr.f32.mxu0 0.0
    %759 = vmatmul.mubr.f32.gmra.mrb[0].mxu0 %v692
    %v760 = vpop.f32.mrb[0].mxu0
    %v761 = vadd.f32 0.0, %v760
    %v762 = vpop.f32.mrb[0].mxu0
    %763 = vdwg.mxu0
    %v764 = vadd.f32 %v691, %v761
    %v765 = vxor.u32 %v689, 2147483648
    %v766 = vmul.f32 %v765, 1.442695
    %v767 = vpow.pop %v766
    %v768 = vadd.f32 %v767, 1.0
    %v769 = vrcp.pop %v768
    %v770 = vmul.f32 1.0, %v769
    %v771 = vxor.u32 %v764, 2147483648
    %v772 = vmul.f32 %v771, 1.442695
    %v773 = vpow.pop %v772
    %v774 = vadd.f32 %v773, 1.0
    %v775 = vrcp.pop %v774
    %v776 = vmul.f32 1.0, %v775
    %v777 = vmul.f32 %v770, %v579
    %v778 = vtanh.pop %v689
    %780 = vrot.lane.b32.xlu0 %v778, 64
    %v781 = vpop.permute.xlu0 %780
    %v783 = vmul.f32 %v770, %v781
    %785 = vrot.lane.b32.xlu0 %v783, 32
    %v786 = vpop.permute.xlu0 %785
    %v788 = vadd.f32 %v777, %v786
    %v789 = vmul.f32 %v776, %v591
    %v790 = vtanh.pop %v764
    %792 = vrot.lane.b32.xlu0 %v790, 64
    %v793 = vpop.permute.xlu0 %792
    %v795 = vmul.f32 %v776, %v793
    %797 = vrot.lane.b32.xlu0 %v795, 32
    %v798 = vpop.permute.xlu0 %797
    %v800 = vadd.f32 %v789, %v798
    %v801 = vtanh.pop %v788
    %803 = vrot.lane.b32.xlu0 %v801, 64
    %v804 = vpop.permute.xlu0 %803
    %v806 = vmul.f32 %v770, %v804
    %v807 = vtanh.pop %v800
    %809 = vrot.lane.b32.xlu0 %v807, 64
    %v810 = vpop.permute.xlu0 %809
    %v812 = vmul.f32 %v776, %v810
    %814 = vrot.lane.b32.xlu0 %v806, 32
    %v815 = vpop.permute.xlu0 %814
    %s817 = scalar_lea.vmem [#allocation3], 8
    %818 = vst.msk [vmem:[%s817] sm:$0xff] %vm408, %v815
    %820 = vrot.lane.b32.xlu0 %v812, 32
    %v821 = vpop.permute.xlu0 %820
    %s823 = scalar_lea.vmem [#allocation4], 48
    %824 = vst.msk [vmem:[%s823] sm:$0xff] %vm408, %v821
    %s825 = scalar_lea.vmem [#allocation2], 16
    %v826 = vld [vmem:[%s825] sm:$0xff]
    %v827 = vsel %vm408, %v815, 0
    %829 = vmatprep.subr.mxu0 0.0
    %830 = vmatpush1.msra.mxu0 %v398
    %831 = vmatprep.subr.mxu0 0.0
    %832 = vmatpush1.msra.mxu0 %v399
    %833 = vmatprep.subr.mxu0 0.0
    %834 = vmatpush1.msra.mxu0 %v400
    %835 = vmatprep.subr.mxu0 0.0
    %836 = vmatpush1.msra.mxu0 %v401
    %837 = vmatprep.subr.mxu0 0.0
    %838 = vmatpush1.msra.mxu0 0.0
    %839 = vmatprep.subr.mxu0 0.0
    %840 = vmatpush1.msra.mxu0 0.0
    %841 = vmatprep.subr.mxu0 0.0
    %842 = vmatpush1.msra.mxu0 0.0
    %843 = vmatprep.subr.mxu0 0.0
    %844 = vmatpush1.msra.mxu0 0.0
    %845 = vmatprep.subr.mxu0 0.0
    %846 = vmatpush1.msra.mxu0 0.0
    %847 = vmatprep.subr.mxu0 0.0
    %848 = vmatpush1.msra.mxu0 0.0
    %849 = vmatprep.subr.mxu0 0.0
    %850 = vmatpush1.msra.mxu0 0.0
    %851 = vmatprep.subr.mxu0 0.0
    %852 = vmatpush1.msra.mxu0 0.0
    %853 = vmatprep.subr.mxu0 0.0
    %854 = vmatpush1.msra.mxu0 0.0
    %855 = vmatprep.subr.mxu0 0.0
    %856 = vmatpush1.msra.mxu0 0.0
    %857 = vmatprep.subr.mxu0 0.0
    %858 = vmatpush1.msra.mxu0 0.0
    %859 = vmatprep.subr.mxu0 0.0
    %860 = vmatpush1.msra.mxu0 0.0
    %861 = vmatprep.subr.mxu0 0.0
    %862 = vmatpush1.msra.mxu0 0.0
    %863 = vmatprep.subr.mxu0 0.0
    %864 = vmatpush1.msra.mxu0 0.0
    %865 = vmatprep.subr.mxu0 0.0
    %866 = vmatpush1.msra.mxu0 0.0
    %867 = vmatprep.subr.mxu0 0.0
    %868 = vmatpush1.msra.mxu0 0.0
    %869 = vmatprep.subr.mxu0 0.0
    %870 = vmatpush1.msra.mxu0 0.0
    %871 = vmatprep.subr.mxu0 0.0
    %872 = vmatpush1.msra.mxu0 0.0
    %873 = vmatprep.subr.mxu0 0.0
    %874 = vmatpush1.msra.mxu0 0.0
    %875 = vmatprep.subr.mxu0 0.0
    %876 = vmatpush1.msra.mxu0 0.0
    %877 = vmatprep.subr.mxu0 0.0
    %878 = vmatpush1.msra.mxu0 0.0
    %879 = vmatprep.subr.mxu0 0.0
    %880 = vmatpush1.msra.mxu0 0.0
    %881 = vmatprep.subr.mxu0 0.0
    %882 = vmatpush1.msra.mxu0 0.0
    %883 = vmatprep.subr.mxu0 0.0
    %884 = vmatpush1.msra.mxu0 0.0
    %885 = vmatprep.subr.mxu0 0.0
    %886 = vmatpush1.msra.mxu0 0.0
    %887 = vmatprep.subr.mxu0 0.0
    %888 = vmatpush1.msra.mxu0 0.0
    %889 = vmatprep.subr.mxu0 0.0
    %890 = vmatpush1.msra.mxu0 0.0
    %891 = vmatprep.subr.mxu0 0.0
    %892 = vmatpush1.msra.mxu0 0.0
    %893 = vmatprep.mubr.f32.mxu0 0.0
    %894 = vmatmul.mubr.f32.gmra.mrb[0].mxu0 %v827
    %v895 = vpop.f32.mrb[0].mxu0
    %v896 = vadd.f32 0.0, %v895
    %v897 = vpop.f32.mrb[0].mxu0
    %898 = vdwg.mxu0
    %v899 = vadd.f32 %v826, %v896
    %s900 = scalar_lea.vmem [#allocation2], 104
    %v901 = vld [vmem:[%s900] sm:$0xff]
    %v902 = vsel %vm408, %v821, 0
    %904 = vmatprep.subr.mxu0 0.0
    %905 = vmatpush1.msra.mxu0 %v403
    %906 = vmatprep.subr.mxu0 0.0
    %907 = vmatpush1.msra.mxu0 %v404
    %908 = vmatprep.subr.mxu0 0.0
    %909 = vmatpush1.msra.mxu0 %v405
    %910 = vmatprep.subr.mxu0 0.0
    %911 = vmatpush1.msra.mxu0 %v406
    %912 = vmatprep.subr.mxu0 0.0
    %913 = vmatpush1.msra.mxu0 0.0
    %914 = vmatprep.subr.mxu0 0.0
    %915 = vmatpush1.msra.mxu0 0.0
    %916 = vmatprep.subr.mxu0 0.0
    %917 = vmatpush1.msra.mxu0 0.0
    %918 = vmatprep.subr.mxu0 0.0
    %919 = vmatpush1.msra.mxu0 0.0
    %920 = vmatprep.subr.mxu0 0.0
    %921 = vmatpush1.msra.mxu0 0.0
    %922 = vmatprep.subr.mxu0 0.0
    %923 = vmatpush1.msra.mxu0 0.0
    %924 = vmatprep.subr.mxu0 0.0
    %925 = vmatpush1.msra.mxu0 0.0
    %926 = vmatprep.subr.mxu0 0.0
    %927 = vmatpush1.msra.mxu0 0.0
    %928 = vmatprep.subr.mxu0 0.0
    %929 = vmatpush1.msra.mxu0 0.0
    %930 = vmatprep.subr.mxu0 0.0
    %931 = vmatpush1.msra.mxu0 0.0
    %932 = vmatprep.subr.mxu0 0.0
    %933 = vmatpush1.msra.mxu0 0.0
    %934 = vmatprep.subr.mxu0 0.0
    %935 = vmatpush1.msra.mxu0 0.0
    %936 = vmatprep.subr.mxu0 0.0
    %937 = vmatpush1.msra.mxu0 0.0
    %938 = vmatprep.subr.mxu0 0.0
    %939 = vmatpush1.msra.mxu0 0.0
    %940 = vmatprep.subr.mxu0 0.0
    %941 = vmatpush1.msra.mxu0 0.0
    %942 = vmatprep.subr.mxu0 0.0
    %943 = vmatpush1.msra.mxu0 0.0
    %944 = vmatprep.subr.mxu0 0.0
    %945 = vmatpush1.msra.mxu0 0.0
    %946 = vmatprep.subr.mxu0 0.0
    %947 = vmatpush1.msra.mxu0 0.0
    %948 = vmatprep.subr.mxu0 0.0
    %949 = vmatpush1.msra.mxu0 0.0
    %950 = vmatprep.subr.mxu0 0.0
    %951 = vmatpush1.msra.mxu0 0.0
    %952 = vmatprep.subr.mxu0 0.0
    %953 = vmatpush1.msra.mxu0 0.0
    %954 = vmatprep.subr.mxu0 0.0
    %955 = vmatpush1.msra.mxu0 0.0
    %956 = vmatprep.subr.mxu0 0.0
    %957 = vmatpush1.msra.mxu0 0.0
    %958 = vmatprep.subr.mxu0 0.0
    %959 = vmatpush1.msra.mxu0 0.0
    %960 = vmatprep.subr.mxu0 0.0
    %961 = vmatpush1.msra.mxu0 0.0
    %962 = vmatprep.subr.mxu0 0.0
    %963 = vmatpush1.msra.mxu0 0.0
    %964 = vmatprep.subr.mxu0 0.0
    %965 = vmatpush1.msra.mxu0 0.0
    %966 = vmatprep.subr.mxu0 0.0
    %967 = vmatpush1.msra.mxu0 0.0
    %968 = vmatprep.mubr.f32.mxu0 0.0
    %969 = vmatmul.mubr.f32.gmra.mrb[0].mxu0 %v902
    %v970 = vpop.f32.mrb[0].mxu0
    %v971 = vadd.f32 0.0, %v970
    %v972 = vpop.f32.mrb[0].mxu0
    %973 = vdwg.mxu0
    %v974 = vadd.f32 %v901, %v971
    %v975 = vxor.u32 %v899, 2147483648
    %v976 = vmul.f32 %v975, 1.442695
    %v977 = vpow.pop %v976
    %v978 = vadd.f32 %v977, 1.0
    %v979 = vrcp.pop %v978
    %v980 = vmul.f32 1.0, %v979
    %v981 = vxor.u32 %v974, 2147483648
    %v982 = vmul.f32 %v981, 1.442695
    %v983 = vpow.pop %v982
    %v984 = vadd.f32 %v983, 1.0
    %v985 = vrcp.pop %v984
    %v986 = vmul.f32 1.0, %v985
    %v987 = vmul.f32 %v980, %v788
    %v988 = vtanh.pop %v899
    %990 = vrot.lane.b32.xlu0 %v988, 64
    %v991 = vpop.permute.xlu0 %990
    %v993 = vmul.f32 %v980, %v991
    %995 = vrot.lane.b32.xlu0 %v993, 32
    %v996 = vpop.permute.xlu0 %995
    %v998 = vadd.f32 %v987, %v996
    %v999 = vmul.f32 %v986, %v800
    %v1000 = vtanh.pop %v974
    %1002 = vrot.lane.b32.xlu0 %v1000, 64
    %v1003 = vpop.permute.xlu0 %1002
    %v1005 = vmul.f32 %v986, %v1003
    %1007 = vrot.lane.b32.xlu0 %v1005, 32
    %v1008 = vpop.permute.xlu0 %1007
    %v1010 = vadd.f32 %v999, %v1008
    %v1011 = vtanh.pop %v998
    %1013 = vrot.lane.b32.xlu0 %v1011, 64
    %v1014 = vpop.permute.xlu0 %1013
    %v1016 = vmul.f32 %v980, %v1014
    %v1017 = vtanh.pop %v1010
    %1019 = vrot.lane.b32.xlu0 %v1017, 64
    %v1020 = vpop.permute.xlu0 %1019
    %v1022 = vmul.f32 %v986, %v1020
    %1024 = vrot.lane.b32.xlu0 %v1016, 32
    %v1025 = vpop.permute.xlu0 %1024
    %s1027 = scalar_lea.vmem [#allocation3], 16
    %1028 = vst.msk [vmem:[%s1027] sm:$0xff] %vm408, %v1025
    %1030 = vrot.lane.b32.xlu0 %v1022, 32
    %v1031 = vpop.permute.xlu0 %1030
    %s1033 = scalar_lea.vmem [#allocation4], 40
    %1034 = vst.msk [vmem:[%s1033] sm:$0xff] %vm408, %v1031
    %s1035 = scalar_lea.vmem [#allocation2], 24
    %v1036 = vld [vmem:[%s1035] sm:$0xff]
    %v1037 = vsel %vm408, %v1025, 0
    %1039 = vmatprep.subr.mxu0 0.0
    %1040 = vmatpush1.msra.mxu0 %v398
    %1041 = vmatprep.subr.mxu0 0.0
    %1042 = vmatpush1.msra.mxu0 %v399
    %1043 = vmatprep.subr.mxu0 0.0
    %1044 = vmatpush1.msra.mxu0 %v400
    %1045 = vmatprep.subr.mxu0 0.0
    %1046 = vmatpush1.msra.mxu0 %v401
    %1047 = vmatprep.subr.mxu0 0.0
    %1048 = vmatpush1.msra.mxu0 0.0
    %1049 = vmatprep.subr.mxu0 0.0
    %1050 = vmatpush1.msra.mxu0 0.0
    %1051 = vmatprep.subr.mxu0 0.0
    %1052 = vmatpush1.msra.mxu0 0.0
    %1053 = vmatprep.subr.mxu0 0.0
    %1054 = vmatpush1.msra.mxu0 0.0
    %1055 = vmatprep.subr.mxu0 0.0
    %1056 = vmatpush1.msra.mxu0 0.0
    %1057 = vmatprep.subr.mxu0 0.0
    %1058 = vmatpush1.msra.mxu0 0.0
    %1059 = vmatprep.subr.mxu0 0.0
    %1060 = vmatpush1.msra.mxu0 0.0
    %1061 = vmatprep.subr.mxu0 0.0
    %1062 = vmatpush1.msra.mxu0 0.0
    %1063 = vmatprep.subr.mxu0 0.0
    %1064 = vmatpush1.msra.mxu0 0.0
    %1065 = vmatprep.subr.mxu0 0.0
    %1066 = vmatpush1.msra.mxu0 0.0
    %1067 = vmatprep.subr.mxu0 0.0
    %1068 = vmatpush1.msra.mxu0 0.0
    %1069 = vmatprep.subr.mxu0 0.0
    %1070 = vmatpush1.msra.mxu0 0.0
    %1071 = vmatprep.subr.mxu0 0.0
    %1072 = vmatpush1.msra.mxu0 0.0
    %1073 = vmatprep.subr.mxu0 0.0
    %1074 = vmatpush1.msra.mxu0 0.0
    %1075 = vmatprep.subr.mxu0 0.0
    %1076 = vmatpush1.msra.mxu0 0.0
    %1077 = vmatprep.subr.mxu0 0.0
    %1078 = vmatpush1.msra.mxu0 0.0
    %1079 = vmatprep.subr.mxu0 0.0
    %1080 = vmatpush1.msra.mxu0 0.0
    %1081 = vmatprep.subr.mxu0 0.0
    %1082 = vmatpush1.msra.mxu0 0.0
    %1083 = vmatprep.subr.mxu0 0.0
    %1084 = vmatpush1.msra.mxu0 0.0
    %1085 = vmatprep.subr.mxu0 0.0
    %1086 = vmatpush1.msra.mxu0 0.0
    %1087 = vmatprep.subr.mxu0 0.0
    %1088 = vmatpush1.msra.mxu0 0.0
    %1089 = vmatprep.subr.mxu0 0.0
    %1090 = vmatpush1.msra.mxu0 0.0
    %1091 = vmatprep.subr.mxu0 0.0
    %1092 = vmatpush1.msra.mxu0 0.0
    %1093 = vmatprep.subr.mxu0 0.0
    %1094 = vmatpush1.msra.mxu0 0.0
    %1095 = vmatprep.subr.mxu0 0.0
    %1096 = vmatpush1.msra.mxu0 0.0
    %1097 = vmatprep.subr.mxu0 0.0
    %1098 = vmatpush1.msra.mxu0 0.0
    %1099 = vmatprep.subr.mxu0 0.0
    %1100 = vmatpush1.msra.mxu0 0.0
    %1101 = vmatprep.subr.mxu0 0.0
    %1102 = vmatpush1.msra.mxu0 0.0
    %1103 = vmatprep.mubr.f32.mxu0 0.0
    %1104 = vmatmul.mubr.f32.gmra.mrb[0].mxu0 %v1037
    %v1105 = vpop.f32.mrb[0].mxu0
    %v1106 = vadd.f32 0.0, %v1105
    %v1107 = vpop.f32.mrb[0].mxu0
    %1108 = vdwg.mxu0
    %v1109 = vadd.f32 %v1036, %v1106
    %s1110 = scalar_lea.vmem [#allocation2], 96
    %v1111 = vld [vmem:[%s1110] sm:$0xff]
    %v1112 = vsel %vm408, %v1031, 0
    %1114 = vmatprep.subr.mxu0 0.0
    %1115 = vmatpush1.msra.mxu0 %v403
    %1116 = vmatprep.subr.mxu0 0.0
    %1117 = vmatpush1.msra.mxu0 %v404
    %1118 = vmatprep.subr.mxu0 0.0
    %1119 = vmatpush1.msra.mxu0 %v405
    %1120 = vmatprep.subr.mxu0 0.0
    %1121 = vmatpush1.msra.mxu0 %v406
    %1122 = vmatprep.subr.mxu0 0.0
    %1123 = vmatpush1.msra.mxu0 0.0
    %1124 = vmatprep.subr.mxu0 0.0
    %1125 = vmatpush1.msra.mxu0 0.0
    %1126 = vmatprep.subr.mxu0 0.0
    %1127 = vmatpush1.msra.mxu0 0.0
    %1128 = vmatprep.subr.mxu0 0.0
    %1129 = vmatpush1.msra.mxu0 0.0
    %1130 = vmatprep.subr.mxu0 0.0
    %1131 = vmatpush1.msra.mxu0 0.0
    %1132 = vmatprep.subr.mxu0 0.0
    %1133 = vmatpush1.msra.mxu0 0.0
    %1134 = vmatprep.subr.mxu0 0.0
    %1135 = vmatpush1.msra.mxu0 0.0
    %1136 = vmatprep.subr.mxu0 0.0
    %1137 = vmatpush1.msra.mxu0 0.0
    %1138 = vmatprep.subr.mxu0 0.0
    %1139 = vmatpush1.msra.mxu0 0.0
    %1140 = vmatprep.subr.mxu0 0.0
    %1141 = vmatpush1.msra.mxu0 0.0
    %1142 = vmatprep.subr.mxu0 0.0
    %1143 = vmatpush1.msra.mxu0 0.0
    %1144 = vmatprep.subr.mxu0 0.0
    %1145 = vmatpush1.msra.mxu0 0.0
    %1146 = vmatprep.subr.mxu0 0.0
    %1147 = vmatpush1.msra.mxu0 0.0
    %1148 = vmatprep.subr.mxu0 0.0
    %1149 = vmatpush1.msra.mxu0 0.0
    %1150 = vmatprep.subr.mxu0 0.0
    %1151 = vmatpush1.msra.mxu0 0.0
    %1152 = vmatprep.subr.mxu0 0.0
    %1153 = vmatpush1.msra.mxu0 0.0
    %1154 = vmatprep.subr.mxu0 0.0
    %1155 = vmatpush1.msra.mxu0 0.0
    %1156 = vmatprep.subr.mxu0 0.0
    %1157 = vmatpush1.msra.mxu0 0.0
    %1158 = vmatprep.subr.mxu0 0.0
    %1159 = vmatpush1.msra.mxu0 0.0
    %1160 = vmatprep.subr.mxu0 0.0
    %1161 = vmatpush1.msra.mxu0 0.0
    %1162 = vmatprep.subr.mxu0 0.0
    %1163 = vmatpush1.msra.mxu0 0.0
    %1164 = vmatprep.subr.mxu0 0.0
    %1165 = vmatpush1.msra.mxu0 0.0
    %1166 = vmatprep.subr.mxu0 0.0
    %1167 = vmatpush1.msra.mxu0 0.0
    %1168 = vmatprep.subr.mxu0 0.0
    %1169 = vmatpush1.msra.mxu0 0.0
    %1170 = vmatprep.subr.mxu0 0.0
    %1171 = vmatpush1.msra.mxu0 0.0
    %1172 = vmatprep.subr.mxu0 0.0
    %1173 = vmatpush1.msra.mxu0 0.0
    %1174 = vmatprep.subr.mxu0 0.0
    %1175 = vmatpush1.msra.mxu0 0.0
    %1176 = vmatprep.subr.mxu0 0.0
    %1177 = vmatpush1.msra.mxu0 0.0
    %1178 = vmatprep.mubr.f32.mxu0 0.0
    %1179 = vmatmul.mubr.f32.gmra.mrb[0].mxu0 %v1112
    %v1180 = vpop.f32.mrb[0].mxu0
    %v1181 = vadd.f32 0.0, %v1180
    %v1182 = vpop.f32.mrb[0].mxu0
    %1183 = vdwg.mxu0
    %v1184 = vadd.f32 %v1111, %v1181
    %v1185 = vxor.u32 %v1109, 2147483648
    %v1186 = vmul.f32 %v1185, 1.442695
    %v1187 = vpow.pop %v1186
    %v1188 = vadd.f32 %v1187, 1.0
    %v1189 = vrcp.pop %v1188
    %v1190 = vmul.f32 1.0, %v1189
    %v1191 = vxor.u32 %v1184, 2147483648
    %v1192 = vmul.f32 %v1191, 1.442695
    %v1193 = vpow.pop %v1192
    %v1194 = vadd.f32 %v1193, 1.0
    %v1195 = vrcp.pop %v1194
    %v1196 = vmul.f32 1.0, %v1195
    %v1197 = vmul.f32 %v1190, %v998
    %v1198 = vtanh.pop %v1109
    %1200 = vrot.lane.b32.xlu0 %v1198, 64
    %v1201 = vpop.permute.xlu0 %1200
    %v1203 = vmul.f32 %v1190, %v1201
    %1205 = vrot.lane.b32.xlu0 %v1203, 32
    %v1206 = vpop.permute.xlu0 %1205
    %v1208 = vadd.f32 %v1197, %v1206
    %v1209 = vmul.f32 %v1196, %v1010
    %v1210 = vtanh.pop %v1184
    %1212 = vrot.lane.b32.xlu0 %v1210, 64
    %v1213 = vpop.permute.xlu0 %1212
    %v1215 = vmul.f32 %v1196, %v1213
    %1217 = vrot.lane.b32.xlu0 %v1215, 32
    %v1218 = vpop.permute.xlu0 %1217
    %v1220 = vadd.f32 %v1209, %v1218
    %v1221 = vtanh.pop %v1208
    %1223 = vrot.lane.b32.xlu0 %v1221, 64
    %v1224 = vpop.permute.xlu0 %1223
    %v1226 = vmul.f32 %v1190, %v1224
    %v1227 = vtanh.pop %v1220
    %1229 = vrot.lane.b32.xlu0 %v1227, 64
    %v1230 = vpop.permute.xlu0 %1229
    %v1232 = vmul.f32 %v1196, %v1230
    %1234 = vrot.lane.b32.xlu0 %v1226, 32
    %v1235 = vpop.permute.xlu0 %1234
    %s1237 = scalar_lea.vmem [#allocation3], 24
    %1238 = vst.msk [vmem:[%s1237] sm:$0xff] %vm408, %v1235
    %1240 = vrot.lane.b32.xlu0 %v1232, 32
    %v1241 = vpop.permute.xlu0 %1240
    %s1243 = scalar_lea.vmem [#allocation4], 32
    %1244 = vst.msk [vmem:[%s1243] sm:$0xff] %vm408, %v1241
    %s1245 = scalar_lea.vmem [#allocation2], 32
    %v1246 = vld [vmem:[%s1245] sm:$0xff]
    %v1247 = vsel %vm408, %v1235, 0
    %1249 = vmatprep.subr.mxu0 0.0
    %1250 = vmatpush1.msra.mxu0 %v398
    %1251 = vmatprep.subr.mxu0 0.0
    %1252 = vmatpush1.msra.mxu0 %v399
    %1253 = vmatprep.subr.mxu0 0.0
    %1254 = vmatpush1.msra.mxu0 %v400
    %1255 = vmatprep.subr.mxu0 0.0
    %1256 = vmatpush1.msra.mxu0 %v401
    %1257 = vmatprep.subr.mxu0 0.0
    %1258 = vmatpush1.msra.mxu0 0.0
    %1259 = vmatprep.subr.mxu0 0.0
    %1260 = vmatpush1.msra.mxu0 0.0
    %1261 = vmatprep.subr.mxu0 0.0
    %1262 = vmatpush1.msra.mxu0 0.0
    %1263 = vmatprep.subr.mxu0 0.0
    %1264 = vmatpush1.msra.mxu0 0.0
    %1265 = vmatprep.subr.mxu0 0.0
    %1266 = vmatpush1.msra.mxu0 0.0
    %1267 = vmatprep.subr.mxu0 0.0
    %1268 = vmatpush1.msra.mxu0 0.0
    %1269 = vmatprep.subr.mxu0 0.0
    %1270 = vmatpush1.msra.mxu0 0.0
    %1271 = vmatprep.subr.mxu0 0.0
    %1272 = vmatpush1.msra.mxu0 0.0
    %1273 = vmatprep.subr.mxu0 0.0
    %1274 = vmatpush1.msra.mxu0 0.0
    %1275 = vmatprep.subr.mxu0 0.0
    %1276 = vmatpush1.msra.mxu0 0.0
    %1277 = vmatprep.subr.mxu0 0.0
    %1278 = vmatpush1.msra.mxu0 0.0
    %1279 = vmatprep.subr.mxu0 0.0
    %1280 = vmatpush1.msra.mxu0 0.0
    %1281 = vmatprep.subr.mxu0 0.0
    %1282 = vmatpush1.msra.mxu0 0.0
    %1283 = vmatprep.subr.mxu0 0.0
    %1284 = vmatpush1.msra.mxu0 0.0
    %1285 = vmatprep.subr.mxu0 0.0
    %1286 = vmatpush1.msra.mxu0 0.0
    %1287 = vmatprep.subr.mxu0 0.0
    %1288 = vmatpush1.msra.mxu0 0.0
    %1289 = vmatprep.subr.mxu0 0.0
    %1290 = vmatpush1.msra.mxu0 0.0
    %1291 = vmatprep.subr.mxu0 0.0
    %1292 = vmatpush1.msra.mxu0 0.0
    %1293 = vmatprep.subr.mxu0 0.0
    %1294 = vmatpush1.msra.mxu0 0.0
    %1295 = vmatprep.subr.mxu0 0.0
    %1296 = vmatpush1.msra.mxu0 0.0
    %1297 = vmatprep.subr.mxu0 0.0
    %1298 = vmatpush1.msra.mxu0 0.0
    %1299 = vmatprep.subr.mxu0 0.0
    %1300 = vmatpush1.msra.mxu0 0.0
    %1301 = vmatprep.subr.mxu0 0.0
    %1302 = vmatpush1.msra.mxu0 0.0
    %1303 = vmatprep.subr.mxu0 0.0
    %1304 = vmatpush1.msra.mxu0 0.0
    %1305 = vmatprep.subr.mxu0 0.0
    %1306 = vmatpush1.msra.mxu0 0.0
    %1307 = vmatprep.subr.mxu0 0.0
    %1308 = vmatpush1.msra.mxu0 0.0
    %1309 = vmatprep.subr.mxu0 0.0
    %1310 = vmatpush1.msra.mxu0 0.0
    %1311 = vmatprep.subr.mxu0 0.0
    %1312 = vmatpush1.msra.mxu0 0.0
    %1313 = vmatprep.mubr.f32.mxu0 0.0
    %1314 = vmatmul.mubr.f32.gmra.mrb[0].mxu0 %v1247
    %v1315 = vpop.f32.mrb[0].mxu0
    %v1316 = vadd.f32 0.0, %v1315
    %v1317 = vpop.f32.mrb[0].mxu0
    %1318 = vdwg.mxu0
    %v1319 = vadd.f32 %v1246, %v1316
    %s1320 = scalar_lea.vmem [#allocation2], 88
    %v1321 = vld [vmem:[%s1320] sm:$0xff]
    %v1322 = vsel %vm408, %v1241, 0
    %1324 = vmatprep.subr.mxu0 0.0
    %1325 = vmatpush1.msra.mxu0 %v403
    %1326 = vmatprep.subr.mxu0 0.0
    %1327 = vmatpush1.msra.mxu0 %v404
    %1328 = vmatprep.subr.mxu0 0.0
    %1329 = vmatpush1.msra.mxu0 %v405
    %1330 = vmatprep.subr.mxu0 0.0
    %1331 = vmatpush1.msra.mxu0 %v406
    %1332 = vmatprep.subr.mxu0 0.0
    %1333 = vmatpush1.msra.mxu0 0.0
    %1334 = vmatprep.subr.mxu0 0.0
    %1335 = vmatpush1.msra.mxu0 0.0
    %1336 = vmatprep.subr.mxu0 0.0
    %1337 = vmatpush1.msra.mxu0 0.0
    %1338 = vmatprep.subr.mxu0 0.0
    %1339 = vmatpush1.msra.mxu0 0.0
    %1340 = vmatprep.subr.mxu0 0.0
    %1341 = vmatpush1.msra.mxu0 0.0
    %1342 = vmatprep.subr.mxu0 0.0
    %1343 = vmatpush1.msra.mxu0 0.0
    %1344 = vmatprep.subr.mxu0 0.0
    %1345 = vmatpush1.msra.mxu0 0.0
    %1346 = vmatprep.subr.mxu0 0.0
    %1347 = vmatpush1.msra.mxu0 0.0
    %1348 = vmatprep.subr.mxu0 0.0
    %1349 = vmatpush1.msra.mxu0 0.0
    %1350 = vmatprep.subr.mxu0 0.0
    %1351 = vmatpush1.msra.mxu0 0.0
    %1352 = vmatprep.subr.mxu0 0.0
    %1353 = vmatpush1.msra.mxu0 0.0
    %1354 = vmatprep.subr.mxu0 0.0
    %1355 = vmatpush1.msra.mxu0 0.0
    %1356 = vmatprep.subr.mxu0 0.0
    %1357 = vmatpush1.msra.mxu0 0.0
    %1358 = vmatprep.subr.mxu0 0.0
    %1359 = vmatpush1.msra.mxu0 0.0
    %1360 = vmatprep.subr.mxu0 0.0
    %1361 = vmatpush1.msra.mxu0 0.0
    %1362 = vmatprep.subr.mxu0 0.0
    %1363 = vmatpush1.msra.mxu0 0.0
    %1364 = vmatprep.subr.mxu0 0.0
    %1365 = vmatpush1.msra.mxu0 0.0
    %1366 = vmatprep.subr.mxu0 0.0
    %1367 = vmatpush1.msra.mxu0 0.0
    %1368 = vmatprep.subr.mxu0 0.0
    %1369 = vmatpush1.msra.mxu0 0.0
    %1370 = vmatprep.subr.mxu0 0.0
    %1371 = vmatpush1.msra.mxu0 0.0
    %1372 = vmatprep.subr.mxu0 0.0
    %1373 = vmatpush1.msra.mxu0 0.0
    %1374 = vmatprep.subr.mxu0 0.0
    %1375 = vmatpush1.msra.mxu0 0.0
    %1376 = vmatprep.subr.mxu0 0.0
    %1377 = vmatpush1.msra.mxu0 0.0
    %1378 = vmatprep.subr.mxu0 0.0
    %1379 = vmatpush1.msra.mxu0 0.0
    %1380 = vmatprep.subr.mxu0 0.0
    %1381 = vmatpush1.msra.mxu0 0.0
    %1382 = vmatprep.subr.mxu0 0.0
    %1383 = vmatpush1.msra.mxu0 0.0
    %1384 = vmatprep.subr.mxu0 0.0
    %1385 = vmatpush1.msra.mxu0 0.0
    %1386 = vmatprep.subr.mxu0 0.0
    %1387 = vmatpush1.msra.mxu0 0.0
    %1388 = vmatprep.mubr.f32.mxu0 0.0
    %1389 = vmatmul.mubr.f32.gmra.mrb[0].mxu0 %v1322
    %v1390 = vpop.f32.mrb[0].mxu0
    %v1391 = vadd.f32 0.0, %v1390
    %v1392 = vpop.f32.mrb[0].mxu0
    %1393 = vdwg.mxu0
    %v1394 = vadd.f32 %v1321, %v1391
    %v1395 = vxor.u32 %v1319, 2147483648
    %v1396 = vmul.f32 %v1395, 1.442695
    %v1397 = vpow.pop %v1396
    %v1398 = vadd.f32 %v1397, 1.0
    %v1399 = vrcp.pop %v1398
    %v1400 = vmul.f32 1.0, %v1399
    %v1401 = vxor.u32 %v1394, 2147483648
    %v1402 = vmul.f32 %v1401, 1.442695
    %v1403 = vpow.pop %v1402
    %v1404 = vadd.f32 %v1403, 1.0
    %v1405 = vrcp.pop %v1404
    %v1406 = vmul.f32 1.0, %v1405
    %v1407 = vmul.f32 %v1400, %v1208
    %v1408 = vtanh.pop %v1319
    %1410 = vrot.lane.b32.xlu0 %v1408, 64
    %v1411 = vpop.permute.xlu0 %1410
    %v1413 = vmul.f32 %v1400, %v1411
    %1415 = vrot.lane.b32.xlu0 %v1413, 32
    %v1416 = vpop.permute.xlu0 %1415
    %v1418 = vadd.f32 %v1407, %v1416
    %v1419 = vmul.f32 %v1406, %v1220
    %v1420 = vtanh.pop %v1394
    %1422 = vrot.lane.b32.xlu0 %v1420, 64
    %v1423 = vpop.permute.xlu0 %1422
    %v1425 = vmul.f32 %v1406, %v1423
    %1427 = vrot.lane.b32.xlu0 %v1425, 32
    %v1428 = vpop.permute.xlu0 %1427
    %v1430 = vadd.f32 %v1419, %v1428
    %v1431 = vtanh.pop %v1418
    %1433 = vrot.lane.b32.xlu0 %v1431, 64
    %v1434 = vpop.permute.xlu0 %1433
    %v1436 = vmul.f32 %v1400, %v1434
    %v1437 = vtanh.pop %v1430
    %1439 = vrot.lane.b32.xlu0 %v1437, 64
    %v1440 = vpop.permute.xlu0 %1439
    %v1442 = vmul.f32 %v1406, %v1440
    %1444 = vrot.lane.b32.xlu0 %v1436, 32
    %v1445 = vpop.permute.xlu0 %1444
    %s1447 = scalar_lea.vmem [#allocation3], 32
    %1448 = vst.msk [vmem:[%s1447] sm:$0xff] %vm408, %v1445
    %1450 = vrot.lane.b32.xlu0 %v1442, 32
    %v1451 = vpop.permute.xlu0 %1450
    %s1453 = scalar_lea.vmem [#allocation4], 24
    %1454 = vst.msk [vmem:[%s1453] sm:$0xff] %vm408, %v1451
    %s1455 = scalar_lea.vmem [#allocation2], 40
    %v1456 = vld [vmem:[%s1455] sm:$0xff]
    %v1457 = vsel %vm408, %v1445, 0
    %1459 = vmatprep.subr.mxu0 0.0
    %1460 = vmatpush1.msra.mxu0 %v398
    %1461 = vmatprep.subr.mxu0 0.0
    %1462 = vmatpush1.msra.mxu0 %v399
    %1463 = vmatprep.subr.mxu0 0.0
    %1464 = vmatpush1.msra.mxu0 %v400
    %1465 = vmatprep.subr.mxu0 0.0
    %1466 = vmatpush1.msra.mxu0 %v401
    %1467 = vmatprep.subr.mxu0 0.0
    %1468 = vmatpush1.msra.mxu0 0.0
    %1469 = vmatprep.subr.mxu0 0.0
    %1470 = vmatpush1.msra.mxu0 0.0
    %1471 = vmatprep.subr.mxu0 0.0
    %1472 = vmatpush1.msra.mxu0 0.0
    %1473 = vmatprep.subr.mxu0 0.0
    %1474 = vmatpush1.msra.mxu0 0.0
    %1475 = vmatprep.subr.mxu0 0.0
    %1476 = vmatpush1.msra.mxu0 0.0
    %1477 = vmatprep.subr.mxu0 0.0
    %1478 = vmatpush1.msra.mxu0 0.0
    %1479 = vmatprep.subr.mxu0 0.0
    %1480 = vmatpush1.msra.mxu0 0.0
    %1481 = vmatprep.subr.mxu0 0.0
    %1482 = vmatpush1.msra.mxu0 0.0
    %1483 = vmatprep.subr.mxu0 0.0
    %1484 = vmatpush1.msra.mxu0 0.0
    %1485 = vmatprep.subr.mxu0 0.0
    %1486 = vmatpush1.msra.mxu0 0.0
    %1487 = vmatprep.subr.mxu0 0.0
    %1488 = vmatpush1.msra.mxu0 0.0
    %1489 = vmatprep.subr.mxu0 0.0
    %1490 = vmatpush1.msra.mxu0 0.0
    %1491 = vmatprep.subr.mxu0 0.0
    %1492 = vmatpush1.msra.mxu0 0.0
    %1493 = vmatprep.subr.mxu0 0.0
    %1494 = vmatpush1.msra.mxu0 0.0
    %1495 = vmatprep.subr.mxu0 0.0
    %1496 = vmatpush1.msra.mxu0 0.0
    %1497 = vmatprep.subr.mxu0 0.0
    %1498 = vmatpush1.msra.mxu0 0.0
    %1499 = vmatprep.subr.mxu0 0.0
    %1500 = vmatpush1.msra.mxu0 0.0
    %1501 = vmatprep.subr.mxu0 0.0
    %1502 = vmatpush1.msra.mxu0 0.0
    %1503 = vmatprep.subr.mxu0 0.0
    %1504 = vmatpush1.msra.mxu0 0.0
    %1505 = vmatprep.subr.mxu0 0.0
    %1506 = vmatpush1.msra.mxu0 0.0
    %1507 = vmatprep.subr.mxu0 0.0
    %1508 = vmatpush1.msra.mxu0 0.0
    %1509 = vmatprep.subr.mxu0 0.0
    %1510 = vmatpush1.msra.mxu0 0.0
    %1511 = vmatprep.subr.mxu0 0.0
    %1512 = vmatpush1.msra.mxu0 0.0
    %1513 = vmatprep.subr.mxu0 0.0
    %1514 = vmatpush1.msra.mxu0 0.0
    %1515 = vmatprep.subr.mxu0 0.0
    %1516 = vmatpush1.msra.mxu0 0.0
    %1517 = vmatprep.subr.mxu0 0.0
    %1518 = vmatpush1.msra.mxu0 0.0
    %1519 = vmatprep.subr.mxu0 0.0
    %1520 = vmatpush1.msra.mxu0 0.0
    %1521 = vmatprep.subr.mxu0 0.0
    %1522 = vmatpush1.msra.mxu0 0.0
    %1523 = vmatprep.mubr.f32.mxu0 0.0
    %1524 = vmatmul.mubr.f32.gmra.mrb[0].mxu0 %v1457
    %v1525 = vpop.f32.mrb[0].mxu0
    %v1526 = vadd.f32 0.0, %v1525
    %v1527 = vpop.f32.mrb[0].mxu0
    %1528 = vdwg.mxu0
    %v1529 = vadd.f32 %v1456, %v1526
    %s1530 = scalar_lea.vmem [#allocation2], 80
    %v1531 = vld [vmem:[%s1530] sm:$0xff]
    %v1532 = vsel %vm408, %v1451, 0
    %1534 = vmatprep.subr.mxu0 0.0
    %1535 = vmatpush1.msra.mxu0 %v403
    %1536 = vmatprep.subr.mxu0 0.0
    %1537 = vmatpush1.msra.mxu0 %v404
    %1538 = vmatprep.subr.mxu0 0.0
    %1539 = vmatpush1.msra.mxu0 %v405
    %1540 = vmatprep.subr.mxu0 0.0
    %1541 = vmatpush1.msra.mxu0 %v406
    %1542 = vmatprep.subr.mxu0 0.0
    %1543 = vmatpush1.msra.mxu0 0.0
    %1544 = vmatprep.subr.mxu0 0.0
    %1545 = vmatpush1.msra.mxu0 0.0
    %1546 = vmatprep.subr.mxu0 0.0
    %1547 = vmatpush1.msra.mxu0 0.0
    %1548 = vmatprep.subr.mxu0 0.0
    %1549 = vmatpush1.msra.mxu0 0.0
    %1550 = vmatprep.subr.mxu0 0.0
    %1551 = vmatpush1.msra.mxu0 0.0
    %1552 = vmatprep.subr.mxu0 0.0
    %1553 = vmatpush1.msra.mxu0 0.0
    %1554 = vmatprep.subr.mxu0 0.0
    %1555 = vmatpush1.msra.mxu0 0.0
    %1556 = vmatprep.subr.mxu0 0.0
    %1557 = vmatpush1.msra.mxu0 0.0
    %1558 = vmatprep.subr.mxu0 0.0
    %1559 = vmatpush1.msra.mxu0 0.0
    %1560 = vmatprep.subr.mxu0 0.0
    %1561 = vmatpush1.msra.mxu0 0.0
    %1562 = vmatprep.subr.mxu0 0.0
    %1563 = vmatpush1.msra.mxu0 0.0
    %1564 = vmatprep.subr.mxu0 0.0
    %1565 = vmatpush1.msra.mxu0 0.0
    %1566 = vmatprep.subr.mxu0 0.0
    %1567 = vmatpush1.msra.mxu0 0.0
    %1568 = vmatprep.subr.mxu0 0.0
    %1569 = vmatpush1.msra.mxu0 0.0
    %1570 = vmatprep.subr.mxu0 0.0
    %1571 = vmatpush1.msra.mxu0 0.0
    %1572 = vmatprep.subr.mxu0 0.0
    %1573 = vmatpush1.msra.mxu0 0.0
    %1574 = vmatprep.subr.mxu0 0.0
    %1575 = vmatpush1.msra.mxu0 0.0
    %1576 = vmatprep.subr.mxu0 0.0
    %1577 = vmatpush1.msra.mxu0 0.0
    %1578 = vmatprep.subr.mxu0 0.0
    %1579 = vmatpush1.msra.mxu0 0.0
    %1580 = vmatprep.subr.mxu0 0.0
    %1581 = vmatpush1.msra.mxu0 0.0
    %1582 = vmatprep.subr.mxu0 0.0
    %1583 = vmatpush1.msra.mxu0 0.0
    %1584 = vmatprep.subr.mxu0 0.0
    %1585 = vmatpush1.msra.mxu0 0.0
    %1586 = vmatprep.subr.mxu0 0.0
    %1587 = vmatpush1.msra.mxu0 0.0
    %1588 = vmatprep.subr.mxu0 0.0
    %1589 = vmatpush1.msra.mxu0 0.0
    %1590 = vmatprep.subr.mxu0 0.0
    %1591 = vmatpush1.msra.mxu0 0.0
    %1592 = vmatprep.subr.mxu0 0.0
    %1593 = vmatpush1.msra.mxu0 0.0
    %1594 = vmatprep.subr.mxu0 0.0
    %1595 = vmatpush1.msra.mxu0 0.0
    %1596 = vmatprep.subr.mxu0 0.0
    %1597 = vmatpush1.msra.mxu0 0.0
    %1598 = vmatprep.mubr.f32.mxu0 0.0
    %1599 = vmatmul.mubr.f32.gmra.mrb[0].mxu0 %v1532
    %v1600 = vpop.f32.mrb[0].mxu0
    %v1601 = vadd.f32 0.0, %v1600
    %v1602 = vpop.f32.mrb[0].mxu0
    %1603 = vdwg.mxu0
    %v1604 = vadd.f32 %v1531, %v1601
    %v1605 = vxor.u32 %v1529, 2147483648
    %v1606 = vmul.f32 %v1605, 1.442695
    %v1607 = vpow.pop %v1606
    %v1608 = vadd.f32 %v1607, 1.0
    %v1609 = vrcp.pop %v1608
    %v1610 = vmul.f32 1.0, %v1609
    %v1611 = vxor.u32 %v1604, 2147483648
    %v1612 = vmul.f32 %v1611, 1.442695
    %v1613 = vpow.pop %v1612
    %v1614 = vadd.f32 %v1613, 1.0
    %v1615 = vrcp.pop %v1614
    %v1616 = vmul.f32 1.0, %v1615
    %v1617 = vmul.f32 %v1610, %v1418
    %v1618 = vtanh.pop %v1529
    %1620 = vrot.lane.b32.xlu0 %v1618, 64
    %v1621 = vpop.permute.xlu0 %1620
    %v1623 = vmul.f32 %v1610, %v1621
    %1625 = vrot.lane.b32.xlu0 %v1623, 32
    %v1626 = vpop.permute.xlu0 %1625
    %v1628 = vadd.f32 %v1617, %v1626
    %v1629 = vmul.f32 %v1616, %v1430
    %v1630 = vtanh.pop %v1604
    %1632 = vrot.lane.b32.xlu0 %v1630, 64
    %v1633 = vpop.permute.xlu0 %1632
    %v1635 = vmul.f32 %v1616, %v1633
    %1637 = vrot.lane.b32.xlu0 %v1635, 32
    %v1638 = vpop.permute.xlu0 %1637
    %v1640 = vadd.f32 %v1629, %v1638
    %v1641 = vtanh.pop %v1628
    %1643 = vrot.lane.b32.xlu0 %v1641, 64
    %v1644 = vpop.permute.xlu0 %1643
    %v1646 = vmul.f32 %v1610, %v1644
    %v1647 = vtanh.pop %v1640
    %1649 = vrot.lane.b32.xlu0 %v1647, 64
    %v1650 = vpop.permute.xlu0 %1649
    %v1652 = vmul.f32 %v1616, %v1650
    %1654 = vrot.lane.b32.xlu0 %v1646, 32
    %v1655 = vpop.permute.xlu0 %1654
    %s1657 = scalar_lea.vmem [#allocation3], 40
    %1658 = vst.msk [vmem:[%s1657] sm:$0xff] %vm408, %v1655
    %1660 = vrot.lane.b32.xlu0 %v1652, 32
    %v1661 = vpop.permute.xlu0 %1660
    %s1663 = scalar_lea.vmem [#allocation4], 16
    %1664 = vst.msk [vmem:[%s1663] sm:$0xff] %vm408, %v1661
    %s1665 = scalar_lea.vmem [#allocation2], 48
    %v1666 = vld [vmem:[%s1665] sm:$0xff]
    %v1667 = vsel %vm408, %v1655, 0
    %1669 = vmatprep.subr.mxu0 0.0
    %1670 = vmatpush1.msra.mxu0 %v398
    %1671 = vmatprep.subr.mxu0 0.0
    %1672 = vmatpush1.msra.mxu0 %v399
    %1673 = vmatprep.subr.mxu0 0.0
    %1674 = vmatpush1.msra.mxu0 %v400
    %1675 = vmatprep.subr.mxu0 0.0
    %1676 = vmatpush1.msra.mxu0 %v401
    %1677 = vmatprep.subr.mxu0 0.0
    %1678 = vmatpush1.msra.mxu0 0.0
    %1679 = vmatprep.subr.mxu0 0.0
    %1680 = vmatpush1.msra.mxu0 0.0
    %1681 = vmatprep.subr.mxu0 0.0
    %1682 = vmatpush1.msra.mxu0 0.0
    %1683 = vmatprep.subr.mxu0 0.0
    %1684 = vmatpush1.msra.mxu0 0.0
    %1685 = vmatprep.subr.mxu0 0.0
    %1686 = vmatpush1.msra.mxu0 0.0
    %1687 = vmatprep.subr.mxu0 0.0
    %1688 = vmatpush1.msra.mxu0 0.0
    %1689 = vmatprep.subr.mxu0 0.0
    %1690 = vmatpush1.msra.mxu0 0.0
    %1691 = vmatprep.subr.mxu0 0.0
    %1692 = vmatpush1.msra.mxu0 0.0
    %1693 = vmatprep.subr.mxu0 0.0
    %1694 = vmatpush1.msra.mxu0 0.0
    %1695 = vmatprep.subr.mxu0 0.0
    %1696 = vmatpush1.msra.mxu0 0.0
    %1697 = vmatprep.subr.mxu0 0.0
    %1698 = vmatpush1.msra.mxu0 0.0
    %1699 = vmatprep.subr.mxu0 0.0
    %1700 = vmatpush1.msra.mxu0 0.0
    %1701 = vmatprep.subr.mxu0 0.0
    %1702 = vmatpush1.msra.mxu0 0.0
    %1703 = vmatprep.subr.mxu0 0.0
    %1704 = vmatpush1.msra.mxu0 0.0
    %1705 = vmatprep.subr.mxu0 0.0
    %1706 = vmatpush1.msra.mxu0 0.0
    %1707 = vmatprep.subr.mxu0 0.0
    %1708 = vmatpush1.msra.mxu0 0.0
    %1709 = vmatprep.subr.mxu0 0.0
    %1710 = vmatpush1.msra.mxu0 0.0
    %1711 = vmatprep.subr.mxu0 0.0
    %1712 = vmatpush1.msra.mxu0 0.0
    %1713 = vmatprep.subr.mxu0 0.0
    %1714 = vmatpush1.msra.mxu0 0.0
    %1715 = vmatprep.subr.mxu0 0.0
    %1716 = vmatpush1.msra.mxu0 0.0
    %1717 = vmatprep.subr.mxu0 0.0
    %1718 = vmatpush1.msra.mxu0 0.0
    %1719 = vmatprep.subr.mxu0 0.0
    %1720 = vmatpush1.msra.mxu0 0.0
    %1721 = vmatprep.subr.mxu0 0.0
    %1722 = vmatpush1.msra.mxu0 0.0
    %1723 = vmatprep.subr.mxu0 0.0
    %1724 = vmatpush1.msra.mxu0 0.0
    %1725 = vmatprep.subr.mxu0 0.0
    %1726 = vmatpush1.msra.mxu0 0.0
    %1727 = vmatprep.subr.mxu0 0.0
    %1728 = vmatpush1.msra.mxu0 0.0
    %1729 = vmatprep.subr.mxu0 0.0
    %1730 = vmatpush1.msra.mxu0 0.0
    %1731 = vmatprep.subr.mxu0 0.0
    %1732 = vmatpush1.msra.mxu0 0.0
    %1733 = vmatprep.mubr.f32.mxu0 0.0
    %1734 = vmatmul.mubr.f32.gmra.mrb[0].mxu0 %v1667
    %v1735 = vpop.f32.mrb[0].mxu0
    %v1736 = vadd.f32 0.0, %v1735
    %v1737 = vpop.f32.mrb[0].mxu0
    %1738 = vdwg.mxu0
    %v1739 = vadd.f32 %v1666, %v1736
    %s1740 = scalar_lea.vmem [#allocation2], 72
    %v1741 = vld [vmem:[%s1740] sm:$0xff]
    %v1742 = vsel %vm408, %v1661, 0
    %1744 = vmatprep.subr.mxu0 0.0
    %1745 = vmatpush1.msra.mxu0 %v403
    %1746 = vmatprep.subr.mxu0 0.0
    %1747 = vmatpush1.msra.mxu0 %v404
    %1748 = vmatprep.subr.mxu0 0.0
    %1749 = vmatpush1.msra.mxu0 %v405
    %1750 = vmatprep.subr.mxu0 0.0
    %1751 = vmatpush1.msra.mxu0 %v406
    %1752 = vmatprep.subr.mxu0 0.0
    %1753 = vmatpush1.msra.mxu0 0.0
    %1754 = vmatprep.subr.mxu0 0.0
    %1755 = vmatpush1.msra.mxu0 0.0
    %1756 = vmatprep.subr.mxu0 0.0
    %1757 = vmatpush1.msra.mxu0 0.0
    %1758 = vmatprep.subr.mxu0 0.0
    %1759 = vmatpush1.msra.mxu0 0.0
    %1760 = vmatprep.subr.mxu0 0.0
    %1761 = vmatpush1.msra.mxu0 0.0
    %1762 = vmatprep.subr.mxu0 0.0
    %1763 = vmatpush1.msra.mxu0 0.0
    %1764 = vmatprep.subr.mxu0 0.0
    %1765 = vmatpush1.msra.mxu0 0.0
    %1766 = vmatprep.subr.mxu0 0.0
    %1767 = vmatpush1.msra.mxu0 0.0
    %1768 = vmatprep.subr.mxu0 0.0
    %1769 = vmatpush1.msra.mxu0 0.0
    %1770 = vmatprep.subr.mxu0 0.0
    %1771 = vmatpush1.msra.mxu0 0.0
    %1772 = vmatprep.subr.mxu0 0.0
    %1773 = vmatpush1.msra.mxu0 0.0
    %1774 = vmatprep.subr.mxu0 0.0
    %1775 = vmatpush1.msra.mxu0 0.0
    %1776 = vmatprep.subr.mxu0 0.0
    %1777 = vmatpush1.msra.mxu0 0.0
    %1778 = vmatprep.subr.mxu0 0.0
    %1779 = vmatpush1.msra.mxu0 0.0
    %1780 = vmatprep.subr.mxu0 0.0
    %1781 = vmatpush1.msra.mxu0 0.0
    %1782 = vmatprep.subr.mxu0 0.0
    %1783 = vmatpush1.msra.mxu0 0.0
    %1784 = vmatprep.subr.mxu0 0.0
    %1785 = vmatpush1.msra.mxu0 0.0
    %1786 = vmatprep.subr.mxu0 0.0
    %1787 = vmatpush1.msra.mxu0 0.0
    %1788 = vmatprep.subr.mxu0 0.0
    %1789 = vmatpush1.msra.mxu0 0.0
    %1790 = vmatprep.subr.mxu0 0.0
    %1791 = vmatpush1.msra.mxu0 0.0
    %1792 = vmatprep.subr.mxu0 0.0
    %1793 = vmatpush1.msra.mxu0 0.0
    %1794 = vmatprep.subr.mxu0 0.0
    %1795 = vmatpush1.msra.mxu0 0.0
    %1796 = vmatprep.subr.mxu0 0.0
    %1797 = vmatpush1.msra.mxu0 0.0
    %1798 = vmatprep.subr.mxu0 0.0
    %1799 = vmatpush1.msra.mxu0 0.0
    %1800 = vmatprep.subr.mxu0 0.0
    %1801 = vmatpush1.msra.mxu0 0.0
    %1802 = vmatprep.subr.mxu0 0.0
    %1803 = vmatpush1.msra.mxu0 0.0
    %1804 = vmatprep.subr.mxu0 0.0
    %1805 = vmatpush1.msra.mxu0 0.0
    %1806 = vmatprep.subr.mxu0 0.0
    %1807 = vmatpush1.msra.mxu0 0.0
    %1808 = vmatprep.mubr.f32.mxu0 0.0
    %1809 = vmatmul.mubr.f32.gmra.mrb[0].mxu0 %v1742
    %v1810 = vpop.f32.mrb[0].mxu0
    %v1811 = vadd.f32 0.0, %v1810
    %v1812 = vpop.f32.mrb[0].mxu0
    %1813 = vdwg.mxu0
    %v1814 = vadd.f32 %v1741, %v1811
    %v1815 = vxor.u32 %v1739, 2147483648
    %v1816 = vmul.f32 %v1815, 1.442695
    %v1817 = vpow.pop %v1816
    %v1818 = vadd.f32 %v1817, 1.0
    %v1819 = vrcp.pop %v1818
    %v1820 = vmul.f32 1.0, %v1819
    %v1821 = vxor.u32 %v1814, 2147483648
    %v1822 = vmul.f32 %v1821, 1.442695
    %v1823 = vpow.pop %v1822
    %v1824 = vadd.f32 %v1823, 1.0
    %v1825 = vrcp.pop %v1824
    %v1826 = vmul.f32 1.0, %v1825
    %v1827 = vmul.f32 %v1820, %v1628
    %v1828 = vtanh.pop %v1739
    %1830 = vrot.lane.b32.xlu0 %v1828, 64
    %v1831 = vpop.permute.xlu0 %1830
    %v1833 = vmul.f32 %v1820, %v1831
    %1835 = vrot.lane.b32.xlu0 %v1833, 32
    %v1836 = vpop.permute.xlu0 %1835
    %v1838 = vadd.f32 %v1827, %v1836
    %v1839 = vmul.f32 %v1826, %v1640
    %v1840 = vtanh.pop %v1814
    %1842 = vrot.lane.b32.xlu0 %v1840, 64
    %v1843 = vpop.permute.xlu0 %1842
    %v1845 = vmul.f32 %v1826, %v1843
    %1847 = vrot.lane.b32.xlu0 %v1845, 32
    %v1848 = vpop.permute.xlu0 %1847
    %v1850 = vadd.f32 %v1839, %v1848
    %v1851 = vtanh.pop %v1838
    %1853 = vrot.lane.b32.xlu0 %v1851, 64
    %v1854 = vpop.permute.xlu0 %1853
    %v1856 = vmul.f32 %v1820, %v1854
    %v1857 = vtanh.pop %v1850
    %1859 = vrot.lane.b32.xlu0 %v1857, 64
    %v1860 = vpop.permute.xlu0 %1859
    %v1862 = vmul.f32 %v1826, %v1860
    %1864 = vrot.lane.b32.xlu0 %v1856, 32
    %v1865 = vpop.permute.xlu0 %1864
    %s1867 = scalar_lea.vmem [#allocation3], 48
    %1868 = vst.msk [vmem:[%s1867] sm:$0xff] %vm408, %v1865
    %1870 = vrot.lane.b32.xlu0 %v1862, 32
    %v1871 = vpop.permute.xlu0 %1870
    %s1873 = scalar_lea.vmem [#allocation4], 8
    %1874 = vst.msk [vmem:[%s1873] sm:$0xff] %vm408, %v1871
    %s1875 = scalar_lea.vmem [#allocation2], 56
    %v1876 = vld [vmem:[%s1875] sm:$0xff]
    %v1877 = vsel %vm408, %v1865, 0
    %1879 = vmatprep.subr.mxu0 0.0
    %1880 = vmatpush1.msra.mxu0 %v398
    %1881 = vmatprep.subr.mxu0 0.0
    %1882 = vmatpush1.msra.mxu0 %v399
    %1883 = vmatprep.subr.mxu0 0.0
    %1884 = vmatpush1.msra.mxu0 %v400
    %1885 = vmatprep.subr.mxu0 0.0
    %1886 = vmatpush1.msra.mxu0 %v401
    %1887 = vmatprep.subr.mxu0 0.0
    %1888 = vmatpush1.msra.mxu0 0.0
    %1889 = vmatprep.subr.mxu0 0.0
    %1890 = vmatpush1.msra.mxu0 0.0
    %1891 = vmatprep.subr.mxu0 0.0
    %1892 = vmatpush1.msra.mxu0 0.0
    %1893 = vmatprep.subr.mxu0 0.0
    %1894 = vmatpush1.msra.mxu0 0.0
    %1895 = vmatprep.subr.mxu0 0.0
    %1896 = vmatpush1.msra.mxu0 0.0
    %1897 = vmatprep.subr.mxu0 0.0
    %1898 = vmatpush1.msra.mxu0 0.0
    %1899 = vmatprep.subr.mxu0 0.0
    %1900 = vmatpush1.msra.mxu0 0.0
    %1901 = vmatprep.subr.mxu0 0.0
    %1902 = vmatpush1.msra.mxu0 0.0
    %1903 = vmatprep.subr.mxu0 0.0
    %1904 = vmatpush1.msra.mxu0 0.0
    %1905 = vmatprep.subr.mxu0 0.0
    %1906 = vmatpush1.msra.mxu0 0.0
    %1907 = vmatprep.subr.mxu0 0.0
    %1908 = vmatpush1.msra.mxu0 0.0
    %1909 = vmatprep.subr.mxu0 0.0
    %1910 = vmatpush1.msra.mxu0 0.0
    %1911 = vmatprep.subr.mxu0 0.0
    %1912 = vmatpush1.msra.mxu0 0.0
    %1913 = vmatprep.subr.mxu0 0.0
    %1914 = vmatpush1.msra.mxu0 0.0
    %1915 = vmatprep.subr.mxu0 0.0
    %1916 = vmatpush1.msra.mxu0 0.0
    %1917 = vmatprep.subr.mxu0 0.0
    %1918 = vmatpush1.msra.mxu0 0.0
    %1919 = vmatprep.subr.mxu0 0.0
    %1920 = vmatpush1.msra.mxu0 0.0
    %1921 = vmatprep.subr.mxu0 0.0
    %1922 = vmatpush1.msra.mxu0 0.0
    %1923 = vmatprep.subr.mxu0 0.0
    %1924 = vmatpush1.msra.mxu0 0.0
    %1925 = vmatprep.subr.mxu0 0.0
    %1926 = vmatpush1.msra.mxu0 0.0
    %1927 = vmatprep.subr.mxu0 0.0
    %1928 = vmatpush1.msra.mxu0 0.0
    %1929 = vmatprep.subr.mxu0 0.0
    %1930 = vmatpush1.msra.mxu0 0.0
    %1931 = vmatprep.subr.mxu0 0.0
    %1932 = vmatpush1.msra.mxu0 0.0
    %1933 = vmatprep.subr.mxu0 0.0
    %1934 = vmatpush1.msra.mxu0 0.0
    %1935 = vmatprep.subr.mxu0 0.0
    %1936 = vmatpush1.msra.mxu0 0.0
    %1937 = vmatprep.subr.mxu0 0.0
    %1938 = vmatpush1.msra.mxu0 0.0
    %1939 = vmatprep.subr.mxu0 0.0
    %1940 = vmatpush1.msra.mxu0 0.0
    %1941 = vmatprep.subr.mxu0 0.0
    %1942 = vmatpush1.msra.mxu0 0.0
    %1943 = vmatprep.mubr.f32.mxu0 0.0
    %1944 = vmatmul.mubr.f32.gmra.mrb[0].mxu0 %v1877
    %v1945 = vpop.f32.mrb[0].mxu0
    %v1946 = vadd.f32 0.0, %v1945
    %v1947 = vpop.f32.mrb[0].mxu0
    %1948 = vdwg.mxu0
    %v1949 = vadd.f32 %v1876, %v1946
    %v1950 = vld [vmem:[%s389] sm:$0xff]
    %v1951 = vsel %vm408, %v1871, 0
    %1953 = vmatprep.subr.mxu0 0.0
    %1954 = vmatpush1.msra.mxu0 %v403
    %1955 = vmatprep.subr.mxu0 0.0
    %1956 = vmatpush1.msra.mxu0 %v404
    %1957 = vmatprep.subr.mxu0 0.0
    %1958 = vmatpush1.msra.mxu0 %v405
    %1959 = vmatprep.subr.mxu0 0.0
    %1960 = vmatpush1.msra.mxu0 %v406
    %1961 = vmatprep.subr.mxu0 0.0
    %1962 = vmatpush1.msra.mxu0 0.0
    %1963 = vmatprep.subr.mxu0 0.0
    %1964 = vmatpush1.msra.mxu0 0.0
    %1965 = vmatprep.subr.mxu0 0.0
    %1966 = vmatpush1.msra.mxu0 0.0
    %1967 = vmatprep.subr.mxu0 0.0
    %1968 = vmatpush1.msra.mxu0 0.0
    %1969 = vmatprep.subr.mxu0 0.0
    %1970 = vmatpush1.msra.mxu0 0.0
    %1971 = vmatprep.subr.mxu0 0.0
    %1972 = vmatpush1.msra.mxu0 0.0
    %1973 = vmatprep.subr.mxu0 0.0
    %1974 = vmatpush1.msra.mxu0 0.0
    %1975 = vmatprep.subr.mxu0 0.0
    %1976 = vmatpush1.msra.mxu0 0.0
    %1977 = vmatprep.subr.mxu0 0.0
    %1978 = vmatpush1.msra.mxu0 0.0
    %1979 = vmatprep.subr.mxu0 0.0
    %1980 = vmatpush1.msra.mxu0 0.0
    %1981 = vmatprep.subr.mxu0 0.0
    %1982 = vmatpush1.msra.mxu0 0.0
    %1983 = vmatprep.subr.mxu0 0.0
    %1984 = vmatpush1.msra.mxu0 0.0
    %1985 = vmatprep.subr.mxu0 0.0
    %1986 = vmatpush1.msra.mxu0 0.0
    %1987 = vmatprep.subr.mxu0 0.0
    %1988 = vmatpush1.msra.mxu0 0.0
    %1989 = vmatprep.subr.mxu0 0.0
    %1990 = vmatpush1.msra.mxu0 0.0
    %1991 = vmatprep.subr.mxu0 0.0
    %1992 = vmatpush1.msra.mxu0 0.0
    %1993 = vmatprep.subr.mxu0 0.0
    %1994 = vmatpush1.msra.mxu0 0.0
    %1995 = vmatprep.subr.mxu0 0.0
    %1996 = vmatpush1.msra.mxu0 0.0
    %1997 = vmatprep.subr.mxu0 0.0
    %1998 = vmatpush1.msra.mxu0 0.0
    %1999 = vmatprep.subr.mxu0 0.0
    %2000 = vmatpush1.msra.mxu0 0.0
    %2001 = vmatprep.subr.mxu0 0.0
    %2002 = vmatpush1.msra.mxu0 0.0
    %2003 = vmatprep.subr.mxu0 0.0
    %2004 = vmatpush1.msra.mxu0 0.0
    %2005 = vmatprep.subr.mxu0 0.0
    %2006 = vmatpush1.msra.mxu0 0.0
    %2007 = vmatprep.subr.mxu0 0.0
    %2008 = vmatpush1.msra.mxu0 0.0
    %2009 = vmatprep.subr.mxu0 0.0
    %2010 = vmatpush1.msra.mxu0 0.0
    %2011 = vmatprep.subr.mxu0 0.0
    %2012 = vmatpush1.msra.mxu0 0.0
    %2013 = vmatprep.subr.mxu0 0.0
    %2014 = vmatpush1.msra.mxu0 0.0
    %2015 = vmatprep.subr.mxu0 0.0
    %2016 = vmatpush1.msra.mxu0 0.0
    %2017 = vmatprep.mubr.f32.mxu0 0.0
    %2018 = vmatmul.mubr.f32.gmra.mrb[0].mxu0 %v1951
    %v2019 = vpop.f32.mrb[0].mxu0
    %v2020 = vadd.f32 0.0, %v2019
    %v2021 = vpop.f32.mrb[0].mxu0
    %2022 = vdwg.mxu0
    %v2023 = vadd.f32 %v1950, %v2020
    %v2024 = vxor.u32 %v1949, 2147483648
    %v2025 = vmul.f32 %v2024, 1.442695
    %v2026 = vpow.pop %v2025
    %v2027 = vadd.f32 %v2026, 1.0
    %v2028 = vrcp.pop %v2027
    %v2029 = vmul.f32 1.0, %v2028
    %v2030 = vxor.u32 %v2023, 2147483648
    %v2031 = vmul.f32 %v2030, 1.442695
    %v2032 = vpow.pop %v2031
    %v2033 = vadd.f32 %v2032, 1.0
    %v2034 = vrcp.pop %v2033
    %v2035 = vmul.f32 1.0, %v2034
    %v2036 = vmul.f32 %v2029, %v1838
    %v2037 = vtanh.pop %v1949
    %2039 = vrot.lane.b32.xlu0 %v2037, 64
    %v2040 = vpop.permute.xlu0 %2039
    %v2042 = vmul.f32 %v2029, %v2040
    %2044 = vrot.lane.b32.xlu0 %v2042, 32
    %v2045 = vpop.permute.xlu0 %2044
    %v2047 = vadd.f32 %v2036, %v2045
    %v2048 = vmul.f32 %v2035, %v1850
    %v2049 = vtanh.pop %v2023
    %2051 = vrot.lane.b32.xlu0 %v2049, 64
    %v2052 = vpop.permute.xlu0 %2051
    %v2054 = vmul.f32 %v2035, %v2052
    %2056 = vrot.lane.b32.xlu0 %v2054, 32
    %v2057 = vpop.permute.xlu0 %2056
    %v2059 = vadd.f32 %v2048, %v2057
    %v2060 = vtanh.pop %v2047
    %2062 = vrot.lane.b32.xlu0 %v2060, 64
    %v2063 = vpop.permute.xlu0 %2062
    %v2065 = vmul.f32 %v2029, %v2063
    %v2066 = vtanh.pop %v2059
    %2068 = vrot.lane.b32.xlu0 %v2066, 64
    %v2069 = vpop.permute.xlu0 %2068
    %v2071 = vmul.f32 %v2035, %v2069
    %2073 = vrot.lane.b32.xlu0 %v2065, 32
    %v2074 = vpop.permute.xlu0 %2073
    %s2076 = scalar_lea.vmem [#allocation3], 56
    %2077 = vst.msk [vmem:[%s2076] sm:$0xff] %vm408, %v2074
    %2079 = vrot.lane.b32.xlu0 %v2071, 32
    %v2080 = vpop.permute.xlu0 %2079
    %2082 = vst.msk [vmem:[#allocation4] sm:$0xff] %vm408, %v2080
    %v2083 = vld [vmem:[#allocation3] sm:$0xff]
    %v2084 = vld [vmem:[#allocation3 + $0x8] sm:$0xff]
    %v2085 = vld [vmem:[#allocation3 + $0x10] sm:$0xff]
    %v2086 = vld [vmem:[#allocation3 + $0x18] sm:$0xff]
    %v2087 = vld [vmem:[#allocation3 + $0x20] sm:$0xff]
    %v2088 = vld [vmem:[#allocation3 + $0x28] sm:$0xff]
    %v2089 = vld [vmem:[#allocation3 + $0x30] sm:$0xff]
    %v2090 = vld [vmem:[#allocation3 + $0x38] sm:$0xff]
    %v2091 = vld [vmem:[#allocation4] sm:$0xff]
    %v2092 = vld [vmem:[#allocation4 + $0x8] sm:$0xff]
    %v2093 = vld [vmem:[#allocation4 + $0x10] sm:$0xff]
    %v2094 = vld [vmem:[#allocation4 + $0x18] sm:$0xff]
    %v2095 = vld [vmem:[#allocation4 + $0x20] sm:$0xff]
    %v2096 = vld [vmem:[#allocation4 + $0x28] sm:$0xff]
    %v2097 = vld [vmem:[#allocation4 + $0x30] sm:$0xff]
    %v2098 = vld [vmem:[#allocation4 + $0x38] sm:$0xff]
    %v2099 = vld [vmem:[#allocation11] sm:$0xff]
    %v2100 = vld [vmem:[#allocation11 + $0x8] sm:$0xff]
    %v2101 = vld [vmem:[#allocation11 + $0x10] sm:$0xff]
    %v2102 = vld [vmem:[#allocation11 + $0x18] sm:$0xff]
    %s2103 = scalar_lea.vmem [#allocation11], 32
    %v2104 = vld [vmem:[%s2103] sm:$0xff]
    %v2105 = vld [vmem:[%s2103 + $0x8] sm:$0xff]
    %v2106 = vld [vmem:[%s2103 + $0x10] sm:$0xff]
    %v2107 = vld [vmem:[%s2103 + $0x18] sm:$0xff]
    %v2109 = vsel %vm408, %v2091, 0
    %v2112 = vsel %vm408, %v2092, 0
    %v2115 = vsel %vm408, %v2093, 0
    %v2118 = vsel %vm408, %v2094, 0
    %v2121 = vsel %vm408, %v2095, 0
    %v2124 = vsel %vm408, %v2096, 0
    %v2127 = vsel %vm408, %v2097, 0
    %v2130 = vsel %vm408, %v2098, 0
    %2132 = vmatprep.subr.mxu0 0.0
    %2133 = vmatpush1.msra.mxu0 %v2104
    %2134 = vmatprep.subr.mxu0 0.0
    %2135 = vmatpush1.msra.mxu0 %v2105
    %2136 = vmatprep.subr.mxu0 0.0
    %2137 = vmatpush1.msra.mxu0 %v2106
    %2138 = vmatprep.subr.mxu0 0.0
    %2139 = vmatpush1.msra.mxu0 %v2107
    %2140 = vmatprep.subr.mxu0 0.0
    %2141 = vmatpush1.msra.mxu0 0.0
    %2142 = vmatprep.subr.mxu0 0.0
    %2143 = vmatpush1.msra.mxu0 0.0
    %2144 = vmatprep.subr.mxu0 0.0
    %2145 = vmatpush1.msra.mxu0 0.0
    %2146 = vmatprep.subr.mxu0 0.0
    %2147 = vmatpush1.msra.mxu0 0.0
    %2148 = vmatprep.subr.mxu0 0.0
    %2149 = vmatpush1.msra.mxu0 0.0
    %2150 = vmatprep.subr.mxu0 0.0
    %2151 = vmatpush1.msra.mxu0 0.0
    %2152 = vmatprep.subr.mxu0 0.0
    %2153 = vmatpush1.msra.mxu0 0.0
    %2154 = vmatprep.subr.mxu0 0.0
    %2155 = vmatpush1.msra.mxu0 0.0
    %2156 = vmatprep.subr.mxu0 0.0
    %2157 = vmatpush1.msra.mxu0 0.0
    %2158 = vmatprep.subr.mxu0 0.0
    %2159 = vmatpush1.msra.mxu0 0.0
    %2160 = vmatprep.subr.mxu0 0.0
    %2161 = vmatpush1.msra.mxu0 0.0
    %2162 = vmatprep.subr.mxu0 0.0
    %2163 = vmatpush1.msra.mxu0 0.0
    %2164 = vmatprep.subr.mxu0 0.0
    %2165 = vmatpush1.msra.mxu0 0.0
    %2166 = vmatprep.subr.mxu0 0.0
    %2167 = vmatpush1.msra.mxu0 0.0
    %2168 = vmatprep.subr.mxu0 0.0
    %2169 = vmatpush1.msra.mxu0 0.0
    %2170 = vmatprep.subr.mxu0 0.0
    %2171 = vmatpush1.msra.mxu0 0.0
    %2172 = vmatprep.subr.mxu0 0.0
    %2173 = vmatpush1.msra.mxu0 0.0
    %2174 = vmatprep.subr.mxu0 0.0
    %2175 = vmatpush1.msra.mxu0 0.0
    %2176 = vmatprep.subr.mxu0 0.0
    %2177 = vmatpush1.msra.mxu0 0.0
    %2178 = vmatprep.subr.mxu0 0.0
    %2179 = vmatpush1.msra.mxu0 0.0
    %2180 = vmatprep.subr.mxu0 0.0
    %2181 = vmatpush1.msra.mxu0 0.0
    %2182 = vmatprep.subr.mxu0 0.0
    %2183 = vmatpush1.msra.mxu0 0.0
    %2184 = vmatprep.subr.mxu0 0.0
    %2185 = vmatpush1.msra.mxu0 0.0
    %2186 = vmatprep.subr.mxu0 0.0
    %2187 = vmatpush1.msra.mxu0 0.0
    %2188 = vmatprep.subr.mxu0 0.0
    %2189 = vmatpush1.msra.mxu0 0.0
    %2190 = vmatprep.subr.mxu0 0.0
    %2191 = vmatpush1.msra.mxu0 0.0
    %2192 = vmatprep.subr.mxu0 0.0
    %2193 = vmatpush1.msra.mxu0 0.0
    %2194 = vmatprep.subr.mxu0 0.0
    %2195 = vmatpush1.msra.mxu0 0.0
    %2196 = vmatprep.mubr.f32.mxu0 0.0
    %2197 = vmatmul.mubr.f32.gmra.mrb[0].mxu0 %v2109
    %v2198 = vpop.f32.mrb[0].mxu0
    %v2199 = vadd.f32 0.0, %v2198
    %v2200 = vpop.f32.mrb[0].mxu0
    %2201 = vmatprep.mubr.f32.mxu0 0.0
    %2202 = vmatmul.mubr.f32.gmra.mrb[0].mxu0 %v2112
    %v2203 = vpop.f32.mrb[0].mxu0
    %v2204 = vadd.f32 0.0, %v2203
    %v2205 = vpop.f32.mrb[0].mxu0
    %2206 = vmatprep.mubr.f32.mxu0 0.0
    %2207 = vmatmul.mubr.f32.gmra.mrb[0].mxu0 %v2115
    %v2208 = vpop.f32.mrb[0].mxu0
    %v2209 = vadd.f32 0.0, %v2208
    %v2210 = vpop.f32.mrb[0].mxu0
    %2211 = vmatprep.mubr.f32.mxu0 0.0
    %2212 = vmatmul.mubr.f32.gmra.mrb[0].mxu0 %v2118
    %v2213 = vpop.f32.mrb[0].mxu0
    %v2214 = vadd.f32 0.0, %v2213
    %v2215 = vpop.f32.mrb[0].mxu0
    %2216 = vmatprep.mubr.f32.mxu0 0.0
    %2217 = vmatmul.mubr.f32.gmra.mrb[0].mxu0 %v2121
    %v2218 = vpop.f32.mrb[0].mxu0
    %v2219 = vadd.f32 0.0, %v2218
    %v2220 = vpop.f32.mrb[0].mxu0
    %2221 = vmatprep.mubr.f32.mxu0 0.0
    %2222 = vmatmul.mubr.f32.gmra.mrb[0].mxu0 %v2124
    %v2223 = vpop.f32.mrb[0].mxu0
    %v2224 = vadd.f32 0.0, %v2223
    %v2225 = vpop.f32.mrb[0].mxu0
    %2226 = vmatprep.mubr.f32.mxu0 0.0
    %2227 = vmatmul.mubr.f32.gmra.mrb[0].mxu0 %v2127
    %v2228 = vpop.f32.mrb[0].mxu0
    %v2229 = vadd.f32 0.0, %v2228
    %v2230 = vpop.f32.mrb[0].mxu0
    %2231 = vmatprep.mubr.f32.mxu0 0.0
    %2232 = vmatmul.mubr.f32.gmra.mrb[0].mxu0 %v2130
    %v2233 = vpop.f32.mrb[0].mxu0
    %v2234 = vadd.f32 0.0, %v2233
    %v2235 = vpop.f32.mrb[0].mxu0
    %2236 = vdwg.mxu0
    %v2238 = vsel %vm408, %v2083, 0
    %v2241 = vsel %vm408, %v2084, 0
    %v2244 = vsel %vm408, %v2085, 0
    %v2247 = vsel %vm408, %v2086, 0
    %v2250 = vsel %vm408, %v2087, 0
    %v2253 = vsel %vm408, %v2088, 0
    %v2256 = vsel %vm408, %v2089, 0
    %v2259 = vsel %vm408, %v2090, 0
    %2261 = vmatprep.subr.mxu0 0.0
    %2262 = vmatpush1.msra.mxu0 %v2099
    %2263 = vmatprep.subr.mxu0 0.0
    %2264 = vmatpush1.msra.mxu0 %v2100
    %2265 = vmatprep.subr.mxu0 0.0
    %2266 = vmatpush1.msra.mxu0 %v2101
    %2267 = vmatprep.subr.mxu0 0.0
    %2268 = vmatpush1.msra.mxu0 %v2102
    %2269 = vmatprep.subr.mxu0 0.0
    %2270 = vmatpush1.msra.mxu0 0.0
    %2271 = vmatprep.subr.mxu0 0.0
    %2272 = vmatpush1.msra.mxu0 0.0
    %2273 = vmatprep.subr.mxu0 0.0
    %2274 = vmatpush1.msra.mxu0 0.0
    %2275 = vmatprep.subr.mxu0 0.0
    %2276 = vmatpush1.msra.mxu0 0.0
    %2277 = vmatprep.subr.mxu0 0.0
    %2278 = vmatpush1.msra.mxu0 0.0
    %2279 = vmatprep.subr.mxu0 0.0
    %2280 = vmatpush1.msra.mxu0 0.0
    %2281 = vmatprep.subr.mxu0 0.0
    %2282 = vmatpush1.msra.mxu0 0.0
    %2283 = vmatprep.subr.mxu0 0.0
    %2284 = vmatpush1.msra.mxu0 0.0
    %2285 = vmatprep.subr.mxu0 0.0
    %2286 = vmatpush1.msra.mxu0 0.0
    %2287 = vmatprep.subr.mxu0 0.0
    %2288 = vmatpush1.msra.mxu0 0.0
    %2289 = vmatprep.subr.mxu0 0.0
    %2290 = vmatpush1.msra.mxu0 0.0
    %2291 = vmatprep.subr.mxu0 0.0
    %2292 = vmatpush1.msra.mxu0 0.0
    %2293 = vmatprep.subr.mxu0 0.0
    %2294 = vmatpush1.msra.mxu0 0.0
    %2295 = vmatprep.subr.mxu0 0.0
    %2296 = vmatpush1.msra.mxu0 0.0
    %2297 = vmatprep.subr.mxu0 0.0
    %2298 = vmatpush1.msra.mxu0 0.0
    %2299 = vmatprep.subr.mxu0 0.0
    %2300 = vmatpush1.msra.mxu0 0.0
    %2301 = vmatprep.subr.mxu0 0.0
    %2302 = vmatpush1.msra.mxu0 0.0
    %2303 = vmatprep.subr.mxu0 0.0
    %2304 = vmatpush1.msra.mxu0 0.0
    %2305 = vmatprep.subr.mxu0 0.0
    %2306 = vmatpush1.msra.mxu0 0.0
    %2307 = vmatprep.subr.mxu0 0.0
    %2308 = vmatpush1.msra.mxu0 0.0
    %2309 = vmatprep.subr.mxu0 0.0
    %2310 = vmatpush1.msra.mxu0 0.0
    %2311 = vmatprep.subr.mxu0 0.0
    %2312 = vmatpush1.msra.mxu0 0.0
    %2313 = vmatprep.subr.mxu0 0.0
    %2314 = vmatpush1.msra.mxu0 0.0
    %2315 = vmatprep.subr.mxu0 0.0
    %2316 = vmatpush1.msra.mxu0 0.0
    %2317 = vmatprep.subr.mxu0 0.0
    %2318 = vmatpush1.msra.mxu0 0.0
    %2319 = vmatprep.subr.mxu0 0.0
    %2320 = vmatpush1.msra.mxu0 0.0
    %2321 = vmatprep.subr.mxu0 0.0
    %2322 = vmatpush1.msra.mxu0 0.0
    %2323 = vmatprep.subr.mxu0 0.0
    %2324 = vmatpush1.msra.mxu0 0.0
    %2325 = vmatprep.mubr.f32.mxu0 0.0
    %2326 = vmatmul.mubr.f32.gmra.mrb[0].mxu0 %v2238
    %v2327 = vpop.f32.mrb[0].mxu0
    %v2328 = vadd.f32 %v2199, %v2327
    %v2329 = vpop.f32.mrb[0].mxu0
    %2330 = vmatprep.mubr.f32.mxu0 0.0
    %2331 = vmatmul.mubr.f32.gmra.mrb[0].mxu0 %v2241
    %v2332 = vpop.f32.mrb[0].mxu0
    %v2333 = vadd.f32 %v2204, %v2332
    %v2334 = vpop.f32.mrb[0].mxu0
    %2335 = vmatprep.mubr.f32.mxu0 0.0
    %2336 = vmatmul.mubr.f32.gmra.mrb[0].mxu0 %v2244
    %v2337 = vpop.f32.mrb[0].mxu0
    %v2338 = vadd.f32 %v2209, %v2337
    %v2339 = vpop.f32.mrb[0].mxu0
    %2340 = vmatprep.mubr.f32.mxu0 0.0
    %2341 = vmatmul.mubr.f32.gmra.mrb[0].mxu0 %v2247
    %v2342 = vpop.f32.mrb[0].mxu0
    %v2343 = vadd.f32 %v2214, %v2342
    %v2344 = vpop.f32.mrb[0].mxu0
    %2345 = vmatprep.mubr.f32.mxu0 0.0
    %2346 = vmatmul.mubr.f32.gmra.mrb[0].mxu0 %v2250
    %v2347 = vpop.f32.mrb[0].mxu0
    %v2348 = vadd.f32 %v2219, %v2347
    %v2349 = vpop.f32.mrb[0].mxu0
    %2350 = vmatprep.mubr.f32.mxu0 0.0
    %2351 = vmatmul.mubr.f32.gmra.mrb[0].mxu0 %v2253
    %v2352 = vpop.f32.mrb[0].mxu0
    %v2353 = vadd.f32 %v2224, %v2352
    %v2354 = vpop.f32.mrb[0].mxu0
    %2355 = vmatprep.mubr.f32.mxu0 0.0
    %2356 = vmatmul.mubr.f32.gmra.mrb[0].mxu0 %v2256
    %v2357 = vpop.f32.mrb[0].mxu0
    %v2358 = vadd.f32 %v2229, %v2357
    %v2359 = vpop.f32.mrb[0].mxu0
    %2360 = vmatprep.mubr.f32.mxu0 0.0
    %2361 = vmatmul.mubr.f32.gmra.mrb[0].mxu0 %v2259
    %v2362 = vpop.f32.mrb[0].mxu0
    %v2363 = vadd.f32 %v2234, %v2362
    %v2364 = vpop.f32.mrb[0].mxu0
    %2365 = vdwg.mxu0
    %v2366 = vld [vmem:[%s6] sm:$0x1]
    %v2368 = vlaneseq
    %v2369 = vshrl.u32 %v2368, 7
    %v2370 = vsub.s32 0, %v2369
    %v2371 = vrot.slane %v2366, %v2370
    %v2373 = vadd.f32 %v2328, %v2371
    %v2374 = vadd.f32 %v2333, %v2371
    %v2375 = vadd.f32 %v2338, %v2371
    %v2376 = vadd.f32 %v2343, %v2371
    %v2377 = vadd.f32 %v2348, %v2371
    %v2378 = vadd.f32 %v2353, %v2371
    %v2379 = vadd.f32 %v2358, %v2371
    %v2380 = vadd.f32 %v2363, %v2371
    %2381 = vst [vmem:[#allocation2] sm:$0xff] %v2373
    %2382 = vst [vmem:[#allocation2 + $0x8] sm:$0xff] %v2374
    %2383 = vst [vmem:[#allocation2 + $0x10] sm:$0xff] %v2375
    %2384 = vst [vmem:[#allocation2 + $0x18] sm:$0xff] %v2376
    %2385 = vst [vmem:[#allocation2 + $0x20] sm:$0xff] %v2377
    %2386 = vst [vmem:[#allocation2 + $0x28] sm:$0xff] %v2378
    %2387 = vst [vmem:[#allocation2 + $0x30] sm:$0xff] %v2379
    %2388 = vst [vmem:[#allocation2 + $0x38] sm:$0xff] %v2380
    %s2389 = scalar_lea.vmem [#allocation11], 64
    %v2390 = vld [vmem:[%s2389] sm:$0xff]
    %v2391 = vld [vmem:[%s2389 + $0x8] sm:$0xff]
    %v2392 = vld [vmem:[%s2389 + $0x10] sm:$0xff]
    %v2393 = vld [vmem:[%s2389 + $0x18] sm:$0xff]
    %s2394 = scalar_lea.vmem [#allocation11], 96
    %v2395 = vld [vmem:[%s2394] sm:$0xff]
    %v2396 = vld [vmem:[%s2394 + $0x8] sm:$0xff]
    %v2397 = vld [vmem:[%s2394 + $0x10] sm:$0xff]
    %v2398 = vld [vmem:[%s2394 + $0x18] sm:$0xff]
    %2399 = vmatprep.subr.mxu0 0.0
    %2400 = vmatpush1.msra.mxu0 %v2395
    %2401 = vmatprep.subr.mxu0 0.0
    %2402 = vmatpush1.msra.mxu0 %v2396
    %2403 = vmatprep.subr.mxu0 0.0
    %2404 = vmatpush1.msra.mxu0 %v2397
    %2405 = vmatprep.subr.mxu0 0.0
    %2406 = vmatpush1.msra.mxu0 %v2398
    %2407 = vmatprep.subr.mxu0 0.0
    %2408 = vmatpush1.msra.mxu0 0.0
    %2409 = vmatprep.subr.mxu0 0.0
    %2410 = vmatpush1.msra.mxu0 0.0
    %2411 = vmatprep.subr.mxu0 0.0
    %2412 = vmatpush1.msra.mxu0 0.0
    %2413 = vmatprep.subr.mxu0 0.0
    %2414 = vmatpush1.msra.mxu0 0.0
    %2415 = vmatprep.subr.mxu0 0.0
    %2416 = vmatpush1.msra.mxu0 0.0
    %2417 = vmatprep.subr.mxu0 0.0
    %2418 = vmatpush1.msra.mxu0 0.0
    %2419 = vmatprep.subr.mxu0 0.0
    %2420 = vmatpush1.msra.mxu0 0.0
    %2421 = vmatprep.subr.mxu0 0.0
    %2422 = vmatpush1.msra.mxu0 0.0
    %2423 = vmatprep.subr.mxu0 0.0
    %2424 = vmatpush1.msra.mxu0 0.0
    %2425 = vmatprep.subr.mxu0 0.0
    %2426 = vmatpush1.msra.mxu0 0.0
    %2427 = vmatprep.subr.mxu0 0.0
    %2428 = vmatpush1.msra.mxu0 0.0
    %2429 = vmatprep.subr.mxu0 0.0
    %2430 = vmatpush1.msra.mxu0 0.0
    %2431 = vmatprep.subr.mxu0 0.0
    %2432 = vmatpush1.msra.mxu0 0.0
    %2433 = vmatprep.subr.mxu0 0.0
    %2434 = vmatpush1.msra.mxu0 0.0
    %2435 = vmatprep.subr.mxu0 0.0
    %2436 = vmatpush1.msra.mxu0 0.0
    %2437 = vmatprep.subr.mxu0 0.0
    %2438 = vmatpush1.msra.mxu0 0.0
    %2439 = vmatprep.subr.mxu0 0.0
    %2440 = vmatpush1.msra.mxu0 0.0
    %2441 = vmatprep.subr.mxu0 0.0
    %2442 = vmatpush1.msra.mxu0 0.0
    %2443 = vmatprep.subr.mxu0 0.0
    %2444 = vmatpush1.msra.mxu0 0.0
    %2445 = vmatprep.subr.mxu0 0.0
    %2446 = vmatpush1.msra.mxu0 0.0
    %2447 = vmatprep.subr.mxu0 0.0
    %2448 = vmatpush1.msra.mxu0 0.0
    %2449 = vmatprep.subr.mxu0 0.0
    %2450 = vmatpush1.msra.mxu0 0.0
    %2451 = vmatprep.subr.mxu0 0.0
    %2452 = vmatpush1.msra.mxu0 0.0
    %2453 = vmatprep.subr.mxu0 0.0
    %2454 = vmatpush1.msra.mxu0 0.0
    %2455 = vmatprep.subr.mxu0 0.0
    %2456 = vmatpush1.msra.mxu0 0.0
    %2457 = vmatprep.subr.mxu0 0.0
    %2458 = vmatpush1.msra.mxu0 0.0
    %2459 = vmatprep.subr.mxu0 0.0
    %2460 = vmatpush1.msra.mxu0 0.0
    %2461 = vmatprep.subr.mxu0 0.0
    %2462 = vmatpush1.msra.mxu0 0.0
    %2463 = vmatprep.mubr.f32.mxu0 0.0
    %2464 = vmatmul.mubr.f32.gmra.mrb[0].mxu0 %v2109
    %v2465 = vpop.f32.mrb[0].mxu0
    %v2466 = vadd.f32 0.0, %v2465
    %v2467 = vpop.f32.mrb[0].mxu0
    %2468 = vmatprep.mubr.f32.mxu0 0.0
    %2469 = vmatmul.mubr.f32.gmra.mrb[0].mxu0 %v2112
    %v2470 = vpop.f32.mrb[0].mxu0
    %v2471 = vadd.f32 0.0, %v2470
    %v2472 = vpop.f32.mrb[0].mxu0
    %2473 = vmatprep.mubr.f32.mxu0 0.0
    %2474 = vmatmul.mubr.f32.gmra.mrb[0].mxu0 %v2115
    %v2475 = vpop.f32.mrb[0].mxu0
    %v2476 = vadd.f32 0.0, %v2475
    %v2477 = vpop.f32.mrb[0].mxu0
    %2478 = vmatprep.mubr.f32.mxu0 0.0
    %2479 = vmatmul.mubr.f32.gmra.mrb[0].mxu0 %v2118
    %v2480 = vpop.f32.mrb[0].mxu0
    %v2481 = vadd.f32 0.0, %v2480
    %v2482 = vpop.f32.mrb[0].mxu0
    %2483 = vmatprep.mubr.f32.mxu0 0.0
    %2484 = vmatmul.mubr.f32.gmra.mrb[0].mxu0 %v2121
    %v2485 = vpop.f32.mrb[0].mxu0
    %v2486 = vadd.f32 0.0, %v2485
    %v2487 = vpop.f32.mrb[0].mxu0
    %2488 = vmatprep.mubr.f32.mxu0 0.0
    %2489 = vmatmul.mubr.f32.gmra.mrb[0].mxu0 %v2124
    %v2490 = vpop.f32.mrb[0].mxu0
    %v2491 = vadd.f32 0.0, %v2490
    %v2492 = vpop.f32.mrb[0].mxu0
    %2493 = vmatprep.mubr.f32.mxu0 0.0
    %2494 = vmatmul.mubr.f32.gmra.mrb[0].mxu0 %v2127
    %v2495 = vpop.f32.mrb[0].mxu0
    %v2496 = vadd.f32 0.0, %v2495
    %v2497 = vpop.f32.mrb[0].mxu0
    %2498 = vmatprep.mubr.f32.mxu0 0.0
    %2499 = vmatmul.mubr.f32.gmra.mrb[0].mxu0 %v2130
    %v2500 = vpop.f32.mrb[0].mxu0
    %v2501 = vadd.f32 0.0, %v2500
    %v2502 = vpop.f32.mrb[0].mxu0
    %2503 = vdwg.mxu0
    %2504 = vmatprep.subr.mxu0 0.0
    %2505 = vmatpush1.msra.mxu0 %v2390
    %2506 = vmatprep.subr.mxu0 0.0
    %2507 = vmatpush1.msra.mxu0 %v2391
    %2508 = vmatprep.subr.mxu0 0.0
    %2509 = vmatpush1.msra.mxu0 %v2392
    %2510 = vmatprep.subr.mxu0 0.0
    %2511 = vmatpush1.msra.mxu0 %v2393
    %2512 = vmatprep.subr.mxu0 0.0
    %2513 = vmatpush1.msra.mxu0 0.0
    %2514 = vmatprep.subr.mxu0 0.0
    %2515 = vmatpush1.msra.mxu0 0.0
    %2516 = vmatprep.subr.mxu0 0.0
    %2517 = vmatpush1.msra.mxu0 0.0
    %2518 = vmatprep.subr.mxu0 0.0
    %2519 = vmatpush1.msra.mxu0 0.0
    %2520 = vmatprep.subr.mxu0 0.0
    %2521 = vmatpush1.msra.mxu0 0.0
    %2522 = vmatprep.subr.mxu0 0.0
    %2523 = vmatpush1.msra.mxu0 0.0
    %2524 = vmatprep.subr.mxu0 0.0
    %2525 = vmatpush1.msra.mxu0 0.0
    %2526 = vmatprep.subr.mxu0 0.0
    %2527 = vmatpush1.msra.mxu0 0.0
    %2528 = vmatprep.subr.mxu0 0.0
    %2529 = vmatpush1.msra.mxu0 0.0
    %2530 = vmatprep.subr.mxu0 0.0
    %2531 = vmatpush1.msra.mxu0 0.0
    %2532 = vmatprep.subr.mxu0 0.0
    %2533 = vmatpush1.msra.mxu0 0.0
    %2534 = vmatprep.subr.mxu0 0.0
    %2535 = vmatpush1.msra.mxu0 0.0
    %2536 = vmatprep.subr.mxu0 0.0
    %2537 = vmatpush1.msra.mxu0 0.0
    %2538 = vmatprep.subr.mxu0 0.0
    %2539 = vmatpush1.msra.mxu0 0.0
    %2540 = vmatprep.subr.mxu0 0.0
    %2541 = vmatpush1.msra.mxu0 0.0
    %2542 = vmatprep.subr.mxu0 0.0
    %2543 = vmatpush1.msra.mxu0 0.0
    %2544 = vmatprep.subr.mxu0 0.0
    %2545 = vmatpush1.msra.mxu0 0.0
    %2546 = vmatprep.subr.mxu0 0.0
    %2547 = vmatpush1.msra.mxu0 0.0
    %2548 = vmatprep.subr.mxu0 0.0
    %2549 = vmatpush1.msra.mxu0 0.0
    %2550 = vmatprep.subr.mxu0 0.0
    %2551 = vmatpush1.msra.mxu0 0.0
    %2552 = vmatprep.subr.mxu0 0.0
    %2553 = vmatpush1.msra.mxu0 0.0
    %2554 = vmatprep.subr.mxu0 0.0
    %2555 = vmatpush1.msra.mxu0 0.0
    %2556 = vmatprep.subr.mxu0 0.0
    %2557 = vmatpush1.msra.mxu0 0.0
    %2558 = vmatprep.subr.mxu0 0.0
    %2559 = vmatpush1.msra.mxu0 0.0
    %2560 = vmatprep.subr.mxu0 0.0
    %2561 = vmatpush1.msra.mxu0 0.0
    %2562 = vmatprep.subr.mxu0 0.0
    %2563 = vmatpush1.msra.mxu0 0.0
    %2564 = vmatprep.subr.mxu0 0.0
    %2565 = vmatpush1.msra.mxu0 0.0
    %2566 = vmatprep.subr.mxu0 0.0
    %2567 = vmatpush1.msra.mxu0 0.0
    %2568 = vmatprep.mubr.f32.mxu0 0.0
    %2569 = vmatmul.mubr.f32.gmra.mrb[0].mxu0 %v2238
    %v2570 = vpop.f32.mrb[0].mxu0
    %v2571 = vadd.f32 %v2466, %v2570
    %v2572 = vpop.f32.mrb[0].mxu0
    %2573 = vmatprep.mubr.f32.mxu0 0.0
    %2574 = vmatmul.mubr.f32.gmra.mrb[0].mxu0 %v2241
    %v2575 = vpop.f32.mrb[0].mxu0
    %v2576 = vadd.f32 %v2471, %v2575
    %v2577 = vpop.f32.mrb[0].mxu0
    %2578 = vmatprep.mubr.f32.mxu0 0.0
    %2579 = vmatmul.mubr.f32.gmra.mrb[0].mxu0 %v2244
    %v2580 = vpop.f32.mrb[0].mxu0
    %v2581 = vadd.f32 %v2476, %v2580
    %v2582 = vpop.f32.mrb[0].mxu0
    %2583 = vmatprep.mubr.f32.mxu0 0.0
    %2584 = vmatmul.mubr.f32.gmra.mrb[0].mxu0 %v2247
    %v2585 = vpop.f32.mrb[0].mxu0
    %v2586 = vadd.f32 %v2481, %v2585
    %v2587 = vpop.f32.mrb[0].mxu0
    %2588 = vmatprep.mubr.f32.mxu0 0.0
    %2589 = vmatmul.mubr.f32.gmra.mrb[0].mxu0 %v2250
    %v2590 = vpop.f32.mrb[0].mxu0
    %v2591 = vadd.f32 %v2486, %v2590
    %v2592 = vpop.f32.mrb[0].mxu0
    %2593 = vmatprep.mubr.f32.mxu0 0.0
    %2594 = vmatmul.mubr.f32.gmra.mrb[0].mxu0 %v2253
    %v2595 = vpop.f32.mrb[0].mxu0
    %v2596 = vadd.f32 %v2491, %v2595
    %v2597 = vpop.f32.mrb[0].mxu0
    %2598 = vmatprep.mubr.f32.mxu0 0.0
    %2599 = vmatmul.mubr.f32.gmra.mrb[0].mxu0 %v2256
    %v2600 = vpop.f32.mrb[0].mxu0
    %v2601 = vadd.f32 %v2496, %v2600
    %v2602 = vpop.f32.mrb[0].mxu0
    %2603 = vmatprep.mubr.f32.mxu0 0.0
    %2604 = vmatmul.mubr.f32.gmra.mrb[0].mxu0 %v2259
    %v2605 = vpop.f32.mrb[0].mxu0
    %v2606 = vadd.f32 %v2501, %v2605
    %v2607 = vpop.f32.mrb[0].mxu0
    %2608 = vdwg.mxu0
    %s2609 = scalar_lea.vmem %s6, 1
    %v2610 = vld [vmem:[%s2609] sm:$0x1]
    %v2612 = vlaneseq
    %v2613 = vshrl.u32 %v2612, 7
    %v2614 = vsub.s32 0, %v2613
    %v2615 = vrot.slane %v2610, %v2614
    %v2617 = vadd.f32 %v2571, %v2615
    %v2618 = vadd.f32 %v2576, %v2615
    %v2619 = vadd.f32 %v2581, %v2615
    %v2620 = vadd.f32 %v2586, %v2615
    %v2621 = vadd.f32 %v2591, %v2615
    %v2622 = vadd.f32 %v2596, %v2615
    %v2623 = vadd.f32 %v2601, %v2615
    %v2624 = vadd.f32 %v2606, %v2615
    %2625 = vst [vmem:[%s389] sm:$0xff] %v2617
    %2626 = vst [vmem:[%s389 + $0x8] sm:$0xff] %v2618
    %2627 = vst [vmem:[%s389 + $0x10] sm:$0xff] %v2619
    %2628 = vst [vmem:[%s389 + $0x18] sm:$0xff] %v2620
    %2629 = vst [vmem:[%s389 + $0x20] sm:$0xff] %v2621
    %2630 = vst [vmem:[%s389 + $0x28] sm:$0xff] %v2622
    %2631 = vst [vmem:[%s389 + $0x30] sm:$0xff] %v2623
    %2632 = vst [vmem:[%s389 + $0x38] sm:$0xff] %v2624
    %v2633 = vld [vmem:[#allocation13] sm:$0xff]
    %v2634 = vld [vmem:[#allocation13 + $0x8] sm:$0xff]
    %v2635 = vld [vmem:[#allocation13 + $0x10] sm:$0xff]
    %v2636 = vld [vmem:[#allocation13 + $0x18] sm:$0xff]
    %s2637 = scalar_lea.vmem [#allocation13], 32
    %v2638 = vld [vmem:[%s2637] sm:$0xff]
    %v2639 = vld [vmem:[%s2637 + $0x8] sm:$0xff]
    %v2640 = vld [vmem:[%s2637 + $0x10] sm:$0xff]
    %v2641 = vld [vmem:[%s2637 + $0x18] sm:$0xff]
    %v2642 = vld [vmem:[%s7] sm:$0x1]
    %s2643 = scalar_lea.vmem %s7, 1
    %v2644 = vld [vmem:[%s2643] sm:$0x1]
    %2645 = vmatprep.subr.mxu0 0.0
    %2646 = vmatpush1.msra.mxu0 %v2633
    %2647 = vmatprep.subr.mxu0 0.0
    %2648 = vmatpush1.msra.mxu0 %v2634
    %2649 = vmatprep.subr.mxu0 0.0
    %2650 = vmatpush1.msra.mxu0 %v2635
    %2651 = vmatprep.subr.mxu0 0.0
    %2652 = vmatpush1.msra.mxu0 %v2636
    %2653 = vmatprep.subr.mxu0 0.0
    %2654 = vmatpush1.msra.mxu0 0.0
    %2655 = vmatprep.subr.mxu0 0.0
    %2656 = vmatpush1.msra.mxu0 0.0
    %2657 = vmatprep.subr.mxu0 0.0
    %2658 = vmatpush1.msra.mxu0 0.0
    %2659 = vmatprep.subr.mxu0 0.0
    %2660 = vmatpush1.msra.mxu0 0.0
    %2661 = vmatprep.subr.mxu0 0.0
    %2662 = vmatpush1.msra.mxu0 0.0
    %2663 = vmatprep.subr.mxu0 0.0
    %2664 = vmatpush1.msra.mxu0 0.0
    %2665 = vmatprep.subr.mxu0 0.0
    %2666 = vmatpush1.msra.mxu0 0.0
    %2667 = vmatprep.subr.mxu0 0.0
    %2668 = vmatpush1.msra.mxu0 0.0
    %2669 = vmatprep.subr.mxu0 0.0
    %2670 = vmatpush1.msra.mxu0 0.0
    %2671 = vmatprep.subr.mxu0 0.0
    %2672 = vmatpush1.msra.mxu0 0.0
    %2673 = vmatprep.subr.mxu0 0.0
    %2674 = vmatpush1.msra.mxu0 0.0
    %2675 = vmatprep.subr.mxu0 0.0
    %2676 = vmatpush1.msra.mxu0 0.0
    %2677 = vmatprep.subr.mxu0 0.0
    %2678 = vmatpush1.msra.mxu0 0.0
    %2679 = vmatprep.subr.mxu0 0.0
    %2680 = vmatpush1.msra.mxu0 0.0
    %2681 = vmatprep.subr.mxu0 0.0
    %2682 = vmatpush1.msra.mxu0 0.0
    %2683 = vmatprep.subr.mxu0 0.0
    %2684 = vmatpush1.msra.mxu0 0.0
    %2685 = vmatprep.subr.mxu0 0.0
    %2686 = vmatpush1.msra.mxu0 0.0
    %2687 = vmatprep.subr.mxu0 0.0
    %2688 = vmatpush1.msra.mxu0 0.0
    %2689 = vmatprep.subr.mxu0 0.0
    %2690 = vmatpush1.msra.mxu0 0.0
    %2691 = vmatprep.subr.mxu0 0.0
    %2692 = vmatpush1.msra.mxu0 0.0
    %2693 = vmatprep.subr.mxu0 0.0
    %2694 = vmatpush1.msra.mxu0 0.0
    %2695 = vmatprep.subr.mxu0 0.0
    %2696 = vmatpush1.msra.mxu0 0.0
    %2697 = vmatprep.subr.mxu0 0.0
    %2698 = vmatpush1.msra.mxu0 0.0
    %2699 = vmatprep.subr.mxu0 0.0
    %2700 = vmatpush1.msra.mxu0 0.0
    %2701 = vmatprep.subr.mxu0 0.0
    %2702 = vmatpush1.msra.mxu0 0.0
    %2703 = vmatprep.subr.mxu0 0.0
    %2704 = vmatpush1.msra.mxu0 0.0
    %2705 = vmatprep.subr.mxu0 0.0
    %2706 = vmatpush1.msra.mxu0 0.0
    %2707 = vmatprep.subr.mxu0 0.0
    %2708 = vmatpush1.msra.mxu0 0.0
    %2709 = vmatprep.mubr.f32.mxu0 0.0
    %2710 = vmatmul.mubr.f32.gmra.mrb[0].mxu0 %v410
    %v2711 = vpop.f32.mrb[0].mxu0
    %v2712 = vadd.f32 0.0, %v2711
    %v2713 = vpop.f32.mrb[0].mxu0
    %2714 = vdwg.mxu0
    %2715 = vmatprep.subr.mxu0 0.0
    %2716 = vmatpush1.msra.mxu0 %v2638
    %2717 = vmatprep.subr.mxu0 0.0
    %2718 = vmatpush1.msra.mxu0 %v2639
    %2719 = vmatprep.subr.mxu0 0.0
    %2720 = vmatpush1.msra.mxu0 %v2640
    %2721 = vmatprep.subr.mxu0 0.0
    %2722 = vmatpush1.msra.mxu0 %v2641
    %2723 = vmatprep.subr.mxu0 0.0
    %2724 = vmatpush1.msra.mxu0 0.0
    %2725 = vmatprep.subr.mxu0 0.0
    %2726 = vmatpush1.msra.mxu0 0.0
    %2727 = vmatprep.subr.mxu0 0.0
    %2728 = vmatpush1.msra.mxu0 0.0
    %2729 = vmatprep.subr.mxu0 0.0
    %2730 = vmatpush1.msra.mxu0 0.0
    %2731 = vmatprep.subr.mxu0 0.0
    %2732 = vmatpush1.msra.mxu0 0.0
    %2733 = vmatprep.subr.mxu0 0.0
    %2734 = vmatpush1.msra.mxu0 0.0
    %2735 = vmatprep.subr.mxu0 0.0
    %2736 = vmatpush1.msra.mxu0 0.0
    %2737 = vmatprep.subr.mxu0 0.0
    %2738 = vmatpush1.msra.mxu0 0.0
    %2739 = vmatprep.subr.mxu0 0.0
    %2740 = vmatpush1.msra.mxu0 0.0
    %2741 = vmatprep.subr.mxu0 0.0
    %2742 = vmatpush1.msra.mxu0 0.0
    %2743 = vmatprep.subr.mxu0 0.0
    %2744 = vmatpush1.msra.mxu0 0.0
    %2745 = vmatprep.subr.mxu0 0.0
    %2746 = vmatpush1.msra.mxu0 0.0
    %2747 = vmatprep.subr.mxu0 0.0
    %2748 = vmatpush1.msra.mxu0 0.0
    %2749 = vmatprep.subr.mxu0 0.0
    %2750 = vmatpush1.msra.mxu0 0.0
    %2751 = vmatprep.subr.mxu0 0.0
    %2752 = vmatpush1.msra.mxu0 0.0
    %2753 = vmatprep.subr.mxu0 0.0
    %2754 = vmatpush1.msra.mxu0 0.0
    %2755 = vmatprep.subr.mxu0 0.0
    %2756 = vmatpush1.msra.mxu0 0.0
    %2757 = vmatprep.subr.mxu0 0.0
    %2758 = vmatpush1.msra.mxu0 0.0
    %2759 = vmatprep.subr.mxu0 0.0
    %2760 = vmatpush1.msra.mxu0 0.0
    %2761 = vmatprep.subr.mxu0 0.0
    %2762 = vmatpush1.msra.mxu0 0.0
    %2763 = vmatprep.subr.mxu0 0.0
    %2764 = vmatpush1.msra.mxu0 0.0
    %2765 = vmatprep.subr.mxu0 0.0
    %2766 = vmatpush1.msra.mxu0 0.0
    %2767 = vmatprep.subr.mxu0 0.0
    %2768 = vmatpush1.msra.mxu0 0.0
    %2769 = vmatprep.subr.mxu0 0.0
    %2770 = vmatpush1.msra.mxu0 0.0
    %2771 = vmatprep.subr.mxu0 0.0
    %2772 = vmatpush1.msra.mxu0 0.0
    %2773 = vmatprep.subr.mxu0 0.0
    %2774 = vmatpush1.msra.mxu0 0.0
    %2775 = vmatprep.subr.mxu0 0.0
    %2776 = vmatpush1.msra.mxu0 0.0
    %2777 = vmatprep.subr.mxu0 0.0
    %2778 = vmatpush1.msra.mxu0 0.0
    %2779 = vmatprep.mubr.f32.mxu0 0.0
    %2780 = vmatmul.mubr.f32.gmra.mrb[0].mxu0 %v410
    %v2781 = vpop.f32.mrb[0].mxu0
    %v2782 = vadd.f32 0.0, %v2781
    %v2783 = vpop.f32.mrb[0].mxu0
    %2784 = vdwg.mxu0
    %v2785 = vld [vmem:[#allocation2] sm:$0xff]
    %v2786 = vld [vmem:[%s483] sm:$0xff]
    %v2787 = vadd.f32 %v2785, %v2712
    %v2788 = vxor.u32 %v2787, 2147483648
    %v2789 = vmul.f32 %v2788, 1.442695
    %v2790 = vpow.pop %v2789
    %v2791 = vadd.f32 %v2790, 1.0
    %v2792 = vrcp.pop %v2791
    %v2793 = vmul.f32 1.0, %v2792
    %v2794 = vadd.f32 %v2786, %v2782
    %v2795 = vxor.u32 %v2794, 2147483648
    %v2796 = vmul.f32 %v2795, 1.442695
    %v2797 = vpow.pop %v2796
    %v2798 = vadd.f32 %v2797, 1.0
    %v2799 = vrcp.pop %v2798
    %v2800 = vmul.f32 1.0, %v2799
    %v2802 = vlaneseq
    %v2803 = vshrl.u32 %v2802, 7
    %v2804 = vsub.s32 0, %v2803
    %v2805 = vrot.slane %v2642, %v2804
    %2806 = vrot.lane.b32.xlu0 %v2805, 64
    %v2807 = vpop.permute.xlu0 %2806
    %v2809 = vadd.f32 %v2712, %v2807
    %2811 = vrot.lane.b32.xlu0 %v2809, 64
    %v2812 = vpop.permute.xlu0 %2811
    %v2814 = vmul.f32 %v2793, %v2812
    %2816 = vrot.lane.b32.xlu0 %v2814, 64
    %v2817 = vpop.permute.xlu0 %2816
    %v2819 = vadd.f32 %v2785, %v2817
    %v2820 = vtanh.pop %v2819
    %v2822 = vlaneseq
    %v2823 = vshrl.u32 %v2822, 7
    %v2824 = vsub.s32 0, %v2823
    %v2825 = vrot.slane %v2644, %v2824
    %2826 = vrot.lane.b32.xlu0 %v2825, 64
    %v2827 = vpop.permute.xlu0 %2826
    %v2829 = vadd.f32 %v2782, %v2827
    %2831 = vrot.lane.b32.xlu0 %v2829, 64
    %v2832 = vpop.permute.xlu0 %2831
    %v2834 = vmul.f32 %v2800, %v2832
    %2836 = vrot.lane.b32.xlu0 %v2834, 64
    %v2837 = vpop.permute.xlu0 %2836
    %v2839 = vadd.f32 %v2786, %v2837
    %v2840 = vtanh.pop %v2839
    %v2841 = vsub.f32 1.0, %v2793
    %2843 = vrot.lane.b32.xlu0 %v2820, 96
    %v2844 = vpop.permute.xlu0 %2843
    %v2846 = vmul.f32 %v2841, %v2844
    %v2847 = vmul.f32 %v2793, 0.0
    %v2848 = vadd.f32 %v2846, %v2847
    %v2849 = vsub.f32 1.0, %v2800
    %2851 = vrot.lane.b32.xlu0 %v2840, 96
    %v2852 = vpop.permute.xlu0 %2851
    %v2854 = vmul.f32 %v2849, %v2852
    %v2855 = vmul.f32 %v2800, 0.0
    %v2856 = vadd.f32 %v2854, %v2855
    %v2857 = vadd.f32 %v2848, 0.0
    %v2858 = vadd.f32 %v2856, 0.0
    %2860 = vrot.lane.b32.xlu0 %v2848, 96
    %v2861 = vpop.permute.xlu0 %2860
    %v2862 = vsel %vm408, %v2861, 0
    %2864 = vmatprep.subr.mxu0 0.0
    %2865 = vmatpush1.msra.mxu0 %v2633
    %2866 = vmatprep.subr.mxu0 0.0
    %2867 = vmatpush1.msra.mxu0 %v2634
    %2868 = vmatprep.subr.mxu0 0.0
    %2869 = vmatpush1.msra.mxu0 %v2635
    %2870 = vmatprep.subr.mxu0 0.0
    %2871 = vmatpush1.msra.mxu0 %v2636
    %2872 = vmatprep.subr.mxu0 0.0
    %2873 = vmatpush1.msra.mxu0 0.0
    %2874 = vmatprep.subr.mxu0 0.0
    %2875 = vmatpush1.msra.mxu0 0.0
    %2876 = vmatprep.subr.mxu0 0.0
    %2877 = vmatpush1.msra.mxu0 0.0
    %2878 = vmatprep.subr.mxu0 0.0
    %2879 = vmatpush1.msra.mxu0 0.0
    %2880 = vmatprep.subr.mxu0 0.0
    %2881 = vmatpush1.msra.mxu0 0.0
    %2882 = vmatprep.subr.mxu0 0.0
    %2883 = vmatpush1.msra.mxu0 0.0
    %2884 = vmatprep.subr.mxu0 0.0
    %2885 = vmatpush1.msra.mxu0 0.0
    %2886 = vmatprep.subr.mxu0 0.0
    %2887 = vmatpush1.msra.mxu0 0.0
    %2888 = vmatprep.subr.mxu0 0.0
    %2889 = vmatpush1.msra.mxu0 0.0
    %2890 = vmatprep.subr.mxu0 0.0
    %2891 = vmatpush1.msra.mxu0 0.0
    %2892 = vmatprep.subr.mxu0 0.0
    %2893 = vmatpush1.msra.mxu0 0.0
    %2894 = vmatprep.subr.mxu0 0.0
    %2895 = vmatpush1.msra.mxu0 0.0
    %2896 = vmatprep.subr.mxu0 0.0
    %2897 = vmatpush1.msra.mxu0 0.0
    %2898 = vmatprep.subr.mxu0 0.0
    %2899 = vmatpush1.msra.mxu0 0.0
    %2900 = vmatprep.subr.mxu0 0.0
    %2901 = vmatpush1.msra.mxu0 0.0
    %2902 = vmatprep.subr.mxu0 0.0
    %2903 = vmatpush1.msra.mxu0 0.0
    %2904 = vmatprep.subr.mxu0 0.0
    %2905 = vmatpush1.msra.mxu0 0.0
    %2906 = vmatprep.subr.mxu0 0.0
    %2907 = vmatpush1.msra.mxu0 0.0
    %2908 = vmatprep.subr.mxu0 0.0
    %2909 = vmatpush1.msra.mxu0 0.0
    %2910 = vmatprep.subr.mxu0 0.0
    %2911 = vmatpush1.msra.mxu0 0.0
    %2912 = vmatprep.subr.mxu0 0.0
    %2913 = vmatpush1.msra.mxu0 0.0
    %2914 = vmatprep.subr.mxu0 0.0
    %2915 = vmatpush1.msra.mxu0 0.0
    %2916 = vmatprep.subr.mxu0 0.0
    %2917 = vmatpush1.msra.mxu0 0.0
    %2918 = vmatprep.subr.mxu0 0.0
    %2919 = vmatpush1.msra.mxu0 0.0
    %2920 = vmatprep.subr.mxu0 0.0
    %2921 = vmatpush1.msra.mxu0 0.0
    %2922 = vmatprep.subr.mxu0 0.0
    %2923 = vmatpush1.msra.mxu0 0.0
    %2924 = vmatprep.subr.mxu0 0.0
    %2925 = vmatpush1.msra.mxu0 0.0
    %2926 = vmatprep.subr.mxu0 0.0
    %2927 = vmatpush1.msra.mxu0 0.0
    %2928 = vmatprep.mubr.f32.mxu0 0.0
    %2929 = vmatmul.mubr.f32.gmra.mrb[0].mxu0 %v2862
    %v2930 = vpop.f32.mrb[0].mxu0
    %v2931 = vadd.f32 0.0, %v2930
    %v2932 = vpop.f32.mrb[0].mxu0
    %2933 = vdwg.mxu0
    %2935 = vrot.lane.b32.xlu0 %v2856, 96
    %v2936 = vpop.permute.xlu0 %2935
    %v2937 = vsel %vm408, %v2936, 0
    %2939 = vmatprep.subr.mxu0 0.0
    %2940 = vmatpush1.msra.mxu0 %v2638
    %2941 = vmatprep.subr.mxu0 0.0
    %2942 = vmatpush1.msra.mxu0 %v2639
    %2943 = vmatprep.subr.mxu0 0.0
    %2944 = vmatpush1.msra.mxu0 %v2640
    %2945 = vmatprep.subr.mxu0 0.0
    %2946 = vmatpush1.msra.mxu0 %v2641
    %2947 = vmatprep.subr.mxu0 0.0
    %2948 = vmatpush1.msra.mxu0 0.0
    %2949 = vmatprep.subr.mxu0 0.0
    %2950 = vmatpush1.msra.mxu0 0.0
    %2951 = vmatprep.subr.mxu0 0.0
    %2952 = vmatpush1.msra.mxu0 0.0
    %2953 = vmatprep.subr.mxu0 0.0
    %2954 = vmatpush1.msra.mxu0 0.0
    %2955 = vmatprep.subr.mxu0 0.0
    %2956 = vmatpush1.msra.mxu0 0.0
    %2957 = vmatprep.subr.mxu0 0.0
    %2958 = vmatpush1.msra.mxu0 0.0
    %2959 = vmatprep.subr.mxu0 0.0
    %2960 = vmatpush1.msra.mxu0 0.0
    %2961 = vmatprep.subr.mxu0 0.0
    %2962 = vmatpush1.msra.mxu0 0.0
    %2963 = vmatprep.subr.mxu0 0.0
    %2964 = vmatpush1.msra.mxu0 0.0
    %2965 = vmatprep.subr.mxu0 0.0
    %2966 = vmatpush1.msra.mxu0 0.0
    %2967 = vmatprep.subr.mxu0 0.0
    %2968 = vmatpush1.msra.mxu0 0.0
    %2969 = vmatprep.subr.mxu0 0.0
    %2970 = vmatpush1.msra.mxu0 0.0
    %2971 = vmatprep.subr.mxu0 0.0
    %2972 = vmatpush1.msra.mxu0 0.0
    %2973 = vmatprep.subr.mxu0 0.0
    %2974 = vmatpush1.msra.mxu0 0.0
    %2975 = vmatprep.subr.mxu0 0.0
    %2976 = vmatpush1.msra.mxu0 0.0
    %2977 = vmatprep.subr.mxu0 0.0
    %2978 = vmatpush1.msra.mxu0 0.0
    %2979 = vmatprep.subr.mxu0 0.0
    %2980 = vmatpush1.msra.mxu0 0.0
    %2981 = vmatprep.subr.mxu0 0.0
    %2982 = vmatpush1.msra.mxu0 0.0
    %2983 = vmatprep.subr.mxu0 0.0
    %2984 = vmatpush1.msra.mxu0 0.0
    %2985 = vmatprep.subr.mxu0 0.0
    %2986 = vmatpush1.msra.mxu0 0.0
    %2987 = vmatprep.subr.mxu0 0.0
    %2988 = vmatpush1.msra.mxu0 0.0
    %2989 = vmatprep.subr.mxu0 0.0
    %2990 = vmatpush1.msra.mxu0 0.0
    %2991 = vmatprep.subr.mxu0 0.0
    %2992 = vmatpush1.msra.mxu0 0.0
    %2993 = vmatprep.subr.mxu0 0.0
    %2994 = vmatpush1.msra.mxu0 0.0
    %2995 = vmatprep.subr.mxu0 0.0
    %2996 = vmatpush1.msra.mxu0 0.0
    %2997 = vmatprep.subr.mxu0 0.0
    %2998 = vmatpush1.msra.mxu0 0.0
    %2999 = vmatprep.subr.mxu0 0.0
    %3000 = vmatpush1.msra.mxu0 0.0
    %3001 = vmatprep.subr.mxu0 0.0
    %3002 = vmatpush1.msra.mxu0 0.0
    %3003 = vmatprep.mubr.f32.mxu0 0.0
    %3004 = vmatmul.mubr.f32.gmra.mrb[0].mxu0 %v2937
    %v3005 = vpop.f32.mrb[0].mxu0
    %v3006 = vadd.f32 0.0, %v3005
    %v3007 = vpop.f32.mrb[0].mxu0
    %3008 = vdwg.mxu0
    %v3009 = vld [vmem:[%s615] sm:$0xff]
    %v3010 = vld [vmem:[%s690] sm:$0xff]
    %v3011 = vadd.f32 %v3009, %v2931
    %v3012 = vxor.u32 %v3011, 2147483648
    %v3013 = vmul.f32 %v3012, 1.442695
    %v3014 = vpow.pop %v3013
    %v3015 = vadd.f32 %v3014, 1.0
    %v3016 = vrcp.pop %v3015
    %v3017 = vmul.f32 1.0, %v3016
    %v3018 = vadd.f32 %v3010, %v3006
    %v3019 = vxor.u32 %v3018, 2147483648
    %v3020 = vmul.f32 %v3019, 1.442695
    %v3021 = vpow.pop %v3020
    %v3022 = vadd.f32 %v3021, 1.0
    %v3023 = vrcp.pop %v3022
    %v3024 = vmul.f32 1.0, %v3023
    %v3025 = vadd.f32 %v2931, %v2807
    %3027 = vrot.lane.b32.xlu0 %v3025, 64
    %v3028 = vpop.permute.xlu0 %3027
    %v3030 = vmul.f32 %v3017, %v3028
    %3032 = vrot.lane.b32.xlu0 %v3030, 64
    %v3033 = vpop.permute.xlu0 %3032
    %v3035 = vadd.f32 %v3009, %v3033
    %v3036 = vtanh.pop %v3035
    %v3037 = vadd.f32 %v3006, %v2827
    %3039 = vrot.lane.b32.xlu0 %v3037, 64
    %v3040 = vpop.permute.xlu0 %3039
    %v3042 = vmul.f32 %v3024, %v3040
    %3044 = vrot.lane.b32.xlu0 %v3042, 64
    %v3045 = vpop.permute.xlu0 %3044
    %v3047 = vadd.f32 %v3010, %v3045
    %v3048 = vtanh.pop %v3047
    %v3049 = vsub.f32 1.0, %v3017
    %3051 = vrot.lane.b32.xlu0 %v3036, 96
    %v3052 = vpop.permute.xlu0 %3051
    %v3054 = vmul.f32 %v3049, %v3052
    %v3055 = vmul.f32 %v3017, %v2848
    %v3056 = vadd.f32 %v3054, %v3055
    %v3057 = vsub.f32 1.0, %v3024
    %3059 = vrot.lane.b32.xlu0 %v3048, 96
    %v3060 = vpop.permute.xlu0 %3059
    %v3062 = vmul.f32 %v3057, %v3060
    %v3063 = vmul.f32 %v3024, %v2856
    %v3064 = vadd.f32 %v3062, %v3063
    %v3065 = vadd.f32 %v2857, %v3056
    %v3066 = vadd.f32 %v2858, %v3064
    %v3067 = vmax.f32 %v2848, %v3056
    %v3068 = vmax.f32 %v2856, %v3064
    %3070 = vrot.lane.b32.xlu0 %v3056, 96
    %v3071 = vpop.permute.xlu0 %3070
    %v3072 = vsel %vm408, %v3071, 0
    %3074 = vmatprep.subr.mxu0 0.0
    %3075 = vmatpush1.msra.mxu0 %v2633
    %3076 = vmatprep.subr.mxu0 0.0
    %3077 = vmatpush1.msra.mxu0 %v2634
    %3078 = vmatprep.subr.mxu0 0.0
    %3079 = vmatpush1.msra.mxu0 %v2635
    %3080 = vmatprep.subr.mxu0 0.0
    %3081 = vmatpush1.msra.mxu0 %v2636
    %3082 = vmatprep.subr.mxu0 0.0
    %3083 = vmatpush1.msra.mxu0 0.0
    %3084 = vmatprep.subr.mxu0 0.0
    %3085 = vmatpush1.msra.mxu0 0.0
    %3086 = vmatprep.subr.mxu0 0.0
    %3087 = vmatpush1.msra.mxu0 0.0
    %3088 = vmatprep.subr.mxu0 0.0
    %3089 = vmatpush1.msra.mxu0 0.0
    %3090 = vmatprep.subr.mxu0 0.0
    %3091 = vmatpush1.msra.mxu0 0.0
    %3092 = vmatprep.subr.mxu0 0.0
    %3093 = vmatpush1.msra.mxu0 0.0
    %3094 = vmatprep.subr.mxu0 0.0
    %3095 = vmatpush1.msra.mxu0 0.0
    %3096 = vmatprep.subr.mxu0 0.0
    %3097 = vmatpush1.msra.mxu0 0.0
    %3098 = vmatprep.subr.mxu0 0.0
    %3099 = vmatpush1.msra.mxu0 0.0
    %3100 = vmatprep.subr.mxu0 0.0
    %3101 = vmatpush1.msra.mxu0 0.0
    %3102 = vmatprep.subr.mxu0 0.0
    %3103 = vmatpush1.msra.mxu0 0.0
    %3104 = vmatprep.subr.mxu0 0.0
    %3105 = vmatpush1.msra.mxu0 0.0
    %3106 = vmatprep.subr.mxu0 0.0
    %3107 = vmatpush1.msra.mxu0 0.0
    %3108 = vmatprep.subr.mxu0 0.0
    %3109 = vmatpush1.msra.mxu0 0.0
    %3110 = vmatprep.subr.mxu0 0.0
    %3111 = vmatpush1.msra.mxu0 0.0
    %3112 = vmatprep.subr.mxu0 0.0
    %3113 = vmatpush1.msra.mxu0 0.0
    %3114 = vmatprep.subr.mxu0 0.0
    %3115 = vmatpush1.msra.mxu0 0.0
    %3116 = vmatprep.subr.mxu0 0.0
    %3117 = vmatpush1.msra.mxu0 0.0
    %3118 = vmatprep.subr.mxu0 0.0
    %3119 = vmatpush1.msra.mxu0 0.0
    %3120 = vmatprep.subr.mxu0 0.0
    %3121 = vmatpush1.msra.mxu0 0.0
    %3122 = vmatprep.subr.mxu0 0.0
    %3123 = vmatpush1.msra.mxu0 0.0
    %3124 = vmatprep.subr.mxu0 0.0
    %3125 = vmatpush1.msra.mxu0 0.0
    %3126 = vmatprep.subr.mxu0 0.0
    %3127 = vmatpush1.msra.mxu0 0.0
    %3128 = vmatprep.subr.mxu0 0.0
    %3129 = vmatpush1.msra.mxu0 0.0
    %3130 = vmatprep.subr.mxu0 0.0
    %3131 = vmatpush1.msra.mxu0 0.0
    %3132 = vmatprep.subr.mxu0 0.0
    %3133 = vmatpush1.msra.mxu0 0.0
    %3134 = vmatprep.subr.mxu0 0.0
    %3135 = vmatpush1.msra.mxu0 0.0
    %3136 = vmatprep.subr.mxu0 0.0
    %3137 = vmatpush1.msra.mxu0 0.0
    %3138 = vmatprep.mubr.f32.mxu0 0.0
    %3139 = vmatmul.mubr.f32.gmra.mrb[0].mxu0 %v3072
    %v3140 = vpop.f32.mrb[0].mxu0
    %v3141 = vadd.f32 0.0, %v3140
    %v3142 = vpop.f32.mrb[0].mxu0
    %3143 = vdwg.mxu0
    %3145 = vrot.lane.b32.xlu0 %v3064, 96
    %v3146 = vpop.permute.xlu0 %3145
    %v3147 = vsel %vm408, %v3146, 0
    %3149 = vmatprep.subr.mxu0 0.0
    %3150 = vmatpush1.msra.mxu0 %v2638
    %3151 = vmatprep.subr.mxu0 0.0
    %3152 = vmatpush1.msra.mxu0 %v2639
    %3153 = vmatprep.subr.mxu0 0.0
    %3154 = vmatpush1.msra.mxu0 %v2640
    %3155 = vmatprep.subr.mxu0 0.0
    %3156 = vmatpush1.msra.mxu0 %v2641
    %3157 = vmatprep.subr.mxu0 0.0
    %3158 = vmatpush1.msra.mxu0 0.0
    %3159 = vmatprep.subr.mxu0 0.0
    %3160 = vmatpush1.msra.mxu0 0.0
    %3161 = vmatprep.subr.mxu0 0.0
    %3162 = vmatpush1.msra.mxu0 0.0
    %3163 = vmatprep.subr.mxu0 0.0
    %3164 = vmatpush1.msra.mxu0 0.0
    %3165 = vmatprep.subr.mxu0 0.0
    %3166 = vmatpush1.msra.mxu0 0.0
    %3167 = vmatprep.subr.mxu0 0.0
    %3168 = vmatpush1.msra.mxu0 0.0
    %3169 = vmatprep.subr.mxu0 0.0
    %3170 = vmatpush1.msra.mxu0 0.0
    %3171 = vmatprep.subr.mxu0 0.0
    %3172 = vmatpush1.msra.mxu0 0.0
    %3173 = vmatprep.subr.mxu0 0.0
    %3174 = vmatpush1.msra.mxu0 0.0
    %3175 = vmatprep.subr.mxu0 0.0
    %3176 = vmatpush1.msra.mxu0 0.0
    %3177 = vmatprep.subr.mxu0 0.0
    %3178 = vmatpush1.msra.mxu0 0.0
    %3179 = vmatprep.subr.mxu0 0.0
    %3180 = vmatpush1.msra.mxu0 0.0
    %3181 = vmatprep.subr.mxu0 0.0
    %3182 = vmatpush1.msra.mxu0 0.0
    %3183 = vmatprep.subr.mxu0 0.0
    %3184 = vmatpush1.msra.mxu0 0.0
    %3185 = vmatprep.subr.mxu0 0.0
    %3186 = vmatpush1.msra.mxu0 0.0
    %3187 = vmatprep.subr.mxu0 0.0
    %3188 = vmatpush1.msra.mxu0 0.0
    %3189 = vmatprep.subr.mxu0 0.0
    %3190 = vmatpush1.msra.mxu0 0.0
    %3191 = vmatprep.subr.mxu0 0.0
    %3192 = vmatpush1.msra.mxu0 0.0
    %3193 = vmatprep.subr.mxu0 0.0
    %3194 = vmatpush1.msra.mxu0 0.0
    %3195 = vmatprep.subr.mxu0 0.0
    %3196 = vmatpush1.msra.mxu0 0.0
    %3197 = vmatprep.subr.mxu0 0.0
    %3198 = vmatpush1.msra.mxu0 0.0
    %3199 = vmatprep.subr.mxu0 0.0
    %3200 = vmatpush1.msra.mxu0 0.0
    %3201 = vmatprep.subr.mxu0 0.0
    %3202 = vmatpush1.msra.mxu0 0.0
    %3203 = vmatprep.subr.mxu0 0.0
    %3204 = vmatpush1.msra.mxu0 0.0
    %3205 = vmatprep.subr.mxu0 0.0
    %3206 = vmatpush1.msra.mxu0 0.0
    %3207 = vmatprep.subr.mxu0 0.0
    %3208 = vmatpush1.msra.mxu0 0.0
    %3209 = vmatprep.subr.mxu0 0.0
    %3210 = vmatpush1.msra.mxu0 0.0
    %3211 = vmatprep.subr.mxu0 0.0
    %3212 = vmatpush1.msra.mxu0 0.0
    %3213 = vmatprep.mubr.f32.mxu0 0.0
    %3214 = vmatmul.mubr.f32.gmra.mrb[0].mxu0 %v3147
    %v3215 = vpop.f32.mrb[0].mxu0
    %v3216 = vadd.f32 0.0, %v3215
    %v3217 = vpop.f32.mrb[0].mxu0
    %3218 = vdwg.mxu0
    %v3219 = vld [vmem:[%s825] sm:$0xff]
    %v3220 = vld [vmem:[%s900] sm:$0xff]
    %v3221 = vadd.f32 %v3219, %v3141
    %v3222 = vxor.u32 %v3221, 2147483648
    %v3223 = vmul.f32 %v3222, 1.442695
    %v3224 = vpow.pop %v3223
    %v3225 = vadd.f32 %v3224, 1.0
    %v3226 = vrcp.pop %v3225
    %v3227 = vmul.f32 1.0, %v3226
    %v3228 = vadd.f32 %v3220, %v3216
    %v3229 = vxor.u32 %v3228, 2147483648
    %v3230 = vmul.f32 %v3229, 1.442695
    %v3231 = vpow.pop %v3230
    %v3232 = vadd.f32 %v3231, 1.0
    %v3233 = vrcp.pop %v3232
    %v3234 = vmul.f32 1.0, %v3233
    %v3235 = vadd.f32 %v3141, %v2807
    %3237 = vrot.lane.b32.xlu0 %v3235, 64
    %v3238 = vpop.permute.xlu0 %3237
    %v3240 = vmul.f32 %v3227, %v3238
    %3242 = vrot.lane.b32.xlu0 %v3240, 64
    %v3243 = vpop.permute.xlu0 %3242
    %v3245 = vadd.f32 %v3219, %v3243
    %v3246 = vtanh.pop %v3245
    %v3247 = vadd.f32 %v3216, %v2827
    %3249 = vrot.lane.b32.xlu0 %v3247, 64
    %v3250 = vpop.permute.xlu0 %3249
    %v3252 = vmul.f32 %v3234, %v3250
    %3254 = vrot.lane.b32.xlu0 %v3252, 64
    %v3255 = vpop.permute.xlu0 %3254
    %v3257 = vadd.f32 %v3220, %v3255
    %v3258 = vtanh.pop %v3257
    %v3259 = vsub.f32 1.0, %v3227
    %3261 = vrot.lane.b32.xlu0 %v3246, 96
    %v3262 = vpop.permute.xlu0 %3261
    %v3264 = vmul.f32 %v3259, %v3262
    %v3265 = vmul.f32 %v3227, %v3056
    %v3266 = vadd.f32 %v3264, %v3265
    %v3267 = vsub.f32 1.0, %v3234
    %3269 = vrot.lane.b32.xlu0 %v3258, 96
    %v3270 = vpop.permute.xlu0 %3269
    %v3272 = vmul.f32 %v3267, %v3270
    %v3273 = vmul.f32 %v3234, %v3064
    %v3274 = vadd.f32 %v3272, %v3273
    %v3275 = vadd.f32 %v3065, %v3266
    %v3276 = vadd.f32 %v3066, %v3274
    %v3277 = vmax.f32 %v3067, %v3266
    %v3278 = vmax.f32 %v3068, %v3274
    %3280 = vrot.lane.b32.xlu0 %v3266, 96
    %v3281 = vpop.permute.xlu0 %3280
    %v3282 = vsel %vm408, %v3281, 0
    %3284 = vmatprep.subr.mxu0 0.0
    %3285 = vmatpush1.msra.mxu0 %v2633
    %3286 = vmatprep.subr.mxu0 0.0
    %3287 = vmatpush1.msra.mxu0 %v2634
    %3288 = vmatprep.subr.mxu0 0.0
    %3289 = vmatpush1.msra.mxu0 %v2635
    %3290 = vmatprep.subr.mxu0 0.0
    %3291 = vmatpush1.msra.mxu0 %v2636
    %3292 = vmatprep.subr.mxu0 0.0
    %3293 = vmatpush1.msra.mxu0 0.0
    %3294 = vmatprep.subr.mxu0 0.0
    %3295 = vmatpush1.msra.mxu0 0.0
    %3296 = vmatprep.subr.mxu0 0.0
    %3297 = vmatpush1.msra.mxu0 0.0
    %3298 = vmatprep.subr.mxu0 0.0
    %3299 = vmatpush1.msra.mxu0 0.0
    %3300 = vmatprep.subr.mxu0 0.0
    %3301 = vmatpush1.msra.mxu0 0.0
    %3302 = vmatprep.subr.mxu0 0.0
    %3303 = vmatpush1.msra.mxu0 0.0
    %3304 = vmatprep.subr.mxu0 0.0
    %3305 = vmatpush1.msra.mxu0 0.0
    %3306 = vmatprep.subr.mxu0 0.0
    %3307 = vmatpush1.msra.mxu0 0.0
    %3308 = vmatprep.subr.mxu0 0.0
    %3309 = vmatpush1.msra.mxu0 0.0
    %3310 = vmatprep.subr.mxu0 0.0
    %3311 = vmatpush1.msra.mxu0 0.0
    %3312 = vmatprep.subr.mxu0 0.0
    %3313 = vmatpush1.msra.mxu0 0.0
    %3314 = vmatprep.subr.mxu0 0.0
    %3315 = vmatpush1.msra.mxu0 0.0
    %3316 = vmatprep.subr.mxu0 0.0
    %3317 = vmatpush1.msra.mxu0 0.0
    %3318 = vmatprep.subr.mxu0 0.0
    %3319 = vmatpush1.msra.mxu0 0.0
    %3320 = vmatprep.subr.mxu0 0.0
    %3321 = vmatpush1.msra.mxu0 0.0
    %3322 = vmatprep.subr.mxu0 0.0
    %3323 = vmatpush1.msra.mxu0 0.0
    %3324 = vmatprep.subr.mxu0 0.0
    %3325 = vmatpush1.msra.mxu0 0.0
    %3326 = vmatprep.subr.mxu0 0.0
    %3327 = vmatpush1.msra.mxu0 0.0
    %3328 = vmatprep.subr.mxu0 0.0
    %3329 = vmatpush1.msra.mxu0 0.0
    %3330 = vmatprep.subr.mxu0 0.0
    %3331 = vmatpush1.msra.mxu0 0.0
    %3332 = vmatprep.subr.mxu0 0.0
    %3333 = vmatpush1.msra.mxu0 0.0
    %3334 = vmatprep.subr.mxu0 0.0
    %3335 = vmatpush1.msra.mxu0 0.0
    %3336 = vmatprep.subr.mxu0 0.0
    %3337 = vmatpush1.msra.mxu0 0.0
    %3338 = vmatprep.subr.mxu0 0.0
    %3339 = vmatpush1.msra.mxu0 0.0
    %3340 = vmatprep.subr.mxu0 0.0
    %3341 = vmatpush1.msra.mxu0 0.0
    %3342 = vmatprep.subr.mxu0 0.0
    %3343 = vmatpush1.msra.mxu0 0.0
    %3344 = vmatprep.subr.mxu0 0.0
    %3345 = vmatpush1.msra.mxu0 0.0
    %3346 = vmatprep.subr.mxu0 0.0
    %3347 = vmatpush1.msra.mxu0 0.0
    %3348 = vmatprep.mubr.f32.mxu0 0.0
    %3349 = vmatmul.mubr.f32.gmra.mrb[0].mxu0 %v3282
    %v3350 = vpop.f32.mrb[0].mxu0
    %v3351 = vadd.f32 0.0, %v3350
    %v3352 = vpop.f32.mrb[0].mxu0
    %3353 = vdwg.mxu0
    %3355 = vrot.lane.b32.xlu0 %v3274, 96
    %v3356 = vpop.permute.xlu0 %3355
    %v3357 = vsel %vm408, %v3356, 0
    %3359 = vmatprep.subr.mxu0 0.0
    %3360 = vmatpush1.msra.mxu0 %v2638
    %3361 = vmatprep.subr.mxu0 0.0
    %3362 = vmatpush1.msra.mxu0 %v2639
    %3363 = vmatprep.subr.mxu0 0.0
    %3364 = vmatpush1.msra.mxu0 %v2640
    %3365 = vmatprep.subr.mxu0 0.0
    %3366 = vmatpush1.msra.mxu0 %v2641
    %3367 = vmatprep.subr.mxu0 0.0
    %3368 = vmatpush1.msra.mxu0 0.0
    %3369 = vmatprep.subr.mxu0 0.0
    %3370 = vmatpush1.msra.mxu0 0.0
    %3371 = vmatprep.subr.mxu0 0.0
    %3372 = vmatpush1.msra.mxu0 0.0
    %3373 = vmatprep.subr.mxu0 0.0
    %3374 = vmatpush1.msra.mxu0 0.0
    %3375 = vmatprep.subr.mxu0 0.0
    %3376 = vmatpush1.msra.mxu0 0.0
    %3377 = vmatprep.subr.mxu0 0.0
    %3378 = vmatpush1.msra.mxu0 0.0
    %3379 = vmatprep.subr.mxu0 0.0
    %3380 = vmatpush1.msra.mxu0 0.0
    %3381 = vmatprep.subr.mxu0 0.0
    %3382 = vmatpush1.msra.mxu0 0.0
    %3383 = vmatprep.subr.mxu0 0.0
    %3384 = vmatpush1.msra.mxu0 0.0
    %3385 = vmatprep.subr.mxu0 0.0
    %3386 = vmatpush1.msra.mxu0 0.0
    %3387 = vmatprep.subr.mxu0 0.0
    %3388 = vmatpush1.msra.mxu0 0.0
    %3389 = vmatprep.subr.mxu0 0.0
    %3390 = vmatpush1.msra.mxu0 0.0
    %3391 = vmatprep.subr.mxu0 0.0
    %3392 = vmatpush1.msra.mxu0 0.0
    %3393 = vmatprep.subr.mxu0 0.0
    %3394 = vmatpush1.msra.mxu0 0.0
    %3395 = vmatprep.subr.mxu0 0.0
    %3396 = vmatpush1.msra.mxu0 0.0
    %3397 = vmatprep.subr.mxu0 0.0
    %3398 = vmatpush1.msra.mxu0 0.0
    %3399 = vmatprep.subr.mxu0 0.0
    %3400 = vmatpush1.msra.mxu0 0.0
    %3401 = vmatprep.subr.mxu0 0.0
    %3402 = vmatpush1.msra.mxu0 0.0
    %3403 = vmatprep.subr.mxu0 0.0
    %3404 = vmatpush1.msra.mxu0 0.0
    %3405 = vmatprep.subr.mxu0 0.0
    %3406 = vmatpush1.msra.mxu0 0.0
    %3407 = vmatprep.subr.mxu0 0.0
    %3408 = vmatpush1.msra.mxu0 0.0
    %3409 = vmatprep.subr.mxu0 0.0
    %3410 = vmatpush1.msra.mxu0 0.0
    %3411 = vmatprep.subr.mxu0 0.0
    %3412 = vmatpush1.msra.mxu0 0.0
    %3413 = vmatprep.subr.mxu0 0.0
    %3414 = vmatpush1.msra.mxu0 0.0
    %3415 = vmatprep.subr.mxu0 0.0
    %3416 = vmatpush1.msra.mxu0 0.0
    %3417 = vmatprep.subr.mxu0 0.0
    %3418 = vmatpush1.msra.mxu0 0.0
    %3419 = vmatprep.subr.mxu0 0.0
    %3420 = vmatpush1.msra.mxu0 0.0
    %3421 = vmatprep.subr.mxu0 0.0
    %3422 = vmatpush1.msra.mxu0 0.0
    %3423 = vmatprep.mubr.f32.mxu0 0.0
    %3424 = vmatmul.mubr.f32.gmra.mrb[0].mxu0 %v3357
    %v3425 = vpop.f32.mrb[0].mxu0
    %v3426 = vadd.f32 0.0, %v3425
    %v3427 = vpop.f32.mrb[0].mxu0
    %3428 = vdwg.mxu0
    %v3429 = vld [vmem:[%s1035] sm:$0xff]
    %v3430 = vld [vmem:[%s1110] sm:$0xff]
    %v3431 = vadd.f32 %v3429, %v3351
    %v3432 = vxor.u32 %v3431, 2147483648
    %v3433 = vmul.f32 %v3432, 1.442695
    %v3434 = vpow.pop %v3433
    %v3435 = vadd.f32 %v3434, 1.0
    %v3436 = vrcp.pop %v3435
    %v3437 = vmul.f32 1.0, %v3436
    %v3438 = vadd.f32 %v3430, %v3426
    %v3439 = vxor.u32 %v3438, 2147483648
    %v3440 = vmul.f32 %v3439, 1.442695
    %v3441 = vpow.pop %v3440
    %v3442 = vadd.f32 %v3441, 1.0
    %v3443 = vrcp.pop %v3442
    %v3444 = vmul.f32 1.0, %v3443
    %v3445 = vadd.f32 %v3351, %v2807
    %3447 = vrot.lane.b32.xlu0 %v3445, 64
    %v3448 = vpop.permute.xlu0 %3447
    %v3450 = vmul.f32 %v3437, %v3448
    %3452 = vrot.lane.b32.xlu0 %v3450, 64
    %v3453 = vpop.permute.xlu0 %3452
    %v3455 = vadd.f32 %v3429, %v3453
    %v3456 = vtanh.pop %v3455
    %v3457 = vadd.f32 %v3426, %v2827
    %3459 = vrot.lane.b32.xlu0 %v3457, 64
    %v3460 = vpop.permute.xlu0 %3459
    %v3462 = vmul.f32 %v3444, %v3460
    %3464 = vrot.lane.b32.xlu0 %v3462, 64
    %v3465 = vpop.permute.xlu0 %3464
    %v3467 = vadd.f32 %v3430, %v3465
    %v3468 = vtanh.pop %v3467
    %v3469 = vsub.f32 1.0, %v3437
    %3471 = vrot.lane.b32.xlu0 %v3456, 96
    %v3472 = vpop.permute.xlu0 %3471
    %v3474 = vmul.f32 %v3469, %v3472
    %v3475 = vmul.f32 %v3437, %v3266
    %v3476 = vadd.f32 %v3474, %v3475
    %v3477 = vsub.f32 1.0, %v3444
    %3479 = vrot.lane.b32.xlu0 %v3468, 96
    %v3480 = vpop.permute.xlu0 %3479
    %v3482 = vmul.f32 %v3477, %v3480
    %v3483 = vmul.f32 %v3444, %v3274
    %v3484 = vadd.f32 %v3482, %v3483
    %v3485 = vadd.f32 %v3275, %v3476
    %v3486 = vadd.f32 %v3276, %v3484
    %v3487 = vmax.f32 %v3277, %v3476
    %v3488 = vmax.f32 %v3278, %v3484
    %3490 = vrot.lane.b32.xlu0 %v3476, 96
    %v3491 = vpop.permute.xlu0 %3490
    %v3492 = vsel %vm408, %v3491, 0
    %3494 = vmatprep.subr.mxu0 0.0
    %3495 = vmatpush1.msra.mxu0 %v2633
    %3496 = vmatprep.subr.mxu0 0.0
    %3497 = vmatpush1.msra.mxu0 %v2634
    %3498 = vmatprep.subr.mxu0 0.0
    %3499 = vmatpush1.msra.mxu0 %v2635
    %3500 = vmatprep.subr.mxu0 0.0
    %3501 = vmatpush1.msra.mxu0 %v2636
    %3502 = vmatprep.subr.mxu0 0.0
    %3503 = vmatpush1.msra.mxu0 0.0
    %3504 = vmatprep.subr.mxu0 0.0
    %3505 = vmatpush1.msra.mxu0 0.0
    %3506 = vmatprep.subr.mxu0 0.0
    %3507 = vmatpush1.msra.mxu0 0.0
    %3508 = vmatprep.subr.mxu0 0.0
    %3509 = vmatpush1.msra.mxu0 0.0
    %3510 = vmatprep.subr.mxu0 0.0
    %3511 = vmatpush1.msra.mxu0 0.0
    %3512 = vmatprep.subr.mxu0 0.0
    %3513 = vmatpush1.msra.mxu0 0.0
    %3514 = vmatprep.subr.mxu0 0.0
    %3515 = vmatpush1.msra.mxu0 0.0
    %3516 = vmatprep.subr.mxu0 0.0
    %3517 = vmatpush1.msra.mxu0 0.0
    %3518 = vmatprep.subr.mxu0 0.0
    %3519 = vmatpush1.msra.mxu0 0.0
    %3520 = vmatprep.subr.mxu0 0.0
    %3521 = vmatpush1.msra.mxu0 0.0
    %3522 = vmatprep.subr.mxu0 0.0
    %3523 = vmatpush1.msra.mxu0 0.0
    %3524 = vmatprep.subr.mxu0 0.0
    %3525 = vmatpush1.msra.mxu0 0.0
    %3526 = vmatprep.subr.mxu0 0.0
    %3527 = vmatpush1.msra.mxu0 0.0
    %3528 = vmatprep.subr.mxu0 0.0
    %3529 = vmatpush1.msra.mxu0 0.0
    %3530 = vmatprep.subr.mxu0 0.0
    %3531 = vmatpush1.msra.mxu0 0.0
    %3532 = vmatprep.subr.mxu0 0.0
    %3533 = vmatpush1.msra.mxu0 0.0
    %3534 = vmatprep.subr.mxu0 0.0
    %3535 = vmatpush1.msra.mxu0 0.0
    %3536 = vmatprep.subr.mxu0 0.0
    %3537 = vmatpush1.msra.mxu0 0.0
    %3538 = vmatprep.subr.mxu0 0.0
    %3539 = vmatpush1.msra.mxu0 0.0
    %3540 = vmatprep.subr.mxu0 0.0
    %3541 = vmatpush1.msra.mxu0 0.0
    %3542 = vmatprep.subr.mxu0 0.0
    %3543 = vmatpush1.msra.mxu0 0.0
    %3544 = vmatprep.subr.mxu0 0.0
    %3545 = vmatpush1.msra.mxu0 0.0
    %3546 = vmatprep.subr.mxu0 0.0
    %3547 = vmatpush1.msra.mxu0 0.0
    %3548 = vmatprep.subr.mxu0 0.0
    %3549 = vmatpush1.msra.mxu0 0.0
    %3550 = vmatprep.subr.mxu0 0.0
    %3551 = vmatpush1.msra.mxu0 0.0
    %3552 = vmatprep.subr.mxu0 0.0
    %3553 = vmatpush1.msra.mxu0 0.0
    %3554 = vmatprep.subr.mxu0 0.0
    %3555 = vmatpush1.msra.mxu0 0.0
    %3556 = vmatprep.subr.mxu0 0.0
    %3557 = vmatpush1.msra.mxu0 0.0
    %3558 = vmatprep.mubr.f32.mxu0 0.0
    %3559 = vmatmul.mubr.f32.gmra.mrb[0].mxu0 %v3492
    %v3560 = vpop.f32.mrb[0].mxu0
    %v3561 = vadd.f32 0.0, %v3560
    %v3562 = vpop.f32.mrb[0].mxu0
    %3563 = vdwg.mxu0
    %3565 = vrot.lane.b32.xlu0 %v3484, 96
    %v3566 = vpop.permute.xlu0 %3565
    %v3567 = vsel %vm408, %v3566, 0
    %3569 = vmatprep.subr.mxu0 0.0
    %3570 = vmatpush1.msra.mxu0 %v2638
    %3571 = vmatprep.subr.mxu0 0.0
    %3572 = vmatpush1.msra.mxu0 %v2639
    %3573 = vmatprep.subr.mxu0 0.0
    %3574 = vmatpush1.msra.mxu0 %v2640
    %3575 = vmatprep.subr.mxu0 0.0
    %3576 = vmatpush1.msra.mxu0 %v2641
    %3577 = vmatprep.subr.mxu0 0.0
    %3578 = vmatpush1.msra.mxu0 0.0
    %3579 = vmatprep.subr.mxu0 0.0
    %3580 = vmatpush1.msra.mxu0 0.0
    %3581 = vmatprep.subr.mxu0 0.0
    %3582 = vmatpush1.msra.mxu0 0.0
    %3583 = vmatprep.subr.mxu0 0.0
    %3584 = vmatpush1.msra.mxu0 0.0
    %3585 = vmatprep.subr.mxu0 0.0
    %3586 = vmatpush1.msra.mxu0 0.0
    %3587 = vmatprep.subr.mxu0 0.0
    %3588 = vmatpush1.msra.mxu0 0.0
    %3589 = vmatprep.subr.mxu0 0.0
    %3590 = vmatpush1.msra.mxu0 0.0
    %3591 = vmatprep.subr.mxu0 0.0
    %3592 = vmatpush1.msra.mxu0 0.0
    %3593 = vmatprep.subr.mxu0 0.0
    %3594 = vmatpush1.msra.mxu0 0.0
    %3595 = vmatprep.subr.mxu0 0.0
    %3596 = vmatpush1.msra.mxu0 0.0
    %3597 = vmatprep.subr.mxu0 0.0
    %3598 = vmatpush1.msra.mxu0 0.0
    %3599 = vmatprep.subr.mxu0 0.0
    %3600 = vmatpush1.msra.mxu0 0.0
    %3601 = vmatprep.subr.mxu0 0.0
    %3602 = vmatpush1.msra.mxu0 0.0
    %3603 = vmatprep.subr.mxu0 0.0
    %3604 = vmatpush1.msra.mxu0 0.0
    %3605 = vmatprep.subr.mxu0 0.0
    %3606 = vmatpush1.msra.mxu0 0.0
    %3607 = vmatprep.subr.mxu0 0.0
    %3608 = vmatpush1.msra.mxu0 0.0
    %3609 = vmatprep.subr.mxu0 0.0
    %3610 = vmatpush1.msra.mxu0 0.0
    %3611 = vmatprep.subr.mxu0 0.0
    %3612 = vmatpush1.msra.mxu0 0.0
    %3613 = vmatprep.subr.mxu0 0.0
    %3614 = vmatpush1.msra.mxu0 0.0
    %3615 = vmatprep.subr.mxu0 0.0
    %3616 = vmatpush1.msra.mxu0 0.0
    %3617 = vmatprep.subr.mxu0 0.0
    %3618 = vmatpush1.msra.mxu0 0.0
    %3619 = vmatprep.subr.mxu0 0.0
    %3620 = vmatpush1.msra.mxu0 0.0
    %3621 = vmatprep.subr.mxu0 0.0
    %3622 = vmatpush1.msra.mxu0 0.0
    %3623 = vmatprep.subr.mxu0 0.0
    %3624 = vmatpush1.msra.mxu0 0.0
    %3625 = vmatprep.subr.mxu0 0.0
    %3626 = vmatpush1.msra.mxu0 0.0
    %3627 = vmatprep.subr.mxu0 0.0
    %3628 = vmatpush1.msra.mxu0 0.0
    %3629 = vmatprep.subr.mxu0 0.0
    %3630 = vmatpush1.msra.mxu0 0.0
    %3631 = vmatprep.subr.mxu0 0.0
    %3632 = vmatpush1.msra.mxu0 0.0
    %3633 = vmatprep.mubr.f32.mxu0 0.0
    %3634 = vmatmul.mubr.f32.gmra.mrb[0].mxu0 %v3567
    %v3635 = vpop.f32.mrb[0].mxu0
    %v3636 = vadd.f32 0.0, %v3635
    %v3637 = vpop.f32.mrb[0].mxu0
    %3638 = vdwg.mxu0
    %v3639 = vld [vmem:[%s1245] sm:$0xff]
    %v3640 = vld [vmem:[%s1320] sm:$0xff]
    %v3641 = vadd.f32 %v3639, %v3561
    %v3642 = vxor.u32 %v3641, 2147483648
    %v3643 = vmul.f32 %v3642, 1.442695
    %v3644 = vpow.pop %v3643
    %v3645 = vadd.f32 %v3644, 1.0
    %v3646 = vrcp.pop %v3645
    %v3647 = vmul.f32 1.0, %v3646
    %v3648 = vadd.f32 %v3640, %v3636
    %v3649 = vxor.u32 %v3648, 2147483648
    %v3650 = vmul.f32 %v3649, 1.442695
    %v3651 = vpow.pop %v3650
    %v3652 = vadd.f32 %v3651, 1.0
    %v3653 = vrcp.pop %v3652
    %v3654 = vmul.f32 1.0, %v3653
    %v3655 = vadd.f32 %v3561, %v2807
    %3657 = vrot.lane.b32.xlu0 %v3655, 64
    %v3658 = vpop.permute.xlu0 %3657
    %v3660 = vmul.f32 %v3647, %v3658
    %3662 = vrot.lane.b32.xlu0 %v3660, 64
    %v3663 = vpop.permute.xlu0 %3662
    %v3665 = vadd.f32 %v3639, %v3663
    %v3666 = vtanh.pop %v3665
    %v3667 = vadd.f32 %v3636, %v2827
    %3669 = vrot.lane.b32.xlu0 %v3667, 64
    %v3670 = vpop.permute.xlu0 %3669
    %v3672 = vmul.f32 %v3654, %v3670
    %3674 = vrot.lane.b32.xlu0 %v3672, 64
    %v3675 = vpop.permute.xlu0 %3674
    %v3677 = vadd.f32 %v3640, %v3675
    %v3678 = vtanh.pop %v3677
    %v3679 = vsub.f32 1.0, %v3647
    %3681 = vrot.lane.b32.xlu0 %v3666, 96
    %v3682 = vpop.permute.xlu0 %3681
    %v3684 = vmul.f32 %v3679, %v3682
    %v3685 = vmul.f32 %v3647, %v3476
    %v3686 = vadd.f32 %v3684, %v3685
    %v3687 = vsub.f32 1.0, %v3654
    %3689 = vrot.lane.b32.xlu0 %v3678, 96
    %v3690 = vpop.permute.xlu0 %3689
    %v3692 = vmul.f32 %v3687, %v3690
    %v3693 = vmul.f32 %v3654, %v3484
    %v3694 = vadd.f32 %v3692, %v3693
    %v3695 = vadd.f32 %v3485, %v3686
    %v3696 = vadd.f32 %v3486, %v3694
    %v3697 = vmax.f32 %v3487, %v3686
    %v3698 = vmax.f32 %v3488, %v3694
    %3700 = vrot.lane.b32.xlu0 %v3686, 96
    %v3701 = vpop.permute.xlu0 %3700
    %v3702 = vsel %vm408, %v3701, 0
    %3704 = vmatprep.subr.mxu0 0.0
    %3705 = vmatpush1.msra.mxu0 %v2633
    %3706 = vmatprep.subr.mxu0 0.0
    %3707 = vmatpush1.msra.mxu0 %v2634
    %3708 = vmatprep.subr.mxu0 0.0
    %3709 = vmatpush1.msra.mxu0 %v2635
    %3710 = vmatprep.subr.mxu0 0.0
    %3711 = vmatpush1.msra.mxu0 %v2636
    %3712 = vmatprep.subr.mxu0 0.0
    %3713 = vmatpush1.msra.mxu0 0.0
    %3714 = vmatprep.subr.mxu0 0.0
    %3715 = vmatpush1.msra.mxu0 0.0
    %3716 = vmatprep.subr.mxu0 0.0
    %3717 = vmatpush1.msra.mxu0 0.0
    %3718 = vmatprep.subr.mxu0 0.0
    %3719 = vmatpush1.msra.mxu0 0.0
    %3720 = vmatprep.subr.mxu0 0.0
    %3721 = vmatpush1.msra.mxu0 0.0
    %3722 = vmatprep.subr.mxu0 0.0
    %3723 = vmatpush1.msra.mxu0 0.0
    %3724 = vmatprep.subr.mxu0 0.0
    %3725 = vmatpush1.msra.mxu0 0.0
    %3726 = vmatprep.subr.mxu0 0.0
    %3727 = vmatpush1.msra.mxu0 0.0
    %3728 = vmatprep.subr.mxu0 0.0
    %3729 = vmatpush1.msra.mxu0 0.0
    %3730 = vmatprep.subr.mxu0 0.0
    %3731 = vmatpush1.msra.mxu0 0.0
    %3732 = vmatprep.subr.mxu0 0.0
    %3733 = vmatpush1.msra.mxu0 0.0
    %3734 = vmatprep.subr.mxu0 0.0
    %3735 = vmatpush1.msra.mxu0 0.0
    %3736 = vmatprep.subr.mxu0 0.0
    %3737 = vmatpush1.msra.mxu0 0.0
    %3738 = vmatprep.subr.mxu0 0.0
    %3739 = vmatpush1.msra.mxu0 0.0
    %3740 = vmatprep.subr.mxu0 0.0
    %3741 = vmatpush1.msra.mxu0 0.0
    %3742 = vmatprep.subr.mxu0 0.0
    %3743 = vmatpush1.msra.mxu0 0.0
    %3744 = vmatprep.subr.mxu0 0.0
    %3745 = vmatpush1.msra.mxu0 0.0
    %3746 = vmatprep.subr.mxu0 0.0
    %3747 = vmatpush1.msra.mxu0 0.0
    %3748 = vmatprep.subr.mxu0 0.0
    %3749 = vmatpush1.msra.mxu0 0.0
    %3750 = vmatprep.subr.mxu0 0.0
    %3751 = vmatpush1.msra.mxu0 0.0
    %3752 = vmatprep.subr.mxu0 0.0
    %3753 = vmatpush1.msra.mxu0 0.0
    %3754 = vmatprep.subr.mxu0 0.0
    %3755 = vmatpush1.msra.mxu0 0.0
    %3756 = vmatprep.subr.mxu0 0.0
    %3757 = vmatpush1.msra.mxu0 0.0
    %3758 = vmatprep.subr.mxu0 0.0
    %3759 = vmatpush1.msra.mxu0 0.0
    %3760 = vmatprep.subr.mxu0 0.0
    %3761 = vmatpush1.msra.mxu0 0.0
    %3762 = vmatprep.subr.mxu0 0.0
    %3763 = vmatpush1.msra.mxu0 0.0
    %3764 = vmatprep.subr.mxu0 0.0
    %3765 = vmatpush1.msra.mxu0 0.0
    %3766 = vmatprep.subr.mxu0 0.0
    %3767 = vmatpush1.msra.mxu0 0.0
    %3768 = vmatprep.mubr.f32.mxu0 0.0
    %3769 = vmatmul.mubr.f32.gmra.mrb[0].mxu0 %v3702
    %v3770 = vpop.f32.mrb[0].mxu0
    %v3771 = vadd.f32 0.0, %v3770
    %v3772 = vpop.f32.mrb[0].mxu0
    %3773 = vdwg.mxu0
    %3775 = vrot.lane.b32.xlu0 %v3694, 96
    %v3776 = vpop.permute.xlu0 %3775
    %v3777 = vsel %vm408, %v3776, 0
    %3779 = vmatprep.subr.mxu0 0.0
    %3780 = vmatpush1.msra.mxu0 %v2638
    %3781 = vmatprep.subr.mxu0 0.0
    %3782 = vmatpush1.msra.mxu0 %v2639
    %3783 = vmatprep.subr.mxu0 0.0
    %3784 = vmatpush1.msra.mxu0 %v2640
    %3785 = vmatprep.subr.mxu0 0.0
    %3786 = vmatpush1.msra.mxu0 %v2641
    %3787 = vmatprep.subr.mxu0 0.0
    %3788 = vmatpush1.msra.mxu0 0.0
    %3789 = vmatprep.subr.mxu0 0.0
    %3790 = vmatpush1.msra.mxu0 0.0
    %3791 = vmatprep.subr.mxu0 0.0
    %3792 = vmatpush1.msra.mxu0 0.0
    %3793 = vmatprep.subr.mxu0 0.0
    %3794 = vmatpush1.msra.mxu0 0.0
    %3795 = vmatprep.subr.mxu0 0.0
    %3796 = vmatpush1.msra.mxu0 0.0
    %3797 = vmatprep.subr.mxu0 0.0
    %3798 = vmatpush1.msra.mxu0 0.0
    %3799 = vmatprep.subr.mxu0 0.0
    %3800 = vmatpush1.msra.mxu0 0.0
    %3801 = vmatprep.subr.mxu0 0.0
    %3802 = vmatpush1.msra.mxu0 0.0
    %3803 = vmatprep.subr.mxu0 0.0
    %3804 = vmatpush1.msra.mxu0 0.0
    %3805 = vmatprep.subr.mxu0 0.0
    %3806 = vmatpush1.msra.mxu0 0.0
    %3807 = vmatprep.subr.mxu0 0.0
    %3808 = vmatpush1.msra.mxu0 0.0
    %3809 = vmatprep.subr.mxu0 0.0
    %3810 = vmatpush1.msra.mxu0 0.0
    %3811 = vmatprep.subr.mxu0 0.0
    %3812 = vmatpush1.msra.mxu0 0.0
    %3813 = vmatprep.subr.mxu0 0.0
    %3814 = vmatpush1.msra.mxu0 0.0
    %3815 = vmatprep.subr.mxu0 0.0
    %3816 = vmatpush1.msra.mxu0 0.0
    %3817 = vmatprep.subr.mxu0 0.0
    %3818 = vmatpush1.msra.mxu0 0.0
    %3819 = vmatprep.subr.mxu0 0.0
    %3820 = vmatpush1.msra.mxu0 0.0
    %3821 = vmatprep.subr.mxu0 0.0
    %3822 = vmatpush1.msra.mxu0 0.0
    %3823 = vmatprep.subr.mxu0 0.0
    %3824 = vmatpush1.msra.mxu0 0.0
    %3825 = vmatprep.subr.mxu0 0.0
    %3826 = vmatpush1.msra.mxu0 0.0
    %3827 = vmatprep.subr.mxu0 0.0
    %3828 = vmatpush1.msra.mxu0 0.0
    %3829 = vmatprep.subr.mxu0 0.0
    %3830 = vmatpush1.msra.mxu0 0.0
    %3831 = vmatprep.subr.mxu0 0.0
    %3832 = vmatpush1.msra.mxu0 0.0
    %3833 = vmatprep.subr.mxu0 0.0
    %3834 = vmatpush1.msra.mxu0 0.0
    %3835 = vmatprep.subr.mxu0 0.0
    %3836 = vmatpush1.msra.mxu0 0.0
    %3837 = vmatprep.subr.mxu0 0.0
    %3838 = vmatpush1.msra.mxu0 0.0
    %3839 = vmatprep.subr.mxu0 0.0
    %3840 = vmatpush1.msra.mxu0 0.0
    %3841 = vmatprep.subr.mxu0 0.0
    %3842 = vmatpush1.msra.mxu0 0.0
    %3843 = vmatprep.mubr.f32.mxu0 0.0
    %3844 = vmatmul.mubr.f32.gmra.mrb[0].mxu0 %v3777
    %v3845 = vpop.f32.mrb[0].mxu0
    %v3846 = vadd.f32 0.0, %v3845
    %v3847 = vpop.f32.mrb[0].mxu0
    %3848 = vdwg.mxu0
    %v3849 = vld [vmem:[%s1455] sm:$0xff]
    %v3850 = vld [vmem:[%s1530] sm:$0xff]
    %v3851 = vadd.f32 %v3849, %v3771
    %v3852 = vxor.u32 %v3851, 2147483648
    %v3853 = vmul.f32 %v3852, 1.442695
    %v3854 = vpow.pop %v3853
    %v3855 = vadd.f32 %v3854, 1.0
    %v3856 = vrcp.pop %v3855
    %v3857 = vmul.f32 1.0, %v3856
    %v3858 = vadd.f32 %v3850, %v3846
    %v3859 = vxor.u32 %v3858, 2147483648
    %v3860 = vmul.f32 %v3859, 1.442695
    %v3861 = vpow.pop %v3860
    %v3862 = vadd.f32 %v3861, 1.0
    %v3863 = vrcp.pop %v3862
    %v3864 = vmul.f32 1.0, %v3863
    %v3865 = vadd.f32 %v3771, %v2807
    %3867 = vrot.lane.b32.xlu0 %v3865, 64
    %v3868 = vpop.permute.xlu0 %3867
    %v3870 = vmul.f32 %v3857, %v3868
    %3872 = vrot.lane.b32.xlu0 %v3870, 64
    %v3873 = vpop.permute.xlu0 %3872
    %v3875 = vadd.f32 %v3849, %v3873
    %v3876 = vtanh.pop %v3875
    %v3877 = vadd.f32 %v3846, %v2827
    %3879 = vrot.lane.b32.xlu0 %v3877, 64
    %v3880 = vpop.permute.xlu0 %3879
    %v3882 = vmul.f32 %v3864, %v3880
    %3884 = vrot.lane.b32.xlu0 %v3882, 64
    %v3885 = vpop.permute.xlu0 %3884
    %v3887 = vadd.f32 %v3850, %v3885
    %v3888 = vtanh.pop %v3887
    %v3889 = vsub.f32 1.0, %v3857
    %3891 = vrot.lane.b32.xlu0 %v3876, 96
    %v3892 = vpop.permute.xlu0 %3891
    %v3894 = vmul.f32 %v3889, %v3892
    %v3895 = vmul.f32 %v3857, %v3686
    %v3896 = vadd.f32 %v3894, %v3895
    %v3897 = vsub.f32 1.0, %v3864
    %3899 = vrot.lane.b32.xlu0 %v3888, 96
    %v3900 = vpop.permute.xlu0 %3899
    %v3902 = vmul.f32 %v3897, %v3900
    %v3903 = vmul.f32 %v3864, %v3694
    %v3904 = vadd.f32 %v3902, %v3903
    %v3905 = vadd.f32 %v3695, %v3896
    %v3906 = vadd.f32 %v3696, %v3904
    %v3907 = vmax.f32 %v3697, %v3896
    %v3908 = vmax.f32 %v3698, %v3904
    %3910 = vrot.lane.b32.xlu0 %v3896, 96
    %v3911 = vpop.permute.xlu0 %3910
    %v3912 = vsel %vm408, %v3911, 0
    %3914 = vmatprep.subr.mxu0 0.0
    %3915 = vmatpush1.msra.mxu0 %v2633
    %3916 = vmatprep.subr.mxu0 0.0
    %3917 = vmatpush1.msra.mxu0 %v2634
    %3918 = vmatprep.subr.mxu0 0.0
    %3919 = vmatpush1.msra.mxu0 %v2635
    %3920 = vmatprep.subr.mxu0 0.0
    %3921 = vmatpush1.msra.mxu0 %v2636
    %3922 = vmatprep.subr.mxu0 0.0
    %3923 = vmatpush1.msra.mxu0 0.0
    %3924 = vmatprep.subr.mxu0 0.0
    %3925 = vmatpush1.msra.mxu0 0.0
    %3926 = vmatprep.subr.mxu0 0.0
    %3927 = vmatpush1.msra.mxu0 0.0
    %3928 = vmatprep.subr.mxu0 0.0
    %3929 = vmatpush1.msra.mxu0 0.0
    %3930 = vmatprep.subr.mxu0 0.0
    %3931 = vmatpush1.msra.mxu0 0.0
    %3932 = vmatprep.subr.mxu0 0.0
    %3933 = vmatpush1.msra.mxu0 0.0
    %3934 = vmatprep.subr.mxu0 0.0
    %3935 = vmatpush1.msra.mxu0 0.0
    %3936 = vmatprep.subr.mxu0 0.0
    %3937 = vmatpush1.msra.mxu0 0.0
    %3938 = vmatprep.subr.mxu0 0.0
    %3939 = vmatpush1.msra.mxu0 0.0
    %3940 = vmatprep.subr.mxu0 0.0
    %3941 = vmatpush1.msra.mxu0 0.0
    %3942 = vmatprep.subr.mxu0 0.0
    %3943 = vmatpush1.msra.mxu0 0.0
    %3944 = vmatprep.subr.mxu0 0.0
    %3945 = vmatpush1.msra.mxu0 0.0
    %3946 = vmatprep.subr.mxu0 0.0
    %3947 = vmatpush1.msra.mxu0 0.0
    %3948 = vmatprep.subr.mxu0 0.0
    %3949 = vmatpush1.msra.mxu0 0.0
    %3950 = vmatprep.subr.mxu0 0.0
    %3951 = vmatpush1.msra.mxu0 0.0
    %3952 = vmatprep.subr.mxu0 0.0
    %3953 = vmatpush1.msra.mxu0 0.0
    %3954 = vmatprep.subr.mxu0 0.0
    %3955 = vmatpush1.msra.mxu0 0.0
    %3956 = vmatprep.subr.mxu0 0.0
    %3957 = vmatpush1.msra.mxu0 0.0
    %3958 = vmatprep.subr.mxu0 0.0
    %3959 = vmatpush1.msra.mxu0 0.0
    %3960 = vmatprep.subr.mxu0 0.0
    %3961 = vmatpush1.msra.mxu0 0.0
    %3962 = vmatprep.subr.mxu0 0.0
    %3963 = vmatpush1.msra.mxu0 0.0
    %3964 = vmatprep.subr.mxu0 0.0
    %3965 = vmatpush1.msra.mxu0 0.0
    %3966 = vmatprep.subr.mxu0 0.0
    %3967 = vmatpush1.msra.mxu0 0.0
    %3968 = vmatprep.subr.mxu0 0.0
    %3969 = vmatpush1.msra.mxu0 0.0
    %3970 = vmatprep.subr.mxu0 0.0
    %3971 = vmatpush1.msra.mxu0 0.0
    %3972 = vmatprep.subr.mxu0 0.0
    %3973 = vmatpush1.msra.mxu0 0.0
    %3974 = vmatprep.subr.mxu0 0.0
    %3975 = vmatpush1.msra.mxu0 0.0
    %3976 = vmatprep.subr.mxu0 0.0
    %3977 = vmatpush1.msra.mxu0 0.0
    %3978 = vmatprep.mubr.f32.mxu0 0.0
    %3979 = vmatmul.mubr.f32.gmra.mrb[0].mxu0 %v3912
    %v3980 = vpop.f32.mrb[0].mxu0
    %v3981 = vadd.f32 0.0, %v3980
    %v3982 = vpop.f32.mrb[0].mxu0
    %3983 = vdwg.mxu0
    %3985 = vrot.lane.b32.xlu0 %v3904, 96
    %v3986 = vpop.permute.xlu0 %3985
    %v3987 = vsel %vm408, %v3986, 0
    %3989 = vmatprep.subr.mxu0 0.0
    %3990 = vmatpush1.msra.mxu0 %v2638
    %3991 = vmatprep.subr.mxu0 0.0
    %3992 = vmatpush1.msra.mxu0 %v2639
    %3993 = vmatprep.subr.mxu0 0.0
    %3994 = vmatpush1.msra.mxu0 %v2640
    %3995 = vmatprep.subr.mxu0 0.0
    %3996 = vmatpush1.msra.mxu0 %v2641
    %3997 = vmatprep.subr.mxu0 0.0
    %3998 = vmatpush1.msra.mxu0 0.0
    %3999 = vmatprep.subr.mxu0 0.0
    %4000 = vmatpush1.msra.mxu0 0.0
    %4001 = vmatprep.subr.mxu0 0.0
    %4002 = vmatpush1.msra.mxu0 0.0
    %4003 = vmatprep.subr.mxu0 0.0
    %4004 = vmatpush1.msra.mxu0 0.0
    %4005 = vmatprep.subr.mxu0 0.0
    %4006 = vmatpush1.msra.mxu0 0.0
    %4007 = vmatprep.subr.mxu0 0.0
    %4008 = vmatpush1.msra.mxu0 0.0
    %4009 = vmatprep.subr.mxu0 0.0
    %4010 = vmatpush1.msra.mxu0 0.0
    %4011 = vmatprep.subr.mxu0 0.0
    %4012 = vmatpush1.msra.mxu0 0.0
    %4013 = vmatprep.subr.mxu0 0.0
    %4014 = vmatpush1.msra.mxu0 0.0
    %4015 = vmatprep.subr.mxu0 0.0
    %4016 = vmatpush1.msra.mxu0 0.0
    %4017 = vmatprep.subr.mxu0 0.0
    %4018 = vmatpush1.msra.mxu0 0.0
    %4019 = vmatprep.subr.mxu0 0.0
    %4020 = vmatpush1.msra.mxu0 0.0
    %4021 = vmatprep.subr.mxu0 0.0
    %4022 = vmatpush1.msra.mxu0 0.0
    %4023 = vmatprep.subr.mxu0 0.0
    %4024 = vmatpush1.msra.mxu0 0.0
    %4025 = vmatprep.subr.mxu0 0.0
    %4026 = vmatpush1.msra.mxu0 0.0
    %4027 = vmatprep.subr.mxu0 0.0
    %4028 = vmatpush1.msra.mxu0 0.0
    %4029 = vmatprep.subr.mxu0 0.0
    %4030 = vmatpush1.msra.mxu0 0.0
    %4031 = vmatprep.subr.mxu0 0.0
    %4032 = vmatpush1.msra.mxu0 0.0
    %4033 = vmatprep.subr.mxu0 0.0
    %4034 = vmatpush1.msra.mxu0 0.0
    %4035 = vmatprep.subr.mxu0 0.0
    %4036 = vmatpush1.msra.mxu0 0.0
    %4037 = vmatprep.subr.mxu0 0.0
    %4038 = vmatpush1.msra.mxu0 0.0
    %4039 = vmatprep.subr.mxu0 0.0
    %4040 = vmatpush1.msra.mxu0 0.0
    %4041 = vmatprep.subr.mxu0 0.0
    %4042 = vmatpush1.msra.mxu0 0.0
    %4043 = vmatprep.subr.mxu0 0.0
    %4044 = vmatpush1.msra.mxu0 0.0
    %4045 = vmatprep.subr.mxu0 0.0
    %4046 = vmatpush1.msra.mxu0 0.0
    %4047 = vmatprep.subr.mxu0 0.0
    %4048 = vmatpush1.msra.mxu0 0.0
    %4049 = vmatprep.subr.mxu0 0.0
    %4050 = vmatpush1.msra.mxu0 0.0
    %4051 = vmatprep.subr.mxu0 0.0
    %4052 = vmatpush1.msra.mxu0 0.0
    %4053 = vmatprep.mubr.f32.mxu0 0.0
    %4054 = vmatmul.mubr.f32.gmra.mrb[0].mxu0 %v3987
    %v4055 = vpop.f32.mrb[0].mxu0
    %v4056 = vadd.f32 0.0, %v4055
    %v4057 = vpop.f32.mrb[0].mxu0
    %4058 = vdwg.mxu0
    %v4059 = vld [vmem:[%s1665] sm:$0xff]
    %v4060 = vld [vmem:[%s1740] sm:$0xff]
    %v4061 = vadd.f32 %v4059, %v3981
    %v4062 = vxor.u32 %v4061, 2147483648
    %v4063 = vmul.f32 %v4062, 1.442695
    %v4064 = vpow.pop %v4063
    %v4065 = vadd.f32 %v4064, 1.0
    %v4066 = vrcp.pop %v4065
    %v4067 = vmul.f32 1.0, %v4066
    %v4068 = vadd.f32 %v4060, %v4056
    %v4069 = vxor.u32 %v4068, 2147483648
    %v4070 = vmul.f32 %v4069, 1.442695
    %v4071 = vpow.pop %v4070
    %v4072 = vadd.f32 %v4071, 1.0
    %v4073 = vrcp.pop %v4072
    %v4074 = vmul.f32 1.0, %v4073
    %v4075 = vadd.f32 %v3981, %v2807
    %4077 = vrot.lane.b32.xlu0 %v4075, 64
    %v4078 = vpop.permute.xlu0 %4077
    %v4080 = vmul.f32 %v4067, %v4078
    %4082 = vrot.lane.b32.xlu0 %v4080, 64
    %v4083 = vpop.permute.xlu0 %4082
    %v4085 = vadd.f32 %v4059, %v4083
    %v4086 = vtanh.pop %v4085
    %v4087 = vadd.f32 %v4056, %v2827
    %4089 = vrot.lane.b32.xlu0 %v4087, 64
    %v4090 = vpop.permute.xlu0 %4089
    %v4092 = vmul.f32 %v4074, %v4090
    %4094 = vrot.lane.b32.xlu0 %v4092, 64
    %v4095 = vpop.permute.xlu0 %4094
    %v4097 = vadd.f32 %v4060, %v4095
    %v4098 = vtanh.pop %v4097
    %v4099 = vsub.f32 1.0, %v4067
    %4101 = vrot.lane.b32.xlu0 %v4086, 96
    %v4102 = vpop.permute.xlu0 %4101
    %v4104 = vmul.f32 %v4099, %v4102
    %v4105 = vmul.f32 %v4067, %v3896
    %v4106 = vadd.f32 %v4104, %v4105
    %v4107 = vsub.f32 1.0, %v4074
    %4109 = vrot.lane.b32.xlu0 %v4098, 96
    %v4110 = vpop.permute.xlu0 %4109
    %v4112 = vmul.f32 %v4107, %v4110
    %v4113 = vmul.f32 %v4074, %v3904
    %v4114 = vadd.f32 %v4112, %v4113
    %v4115 = vadd.f32 %v3905, %v4106
    %v4116 = vadd.f32 %v3906, %v4114
    %v4117 = vmax.f32 %v3907, %v4106
    %v4118 = vmax.f32 %v3908, %v4114
    %4120 = vrot.lane.b32.xlu0 %v4106, 96
    %v4121 = vpop.permute.xlu0 %4120
    %v4122 = vsel %vm408, %v4121, 0
    %4124 = vmatprep.subr.mxu0 0.0
    %4125 = vmatpush1.msra.mxu0 %v2633
    %4126 = vmatprep.subr.mxu0 0.0
    %4127 = vmatpush1.msra.mxu0 %v2634
    %4128 = vmatprep.subr.mxu0 0.0
    %4129 = vmatpush1.msra.mxu0 %v2635
    %4130 = vmatprep.subr.mxu0 0.0
    %4131 = vmatpush1.msra.mxu0 %v2636
    %4132 = vmatprep.subr.mxu0 0.0
    %4133 = vmatpush1.msra.mxu0 0.0
    %4134 = vmatprep.subr.mxu0 0.0
    %4135 = vmatpush1.msra.mxu0 0.0
    %4136 = vmatprep.subr.mxu0 0.0
    %4137 = vmatpush1.msra.mxu0 0.0
    %4138 = vmatprep.subr.mxu0 0.0
    %4139 = vmatpush1.msra.mxu0 0.0
    %4140 = vmatprep.subr.mxu0 0.0
    %4141 = vmatpush1.msra.mxu0 0.0
    %4142 = vmatprep.subr.mxu0 0.0
    %4143 = vmatpush1.msra.mxu0 0.0
    %4144 = vmatprep.subr.mxu0 0.0
    %4145 = vmatpush1.msra.mxu0 0.0
    %4146 = vmatprep.subr.mxu0 0.0
    %4147 = vmatpush1.msra.mxu0 0.0
    %4148 = vmatprep.subr.mxu0 0.0
    %4149 = vmatpush1.msra.mxu0 0.0
    %4150 = vmatprep.subr.mxu0 0.0
    %4151 = vmatpush1.msra.mxu0 0.0
    %4152 = vmatprep.subr.mxu0 0.0
    %4153 = vmatpush1.msra.mxu0 0.0
    %4154 = vmatprep.subr.mxu0 0.0
    %4155 = vmatpush1.msra.mxu0 0.0
    %4156 = vmatprep.subr.mxu0 0.0
    %4157 = vmatpush1.msra.mxu0 0.0
    %4158 = vmatprep.subr.mxu0 0.0
    %4159 = vmatpush1.msra.mxu0 0.0
    %4160 = vmatprep.subr.mxu0 0.0
    %4161 = vmatpush1.msra.mxu0 0.0
    %4162 = vmatprep.subr.mxu0 0.0
    %4163 = vmatpush1.msra.mxu0 0.0
    %4164 = vmatprep.subr.mxu0 0.0
    %4165 = vmatpush1.msra.mxu0 0.0
    %4166 = vmatprep.subr.mxu0 0.0
    %4167 = vmatpush1.msra.mxu0 0.0
    %4168 = vmatprep.subr.mxu0 0.0
    %4169 = vmatpush1.msra.mxu0 0.0
    %4170 = vmatprep.subr.mxu0 0.0
    %4171 = vmatpush1.msra.mxu0 0.0
    %4172 = vmatprep.subr.mxu0 0.0
    %4173 = vmatpush1.msra.mxu0 0.0
    %4174 = vmatprep.subr.mxu0 0.0
    %4175 = vmatpush1.msra.mxu0 0.0
    %4176 = vmatprep.subr.mxu0 0.0
    %4177 = vmatpush1.msra.mxu0 0.0
    %4178 = vmatprep.subr.mxu0 0.0
    %4179 = vmatpush1.msra.mxu0 0.0
    %4180 = vmatprep.subr.mxu0 0.0
    %4181 = vmatpush1.msra.mxu0 0.0
    %4182 = vmatprep.subr.mxu0 0.0
    %4183 = vmatpush1.msra.mxu0 0.0
    %4184 = vmatprep.subr.mxu0 0.0
    %4185 = vmatpush1.msra.mxu0 0.0
    %4186 = vmatprep.subr.mxu0 0.0
    %4187 = vmatpush1.msra.mxu0 0.0
    %4188 = vmatprep.mubr.f32.mxu0 0.0
    %4189 = vmatmul.mubr.f32.gmra.mrb[0].mxu0 %v4122
    %v4190 = vpop.f32.mrb[0].mxu0
    %v4191 = vadd.f32 0.0, %v4190
    %v4192 = vpop.f32.mrb[0].mxu0
    %4193 = vdwg.mxu0
    %4195 = vrot.lane.b32.xlu0 %v4114, 96
    %v4196 = vpop.permute.xlu0 %4195
    %v4197 = vsel %vm408, %v4196, 0
    %4199 = vmatprep.subr.mxu0 0.0
    %4200 = vmatpush1.msra.mxu0 %v2638
    %4201 = vmatprep.subr.mxu0 0.0
    %4202 = vmatpush1.msra.mxu0 %v2639
    %4203 = vmatprep.subr.mxu0 0.0
    %4204 = vmatpush1.msra.mxu0 %v2640
    %4205 = vmatprep.subr.mxu0 0.0
    %4206 = vmatpush1.msra.mxu0 %v2641
    %4207 = vmatprep.subr.mxu0 0.0
    %4208 = vmatpush1.msra.mxu0 0.0
    %4209 = vmatprep.subr.mxu0 0.0
    %4210 = vmatpush1.msra.mxu0 0.0
    %4211 = vmatprep.subr.mxu0 0.0
    %4212 = vmatpush1.msra.mxu0 0.0
    %4213 = vmatprep.subr.mxu0 0.0
    %4214 = vmatpush1.msra.mxu0 0.0
    %4215 = vmatprep.subr.mxu0 0.0
    %4216 = vmatpush1.msra.mxu0 0.0
    %4217 = vmatprep.subr.mxu0 0.0
    %4218 = vmatpush1.msra.mxu0 0.0
    %4219 = vmatprep.subr.mxu0 0.0
    %4220 = vmatpush1.msra.mxu0 0.0
    %4221 = vmatprep.subr.mxu0 0.0
    %4222 = vmatpush1.msra.mxu0 0.0
    %4223 = vmatprep.subr.mxu0 0.0
    %4224 = vmatpush1.msra.mxu0 0.0
    %4225 = vmatprep.subr.mxu0 0.0
    %4226 = vmatpush1.msra.mxu0 0.0
    %4227 = vmatprep.subr.mxu0 0.0
    %4228 = vmatpush1.msra.mxu0 0.0
    %4229 = vmatprep.subr.mxu0 0.0
    %4230 = vmatpush1.msra.mxu0 0.0
    %4231 = vmatprep.subr.mxu0 0.0
    %4232 = vmatpush1.msra.mxu0 0.0
    %4233 = vmatprep.subr.mxu0 0.0
    %4234 = vmatpush1.msra.mxu0 0.0
    %4235 = vmatprep.subr.mxu0 0.0
    %4236 = vmatpush1.msra.mxu0 0.0
    %4237 = vmatprep.subr.mxu0 0.0
    %4238 = vmatpush1.msra.mxu0 0.0
    %4239 = vmatprep.subr.mxu0 0.0
    %4240 = vmatpush1.msra.mxu0 0.0
    %4241 = vmatprep.subr.mxu0 0.0
    %4242 = vmatpush1.msra.mxu0 0.0
    %4243 = vmatprep.subr.mxu0 0.0
    %4244 = vmatpush1.msra.mxu0 0.0
    %4245 = vmatprep.subr.mxu0 0.0
    %4246 = vmatpush1.msra.mxu0 0.0
    %4247 = vmatprep.subr.mxu0 0.0
    %4248 = vmatpush1.msra.mxu0 0.0
    %4249 = vmatprep.subr.mxu0 0.0
    %4250 = vmatpush1.msra.mxu0 0.0
    %4251 = vmatprep.subr.mxu0 0.0
    %4252 = vmatpush1.msra.mxu0 0.0
    %4253 = vmatprep.subr.mxu0 0.0
    %4254 = vmatpush1.msra.mxu0 0.0
    %4255 = vmatprep.subr.mxu0 0.0
    %4256 = vmatpush1.msra.mxu0 0.0
    %4257 = vmatprep.subr.mxu0 0.0
    %4258 = vmatpush1.msra.mxu0 0.0
    %4259 = vmatprep.subr.mxu0 0.0
    %4260 = vmatpush1.msra.mxu0 0.0
    %4261 = vmatprep.subr.mxu0 0.0
    %4262 = vmatpush1.msra.mxu0 0.0
    %4263 = vmatprep.mubr.f32.mxu0 0.0
    %4264 = vmatmul.mubr.f32.gmra.mrb[0].mxu0 %v4197
    %v4265 = vpop.f32.mrb[0].mxu0
    %v4266 = vadd.f32 0.0, %v4265
    %v4267 = vpop.f32.mrb[0].mxu0
    %4268 = vdwg.mxu0
    %v4269 = vld [vmem:[%s1875] sm:$0xff]
    %v4270 = vld [vmem:[%s389] sm:$0xff]
    %v4271 = vadd.f32 %v4269, %v4191
    %v4272 = vxor.u32 %v4271, 2147483648
    %v4273 = vmul.f32 %v4272, 1.442695
    %v4274 = vpow.pop %v4273
    %v4275 = vadd.f32 %v4274, 1.0
    %v4276 = vrcp.pop %v4275
    %v4277 = vmul.f32 1.0, %v4276
    %v4278 = vadd.f32 %v4270, %v4266
    %v4279 = vxor.u32 %v4278, 2147483648
    %v4280 = vmul.f32 %v4279, 1.442695
    %v4281 = vpow.pop %v4280
    %v4282 = vadd.f32 %v4281, 1.0
    %v4283 = vrcp.pop %v4282
    %v4284 = vmul.f32 1.0, %v4283
    %v4285 = vadd.f32 %v4191, %v2807
    %4287 = vrot.lane.b32.xlu0 %v4285, 64
    %v4288 = vpop.permute.xlu0 %4287
    %v4290 = vmul.f32 %v4277, %v4288
    %4292 = vrot.lane.b32.xlu0 %v4290, 64
    %v4293 = vpop.permute.xlu0 %4292
    %v4295 = vadd.f32 %v4269, %v4293
    %v4296 = vtanh.pop %v4295
    %v4297 = vadd.f32 %v4266, %v2827
    %4299 = vrot.lane.b32.xlu0 %v4297, 64
    %v4300 = vpop.permute.xlu0 %4299
    %v4302 = vmul.f32 %v4284, %v4300
    %4304 = vrot.lane.b32.xlu0 %v4302, 64
    %v4305 = vpop.permute.xlu0 %4304
    %v4307 = vadd.f32 %v4270, %v4305
    %v4308 = vtanh.pop %v4307
    %v4309 = vsub.f32 1.0, %v4277
    %4311 = vrot.lane.b32.xlu0 %v4296, 96
    %v4312 = vpop.permute.xlu0 %4311
    %v4314 = vmul.f32 %v4309, %v4312
    %v4315 = vmul.f32 %v4277, %v4106
    %v4316 = vadd.f32 %v4314, %v4315
    %v4317 = vsub.f32 1.0, %v4284
    %4319 = vrot.lane.b32.xlu0 %v4308, 96
    %v4320 = vpop.permute.xlu0 %4319
    %v4322 = vmul.f32 %v4317, %v4320
    %v4323 = vmul.f32 %v4284, %v4114
    %v4324 = vadd.f32 %v4322, %v4323
    %v4325 = vadd.f32 %v4115, %v4316
    %v4326 = vadd.f32 %v4116, %v4324
    %v4327 = vmax.f32 %v4117, %v4316
    %v4328 = vmax.f32 %v4118, %v4324
    %v4329 = vmul.f32 %v4325, 0.125
    %v4330 = vmul.f32 %v4326, 0.125
    %4332 = vrot.lane.b32.xlu0 %v4329, 96
    %v4333 = vpop.permute.xlu0 %4332
    %4336 = vrot.lane.b32.xlu0 %v4327, 32
    %v4337 = vpop.permute.xlu0 %4336
    %4340 = vrot.lane.b32.xlu0 %v4328, 64
    %v4341 = vpop.permute.xlu0 %4340
    %v4343 = vsel %vm408, %v4333, %v4330
    %vm4344 = vcmask 523264
    %v4345 = vsel %vm4344, %v4343, %v4337
    %vm4346 = vcmask 785408
    %v4347 = vsel %vm4346, %v4345, %v4341
    %v4348 = vld [vmem:[#allocation14] sm:$0xff]
    %v4349 = vld [vmem:[#allocation14 + $0x8] sm:$0xff]
    %v4350 = vld [vmem:[#allocation14 + $0x10] sm:$0xff]
    %v4351 = vld [vmem:[#allocation14 + $0x18] sm:$0xff]
    %v4352 = vld [vmem:[#allocation14 + $0x20] sm:$0xff]
    %v4353 = vld [vmem:[#allocation14 + $0x28] sm:$0xff]
    %v4354 = vld [vmem:[#allocation14 + $0x30] sm:$0xff]
    %v4355 = vld [vmem:[#allocation14 + $0x38] sm:$0xff]
    %v4356 = vld [vmem:[#allocation14 + $0x40] sm:$0xff]
    %v4357 = vld [vmem:[#allocation14 + $0x48] sm:$0xff]
    %v4358 = vld [vmem:[#allocation14 + $0x50] sm:$0xff]
    %v4359 = vld [vmem:[#allocation14 + $0x58] sm:$0xff]
    %v4360 = vld [vmem:[#allocation14 + $0x60] sm:$0xff]
    %v4361 = vld [vmem:[#allocation14 + $0x68] sm:$0xff]
    %v4362 = vld [vmem:[#allocation14 + $0x70] sm:$0xff]
    %v4363 = vld [vmem:[#allocation14 + $0x78] sm:$0xff]
    %v4364 = vld [vmem:[%s9] sm:$0x1]
    %v4366 = vlaneseq
    %v4367 = vshrl.u32 %v4366, 7
    %v4368 = vsub.s32 0, %v4367
    %v4369 = vrot.slane %v4364, %v4368
    %4371 = vmatprep.subr.mxu0 0.0
    %4372 = vmatpush1.msra.mxu0 %v4348
    %4373 = vmatprep.subr.mxu0 0.0
    %4374 = vmatpush1.msra.mxu0 %v4349
    %4375 = vmatprep.subr.mxu0 0.0
    %4376 = vmatpush1.msra.mxu0 %v4350
    %4377 = vmatprep.subr.mxu0 0.0
    %4378 = vmatpush1.msra.mxu0 %v4351
    %4379 = vmatprep.subr.mxu0 0.0
    %4380 = vmatpush1.msra.mxu0 %v4352
    %4381 = vmatprep.subr.mxu0 0.0
    %4382 = vmatpush1.msra.mxu0 %v4353
    %4383 = vmatprep.subr.mxu0 0.0
    %4384 = vmatpush1.msra.mxu0 %v4354
    %4385 = vmatprep.subr.mxu0 0.0
    %4386 = vmatpush1.msra.mxu0 %v4355
    %4387 = vmatprep.subr.mxu0 0.0
    %4388 = vmatpush1.msra.mxu0 %v4356
    %4389 = vmatprep.subr.mxu0 0.0
    %4390 = vmatpush1.msra.mxu0 %v4357
    %4391 = vmatprep.subr.mxu0 0.0
    %4392 = vmatpush1.msra.mxu0 %v4358
    %4393 = vmatprep.subr.mxu0 0.0
    %4394 = vmatpush1.msra.mxu0 %v4359
    %4395 = vmatprep.subr.mxu0 0.0
    %4396 = vmatpush1.msra.mxu0 %v4360
    %4397 = vmatprep.subr.mxu0 0.0
    %4398 = vmatpush1.msra.mxu0 %v4361
    %4399 = vmatprep.subr.mxu0 0.0
    %4400 = vmatpush1.msra.mxu0 %v4362
    %4401 = vmatprep.subr.mxu0 0.0
    %4402 = vmatpush1.msra.mxu0 %v4363
    %4403 = vmatprep.subr.mxu0 0.0
    %4404 = vmatpush1.msra.mxu0 0.0
    %4405 = vmatprep.subr.mxu0 0.0
    %4406 = vmatpush1.msra.mxu0 0.0
    %4407 = vmatprep.subr.mxu0 0.0
    %4408 = vmatpush1.msra.mxu0 0.0
    %4409 = vmatprep.subr.mxu0 0.0
    %4410 = vmatpush1.msra.mxu0 0.0
    %4411 = vmatprep.subr.mxu0 0.0
    %4412 = vmatpush1.msra.mxu0 0.0
    %4413 = vmatprep.subr.mxu0 0.0
    %4414 = vmatpush1.msra.mxu0 0.0
    %4415 = vmatprep.subr.mxu0 0.0
    %4416 = vmatpush1.msra.mxu0 0.0
    %4417 = vmatprep.subr.mxu0 0.0
    %4418 = vmatpush1.msra.mxu0 0.0
    %4419 = vmatprep.subr.mxu0 0.0
    %4420 = vmatpush1.msra.mxu0 0.0
    %4421 = vmatprep.subr.mxu0 0.0
    %4422 = vmatpush1.msra.mxu0 0.0
    %4423 = vmatprep.subr.mxu0 0.0
    %4424 = vmatpush1.msra.mxu0 0.0
    %4425 = vmatprep.subr.mxu0 0.0
    %4426 = vmatpush1.msra.mxu0 0.0
    %4427 = vmatprep.subr.mxu0 0.0
    %4428 = vmatpush1.msra.mxu0 0.0
    %4429 = vmatprep.subr.mxu0 0.0
    %4430 = vmatpush1.msra.mxu0 0.0
    %4431 = vmatprep.subr.mxu0 0.0
    %4432 = vmatpush1.msra.mxu0 0.0
    %4433 = vmatprep.subr.mxu0 0.0
    %4434 = vmatpush1.msra.mxu0 0.0
    %4435 = vmatprep.mubr.f32.mxu0 0.0
    %4436 = vmatmul.mubr.f32.gmra.mrb[0].mxu0 %v4347
    %v4437 = vpop.f32.mrb[0].mxu0
    %v4438 = vadd.f32 %v4369, %v4437
    %v4439 = vpop.f32.mrb[0].mxu0
    %4440 = vdwg.mxu0
    %4441 = vst [vmem:[#allocation16] sm:$0xff] %v4438
    // Predicated region
    $region66: #{tpu_custom_call.1} parent=1 // pred_check
      _
    $region67: #{tpu_custom_call.1} parent=1 // pred_check_branch
      %4443 = sbr.rel (0) target = $region69
    $region68: #{tpu_custom_call.1} parent=1 // pred_region
      %s4445 = ssub.s32 128, 128
      %4446 = vsyncadd [#allocation7], %s4445
      %s4448 = sshll.u32 [#allocation16], 4
      %s4449 = int_to_ptr.vmem [resolvable:$true] %s4448
      %4451 = dma.vmem_to_hbm [thread:$0]  %s4449, 128, %s10, [#allocation7]
    $region69: #{tpu_custom_call.1} parent=1 // pred_fallthru
      _
    // Predicated region
    $region70: #{tpu_custom_call.1} parent=1 // pred_check
      _
    $region71: #{tpu_custom_call.1} parent=1 // pred_check_branch
      %4453 = sbr.rel (0) target = $region73
    $region72: #{tpu_custom_call.1} parent=1 // pred_region
      %4454 = dma.done [#allocation7], 128
    $region73: #{tpu_custom_call.1} parent=1 // pred_fallthru
      _
    %4455 = vsyncpa [#allocation6], 1
    %4456 = vsyncpa [#allocation9], 1
    %4457 = vsyncpa [#allocation12], 1
    %4458 = vsyncpa [#allocation15], 1
    %4459 = vsyncpa [#allocation7], 1

</llo_original>
